<compile_context>
chip_gen: v5e
topology: v5e:2x2
jax: 0.10.0
libtpu: 0.0.40
codegen_flags: <defaults>
</compile_context>

<pallas_src>
import jax
import jax.numpy as jnp
from jax.experimental import pallas as pl
from jax.experimental.pallas import tpu as pltpu

EPS = 1e-5


def _default_num_splits() -> int:
    """2 grid steps ('parallel') only on two-TensorCore parts (v7x); else 1."""
    try:
        kind = jax.devices()[0].device_kind.lower()
    except Exception:
        return 1
    return 2 if ("v7" in kind or "7x" in kind) else 1


def fused_kernel(x_ref, scale_ref, res_ref, w1_ref, gamma_ref, beta_ref,
                 w2_ref, out_ref):
    # x_ref     : (Cin, R)       f32   flattened x388              (1056, 196)
    # scale_ref : (1, Cin)       f32   x393 per-channel scale (lane-dense row)
    # res_ref   : (Cmid, R)      f32   flattened x382 residual     (176, 196)
    # w1_ref    : (Cmid, Cin)    bf16  1x1 conv weight 1056->176
    # gamma/beta: (Cmid, 1)      f32   batchnorm affine params
    # w2_ref    : (Co_blk, Cmid) bf16  row-slice of 1x1 conv weight 176->1056
    # out_ref   : (Co_blk, R)    out_dtype

    # Fold the SE channel scale into w1's columns (equivalent to scaling x's
    # rows, but lane-dense and only 176x1056 elements of VPU work).
    w1s = (w1_ref[...] * scale_ref[...]).astype(jnp.bfloat16)      # (Cmid, Cin)
    x = x_ref[...].astype(jnp.bfloat16)                            # (Cin, R)

    # conv2d132 as matmul: (Cmid, Cin) @ (Cin, R) -> (Cmid, R), f32 accumulate.
    y = jnp.dot(w1s, x, preferred_element_type=jnp.float32)

    # Training-mode BatchNorm over the pixel axis (lanes); two-pass variance
    # (biased, matching PyTorch BN forward normalization) for robustness.
    r_inv = 1.0 / y.shape[1]
    mean = jnp.sum(y, axis=1, keepdims=True) * r_inv               # (Cmid, 1)
    d = y - mean                                                    # (Cmid, R)
    var = jnp.sum(d * d, axis=1, keepdims=True) * r_inv            # (Cmid, 1)
    bn_scale = gamma_ref[...] * jax.lax.rsqrt(var + EPS)           # (Cmid, 1)

    # normalize + affine + residual add, then bf16 for the second matmul.
    # (intentional tradeoff: z is bf16 on the MXU path, f32 accumulation)
    z = (d * bn_scale + beta_ref[...] + res_ref[...]).astype(jnp.bfloat16)

    # conv2d133 as matmul: (Co_blk, Cmid) @ (Cmid, R) -> (Co_blk, R)
    out_ref[...] = jnp.dot(
        w2_ref[...], z, preferred_element_type=jnp.float32).astype(out_ref.dtype)


def prepare_params(w1, gamma, beta, w2):
    """One-time parameter prep (call ONCE, outside the hot path):
    bf16 weights in 2-D matmul layout, f32 column-vector BN params."""
    Cmid, Cin = w1.shape[0], w1.shape[1]
    w1m = w1.reshape(Cmid, Cin).astype(jnp.bfloat16)
    w2m = w2.reshape(Cin, Cmid).astype(jnp.bfloat16)
    g = gamma.reshape(Cmid, 1).astype(jnp.float32)
    b = beta.reshape(Cmid, 1).astype(jnp.float32)
    return w1m, g, b, w2m


def fused_forward(x388, x393, x382, w1m, g, b, w2m, *,
                  num_splits=None, out_dtype=jnp.float32):
    """x388:(1,1056,H,W) x393:(1,1056,1,1) x382:(1,176,H,W)
       w1m:(176,1056) bf16  w2m:(1056,176) bf16  g/b:(176,1) f32"""
    N, Cin, H, W = x388.shape
    Cmid = w1m.shape[0]
    R = N * H * W
    # For N == 1 (the module's shape) NCHW already is (C, H*W): zero transposes.
    # TODO(synk): N > 1 needs either one transpose or a two-phase BN over a
    #             batch grid axis; not implemented for this module spec.
    assert N == 1, "channels-as-rows fast path assumes batch size 1 (module spec)"

    if num_splits is None:
        num_splits = _default_num_splits()
    assert Cin % num_splits == 0 and (Cin // num_splits) % 8 == 0
    co_blk = Cin // num_splits   # second-matmul output rows per grid step

    x_cr = x388.reshape(Cin, R)
    res_cr = x382.reshape(Cmid, R)
    scale = x393.reshape(1, Cin)

    out_itemsize = jnp.dtype(out_dtype).itemsize
    cost = pl.CostEstimate(
        flops=int(4 * Cmid * Cin * R),            # two (Cmid,Cin)x(*,R) matmuls
        transcendentals=int(Cmid),                # rsqrt per channel
        bytes_accessed=int(x_cr.size * 4 + res_cr.size * 4 + scale.size * 4
                           + w1m.size * 2 + w2m.size * 2 + g.size * 4 + b.size * 4
                           + Cin * R * out_itemsize),
    )

    out_cr = pl.pallas_call(
        fused_kernel,
        out_shape=jax.ShapeDtypeStruct((Cin, R), out_dtype),
        grid=(num_splits,),
        in_specs=[
            pl.BlockSpec((Cin, R), lambda j: (0, 0)),        # x (whole array)
            pl.BlockSpec((1, Cin), lambda j: (0, 0)),        # SE scale row
            pl.BlockSpec((Cmid, R), lambda j: (0, 0)),       # residual
            pl.BlockSpec((Cmid, Cin), lambda j: (0, 0)),     # w1 (bf16)
            pl.BlockSpec((Cmid, 1), lambda j: (0, 0)),       # gamma
            pl.BlockSpec((Cmid, 1), lambda j: (0, 0)),       # beta
            pl.BlockSpec((co_blk, Cmid), lambda j: (j, 0)),  # w2 row-slice
        ],
        out_specs=pl.BlockSpec((co_blk, R), lambda j: (j, 0)),
        compiler_params=pltpu.CompilerParams(
            dimension_semantics=(("parallel",) if num_splits > 1
                                 else ("arbitrary",))),
        cost_estimate=cost,
    )(x_cr, scale, res_cr, w1m, g, b, w2m)

    return out_cr.reshape(N, Cin, H, W)


def reference(x388, x393, x382, w1, gamma, beta, w2):
    """Pure-JAX reference of the PyTorch forward (training-mode BN)."""
    dn = ("NCHW", "OIHW", "NCHW")
    x = x388 * x393
    y = jax.lax.conv_general_dilated(x, w1, (1, 1), "VALID",
                                     dimension_numbers=dn,
                                     precision=jax.lax.Precision.HIGHEST)
    mean = jnp.mean(y, axis=(0, 2, 3), keepdims=True)
    var = jnp.var(y, axis=(0, 2, 3), keepdims=True)   # biased, like PyTorch BN fwd
    y = (y - mean) * jax.lax.rsqrt(var + EPS)
    y = y * gamma.reshape(1, -1, 1, 1) + beta.reshape(1, -1, 1, 1)
    z = y + x382
    return jax.lax.conv_general_dilated(z, w2, (1, 1), "VALID",
                                        dimension_numbers=dn,
                                        precision=jax.lax.Precision.HIGHEST)


if __name__ == "__main__":
    key = jax.random.PRNGKey(0)
    k1, k2, k3, k4, k5, k6, k7 = jax.random.split(key, 7)

    # shapes implied by the module (batch=1, 14x14 spatial, 1056/176 channels)
    N, Cin, Cmid, H, W = 1, 1056, 176, 14, 14

    x388 = jax.random.normal(k1, (N, Cin, H, W), dtype=jnp.float32)
    x393 = jax.random.normal(k2, (N, Cin, 1, 1), dtype=jnp.float32)
    x382 = jax.random.normal(k3, (N, Cmid, H, W), dtype=jnp.float32)

    # deterministic parameter init (synthetic, not loaded from a checkpoint)
    w1 = 0.02 * jax.random.normal(k4, (Cmid, Cin, 1, 1), dtype=jnp.float32)
    w2 = 0.02 * jax.random.normal(k5, (Cin, Cmid, 1, 1), dtype=jnp.float32)
    gamma = 1.0 + 0.1 * jax.random.normal(k6, (Cmid,), dtype=jnp.float32)
    beta = 0.1 * jax.random.normal(k7, (Cmid,), dtype=jnp.float32)

    # One-time prep: bf16 weights / 2-D layout, OUTSIDE the per-forward path.
    params = prepare_params(w1, gamma, beta, w2)
    params = jax.tree_util.tree_map(jax.block_until_ready, params)

    fwd = jax.jit(fused_forward)
    out = jax.block_until_ready(fwd(x388, x393, x382, *params))

    ref = jax.block_until_ready(reference(x388, x393, x382, w1, gamma, beta, w2))

    assert out.shape == (N, Cin, H, W), out.shape
    assert bool(jnp.all(jnp.isfinite(out)))
    assert bool(jnp.allclose(out, ref, rtol=5e-2, atol=5e-2)), float(
        jnp.max(jnp.abs(out - ref)))

    print("KERNEL_OK")
</pallas_src>

<mosaic_0001>
module attributes {stable_mosaic.version = 11 : i64} {
  func.func @fused_kernel(%arg0: i32, %arg1: memref<1056x196xf32, #tpu.memory_space<vmem>>, %arg2: memref<1x1056xf32, #tpu.memory_space<vmem>>, %arg3: memref<176x196xf32, #tpu.memory_space<vmem>>, %arg4: memref<176x1056xbf16, #tpu.memory_space<vmem>>, %arg5: memref<176x1xf32, #tpu.memory_space<vmem>>, %arg6: memref<176x1xf32, #tpu.memory_space<vmem>>, %arg7: memref<1056x176xbf16, #tpu.memory_space<vmem>>, %arg8: memref<1056x196xf32, #tpu.memory_space<vmem>>) attributes {dimension_semantics = [#tpu.dimension_semantics<arbitrary>], iteration_bounds = array<i64: 1>, scalar_prefetch = 0 : i64, scratch_operands = 0 : i64, tpu.core_type = #tpu.core_type<tc>, window_params = [{pipeline_mode = #tpu.pipeline_mode<synchronous>, transform_indices = @transform_0, window_bounds = array<i64: 1056, 196>}, {pipeline_mode = #tpu.pipeline_mode<synchronous>, transform_indices = @transform_1, window_bounds = array<i64: 1, 1056>}, {pipeline_mode = #tpu.pipeline_mode<synchronous>, transform_indices = @transform_2, window_bounds = array<i64: 176, 196>}, {pipeline_mode = #tpu.pipeline_mode<synchronous>, transform_indices = @transform_3, window_bounds = array<i64: 176, 1056>}, {pipeline_mode = #tpu.pipeline_mode<synchronous>, transform_indices = @transform_4, window_bounds = array<i64: 176, 1>}, {pipeline_mode = #tpu.pipeline_mode<synchronous>, transform_indices = @transform_5, window_bounds = array<i64: 176, 1>}, {transform_indices = @transform_6, window_bounds = array<i64: 1056, 176>}, {transform_indices = @transform_7, window_bounds = array<i64: 1056, 196>}]} {
    %c0 = arith.constant 0 : index
    %c0_0 = arith.constant 0 : index
    %0 = vector.load %arg4[%c0, %c0_0] : memref<176x1056xbf16, #tpu.memory_space<vmem>>, vector<176x1056xbf16>
    %c0_1 = arith.constant 0 : index
    %c0_2 = arith.constant 0 : index
    %1 = vector.load %arg2[%c0_1, %c0_2] : memref<1x1056xf32, #tpu.memory_space<vmem>>, vector<1x1056xf32>
    %2 = arith.extf %0 : vector<176x1056xbf16> to vector<176x1056xf32>
    %3 = vector.broadcast %1 : vector<1x1056xf32> to vector<176x1056xf32>
    %4 = arith.mulf %2, %3 : vector<176x1056xf32>
    %5 = arith.truncf %4 : vector<176x1056xf32> to vector<176x1056xbf16>
    %c0_3 = arith.constant 0 : index
    %c0_4 = arith.constant 0 : index
    %6 = vector.load %arg1[%c0_3, %c0_4] : memref<1056x196xf32, #tpu.memory_space<vmem>>, vector<1056x196xf32>
    %7 = arith.truncf %6 : vector<1056x196xf32> to vector<1056x196xbf16>
    %cst = arith.constant dense<0.000000e+00> : vector<176x196xf32>
    %8 = tpu.matmul %5, %7, %cst {dimension_numbers = #tpu.dot_dimension_numbers<[1], [0], [0], [1], [0, 0, 1, 1], [], []>} : vector<176x1056xbf16>, vector<1056x196xbf16>, vector<176x196xf32> -> vector<176x196xf32>
    %cst_5 = arith.constant dense<0.000000e+00> : vector<176xf32>
    %9 = vector.multi_reduction <add>, %8, %cst_5 [1] : vector<176x196xf32> to vector<176xf32>
    %10 = vector.shape_cast %9 : vector<176xf32> to vector<176x1xf32>
    %cst_6 = arith.constant 0.00510204071 : f32
    %11 = vector.broadcast %cst_6 : f32 to vector<176x1xf32>
    %12 = arith.mulf %10, %11 : vector<176x1xf32>
    %13 = vector.broadcast %12 : vector<176x1xf32> to vector<176x196xf32>
    %14 = arith.subf %8, %13 : vector<176x196xf32>
    %15 = arith.mulf %14, %14 : vector<176x196xf32>
    %cst_7 = arith.constant dense<0.000000e+00> : vector<176xf32>
    %16 = vector.multi_reduction <add>, %15, %cst_7 [1] : vector<176x196xf32> to vector<176xf32>
    %17 = vector.shape_cast %16 : vector<176xf32> to vector<176x1xf32>
    %cst_8 = arith.constant 0.00510204071 : f32
    %18 = vector.broadcast %cst_8 : f32 to vector<176x1xf32>
    %19 = arith.mulf %17, %18 : vector<176x1xf32>
    %c0_9 = arith.constant 0 : index
    %c0_10 = arith.constant 0 : index
    %20 = vector.load %arg5[%c0_9, %c0_10] : memref<176x1xf32, #tpu.memory_space<vmem>>, vector<176x1xf32>
    %cst_11 = arith.constant 9.99999974E-6 : f32
    %21 = vector.broadcast %cst_11 : f32 to vector<176x1xf32>
    %22 = arith.addf %19, %21 : vector<176x1xf32>
    %23 = math.rsqrt %22 : vector<176x1xf32>
    %24 = arith.mulf %20, %23 : vector<176x1xf32>
    %25 = vector.broadcast %24 : vector<176x1xf32> to vector<176x196xf32>
    %26 = arith.mulf %14, %25 : vector<176x196xf32>
    %c0_12 = arith.constant 0 : index
    %c0_13 = arith.constant 0 : index
    %27 = vector.load %arg6[%c0_12, %c0_13] : memref<176x1xf32, #tpu.memory_space<vmem>>, vector<176x1xf32>
    %28 = vector.broadcast %27 : vector<176x1xf32> to vector<176x196xf32>
    %29 = arith.addf %26, %28 : vector<176x196xf32>
    %c0_14 = arith.constant 0 : index
    %c0_15 = arith.constant 0 : index
    %30 = vector.load %arg3[%c0_14, %c0_15] : memref<176x196xf32, #tpu.memory_space<vmem>>, vector<176x196xf32>
    %31 = arith.addf %29, %30 : vector<176x196xf32>
    %32 = arith.truncf %31 : vector<176x196xf32> to vector<176x196xbf16>
    %c0_16 = arith.constant 0 : index
    %c0_17 = arith.constant 0 : index
    %33 = vector.load %arg7[%c0_16, %c0_17] : memref<1056x176xbf16, #tpu.memory_space<vmem>>, vector<1056x176xbf16>
    %cst_18 = arith.constant dense<0.000000e+00> : vector<1056x196xf32>
    %34 = tpu.matmul %33, %32, %cst_18 {dimension_numbers = #tpu.dot_dimension_numbers<[1], [0], [0], [1], [0, 0, 1, 1], [], []>} : vector<1056x176xbf16>, vector<176x196xbf16>, vector<1056x196xf32> -> vector<1056x196xf32>
    %c0_19 = arith.constant 0 : index
    %c0_20 = arith.constant 0 : index
    %35 = vector.load %arg8[%c0_19, %c0_20] : memref<1056x196xf32, #tpu.memory_space<vmem>>, vector<1056x196xf32>
    tpu.vector_store %arg8[%c0_19, %c0_20], %34 {strides = array<i32>} : memref<1056x196xf32, #tpu.memory_space<vmem>>, vector<1056x196xf32>,
    return
  }
  func.func @transform_0(%arg0: i32) -> (i32, i32) {
    %c0_i32 = arith.constant 0 : i32
    %c0_i32_0 = arith.constant 0 : i32
    %c0_i32_1 = arith.constant 0 : i32
    return %c0_i32, %c0_i32_0 : i32, i32
  }
  func.func @transform_1(%arg0: i32) -> (i32, i32) {
    %c0_i32 = arith.constant 0 : i32
    %c0_i32_0 = arith.constant 0 : i32
    %c0_i32_1 = arith.constant 0 : i32
    return %c0_i32, %c0_i32_0 : i32, i32
  }
  func.func @transform_2(%arg0: i32) -> (i32, i32) {
    %c0_i32 = arith.constant 0 : i32
    %c0_i32_0 = arith.constant 0 : i32
    %c0_i32_1 = arith.constant 0 : i32
    return %c0_i32, %c0_i32_0 : i32, i32
  }
  func.func @transform_3(%arg0: i32) -> (i32, i32) {
    %c0_i32 = arith.constant 0 : i32
    %c0_i32_0 = arith.constant 0 : i32
    %c0_i32_1 = arith.constant 0 : i32
    return %c0_i32, %c0_i32_0 : i32, i32
  }
  func.func @transform_4(%arg0: i32) -> (i32, i32) {
    %c0_i32 = arith.constant 0 : i32
    %c0_i32_0 = arith.constant 0 : i32
    %c0_i32_1 = arith.constant 0 : i32
    return %c0_i32, %c0_i32_0 : i32, i32
  }
  func.func @transform_5(%arg0: i32) -> (i32, i32) {
    %c0_i32 = arith.constant 0 : i32
    %c0_i32_0 = arith.constant 0 : i32
    %c0_i32_1 = arith.constant 0 : i32
    return %c0_i32, %c0_i32_0 : i32, i32
  }
  func.func @transform_6(%arg0: i32) -> (i32, i32) {
    %c0_i32 = arith.constant 0 : i32
    %c0_i32_0 = arith.constant 0 : i32
    return %arg0, %c0_i32 : i32, i32
  }
  func.func @transform_7(%arg0: i32) -> (i32, i32) {
    %c0_i32 = arith.constant 0 : i32
    %c0_i32_0 = arith.constant 0 : i32
    return %arg0, %c0_i32 : i32, i32
  }
}

</mosaic_0001>

<llo_original>
// kernel: fused_forward.1
$region0: #{fused_forward.1}
  #allocation0 [shape = 'u32[]', space=smem, size = 0x4, offset = 0x4, fixed_abs, tag = 'smem constant byte address 0x4 - core index']
  #allocation1 [shape = 'u32[72,128]{1,0:T(1,128)}', space=vmem, size = 0x9000, scoped, tag = 'internal scratch']
  %s0 = inlined_call_operand.vmem [shape: f32[1056,196], index: 0, kind: input, shape index: {}]
  %s1 = inlined_call_operand.vmem [shape: f32[1,1056], index: 1, kind: input, shape index: {}]
  %s2 = inlined_call_operand.vmem [shape: f32[176,196], index: 2, kind: input, shape index: {}]
  %s3 = inlined_call_operand.vmem [shape: bf16[176,1056], index: 3, kind: input, shape index: {}]
  %s4 = inlined_call_operand.vmem [shape: f32[176,1], index: 4, kind: input, shape index: {}]
  %s5 = inlined_call_operand.vmem [shape: f32[176,1], index: 5, kind: input, shape index: {}]
  %s6 = inlined_call_operand.vmem [shape: bf16[1056,176], index: 6, kind: input, shape index: {}]
  %s7 = inlined_call_operand.vmem [shape: f32[1056,196], index: 7, kind: output, shape index: {}]
  %s8 = sld [smem:[#allocation0]]
  $region38: #{fused_forward.1} parent=0
    _
  %s10 = ssub.s32 1, %s8
  %s11 = scalar_select 0, %s10, %s8
  // Predicated region
  $region2: #{fused_forward.1} parent=0 // pred_check
    _
  $region3: #{fused_forward.1} parent=0 // pred_check_branch
    %13 = sbr.rel (0) target = $region5
  $region4: #{fused_forward.1} parent=0 // pred_region
    _
  $region5: #{fused_forward.1} parent=0 // pred_fallthru
    _
  // Predicated region
  $region6: #{fused_forward.1} parent=0 // pred_check
    _
  $region7: #{fused_forward.1} parent=0 // pred_check_branch
    %15 = sbr.rel (0) target = $region9
  $region8: #{fused_forward.1} parent=0 // pred_region
    _
  $region9: #{fused_forward.1} parent=0 // pred_fallthru
    _
  // Predicated region
  $region10: #{fused_forward.1} parent=0 // pred_check
    _
  $region11: #{fused_forward.1} parent=0 // pred_check_branch
    %17 = sbr.rel (0) target = $region13
  $region12: #{fused_forward.1} parent=0 // pred_region
    _
  $region13: #{fused_forward.1} parent=0 // pred_fallthru
    _
  // Predicated region
  $region14: #{fused_forward.1} parent=0 // pred_check
    _
  $region15: #{fused_forward.1} parent=0 // pred_check_branch
    %19 = sbr.rel (0) target = $region17
  $region16: #{fused_forward.1} parent=0 // pred_region
    _
  $region17: #{fused_forward.1} parent=0 // pred_fallthru
    _
  // Predicated region
  $region18: #{fused_forward.1} parent=0 // pred_check
    _
  $region19: #{fused_forward.1} parent=0 // pred_check_branch
    %21 = sbr.rel (0) target = $region21
  $region20: #{fused_forward.1} parent=0 // pred_region
    _
  $region21: #{fused_forward.1} parent=0 // pred_fallthru
    _
  // Predicated region
  $region22: #{fused_forward.1} parent=0 // pred_check
    _
  $region23: #{fused_forward.1} parent=0 // pred_check_branch
    %23 = sbr.rel (0) target = $region25
  $region24: #{fused_forward.1} parent=0 // pred_region
    _
  $region25: #{fused_forward.1} parent=0 // pred_fallthru
    _
  // Predicated region
  $region26: #{fused_forward.1} parent=0 // pred_check
    _
  $region27: #{fused_forward.1} parent=0 // pred_check_branch
    %25 = sbr.rel (0) target = $region29
  $region28: #{fused_forward.1} parent=0 // pred_region
    _
  $region29: #{fused_forward.1} parent=0 // pred_fallthru
    _
  %v27 = vld [vmem:[%s3] sm:$0xff]
  %v28 = vld [vmem:[%s3 + $0x8] sm:$0xff]
  %v29 = vld [vmem:[%s3 + $0x10] sm:$0xff]
  %v30 = vld [vmem:[%s3 + $0x18] sm:$0xff]
  %v31 = vld [vmem:[%s3 + $0x20] sm:$0xf]
  %v32 = vld [vmem:[%s3 + $0x24] sm:$0xff]
  %v33 = vld [vmem:[%s3 + $0x2c] sm:$0xff]
  %v34 = vld [vmem:[%s3 + $0x34] sm:$0xff]
  %v35 = vld [vmem:[%s3 + $0x3c] sm:$0xff]
  %v36 = vld [vmem:[%s3 + $0x44] sm:$0xf]
  %v37 = vld [vmem:[%s3 + $0x48] sm:$0xff]
  %v38 = vld [vmem:[%s3 + $0x50] sm:$0xff]
  %v39 = vld [vmem:[%s3 + $0x58] sm:$0xff]
  %v40 = vld [vmem:[%s3 + $0x60] sm:$0xff]
  %v41 = vld [vmem:[%s3 + $0x68] sm:$0xf]
  %v42 = vld [vmem:[%s3 + $0x6c] sm:$0xff]
  %v43 = vld [vmem:[%s3 + $0x74] sm:$0xff]
  %v44 = vld [vmem:[%s3 + $0x7c] sm:$0xff]
  %v45 = vld [vmem:[%s3 + $0x84] sm:$0xff]
  %v46 = vld [vmem:[%s3 + $0x8c] sm:$0xf]
  %v47 = vld [vmem:[%s3 + $0x90] sm:$0xff]
  %v48 = vld [vmem:[%s3 + $0x98] sm:$0xff]
  %v49 = vld [vmem:[%s3 + $0xa0] sm:$0xff]
  %v50 = vld [vmem:[%s3 + $0xa8] sm:$0xff]
  %v51 = vld [vmem:[%s3 + $0xb0] sm:$0xf]
  %v52 = vld [vmem:[%s3 + $0xb4] sm:$0xff]
  %v53 = vld [vmem:[%s3 + $0xbc] sm:$0xff]
  %v54 = vld [vmem:[%s3 + $0xc4] sm:$0xff]
  %v55 = vld [vmem:[%s3 + $0xcc] sm:$0xff]
  %v56 = vld [vmem:[%s3 + $0xd4] sm:$0xf]
  %v57 = vld [vmem:[%s3 + $0xd8] sm:$0xff]
  %v58 = vld [vmem:[%s3 + $0xe0] sm:$0xff]
  %v59 = vld [vmem:[%s3 + $0xe8] sm:$0xff]
  %v60 = vld [vmem:[%s3 + $0xf0] sm:$0xff]
  %v61 = vld [vmem:[%s3 + $0xf8] sm:$0xf]
  %v62 = vld [vmem:[%s3 + $0xfc] sm:$0xff]
  %v63 = vld [vmem:[%s3 + $0x104] sm:$0xff]
  %v64 = vld [vmem:[%s3 + $0x10c] sm:$0xff]
  %v65 = vld [vmem:[%s3 + $0x114] sm:$0xff]
  %v66 = vld [vmem:[%s3 + $0x11c] sm:$0xf]
  %v67 = vld [vmem:[%s3 + $0x120] sm:$0xff]
  %v68 = vld [vmem:[%s3 + $0x128] sm:$0xff]
  %v69 = vld [vmem:[%s3 + $0x130] sm:$0xff]
  %v70 = vld [vmem:[%s3 + $0x138] sm:$0xff]
  %v71 = vld [vmem:[%s3 + $0x140] sm:$0xf]
  %v72 = vld [vmem:[%s3 + $0x144] sm:$0xff]
  %v73 = vld [vmem:[%s3 + $0x14c] sm:$0xff]
  %v74 = vld [vmem:[%s3 + $0x154] sm:$0xff]
  %v75 = vld [vmem:[%s3 + $0x15c] sm:$0xff]
  %v76 = vld [vmem:[%s3 + $0x164] sm:$0xf]
  %v77 = vld [vmem:[%s3 + $0x168] sm:$0xff]
  %v78 = vld [vmem:[%s3 + $0x170] sm:$0xff]
  %v79 = vld [vmem:[%s3 + $0x178] sm:$0xff]
  %v80 = vld [vmem:[%s3 + $0x180] sm:$0xff]
  %v81 = vld [vmem:[%s3 + $0x188] sm:$0xf]
  %v82 = vld [vmem:[%s3 + $0x18c] sm:$0xff]
  %v83 = vld [vmem:[%s3 + $0x194] sm:$0xff]
  %v84 = vld [vmem:[%s3 + $0x19c] sm:$0xff]
  %v85 = vld [vmem:[%s3 + $0x1a4] sm:$0xff]
  %v86 = vld [vmem:[%s3 + $0x1ac] sm:$0xf]
  %v87 = vld [vmem:[%s3 + $0x1b0] sm:$0xff]
  %v88 = vld [vmem:[%s3 + $0x1b8] sm:$0xff]
  %v89 = vld [vmem:[%s3 + $0x1c0] sm:$0xff]
  %v90 = vld [vmem:[%s3 + $0x1c8] sm:$0xff]
  %v91 = vld [vmem:[%s3 + $0x1d0] sm:$0xf]
  %v92 = vld [vmem:[%s3 + $0x1d4] sm:$0xff]
  %v93 = vld [vmem:[%s3 + $0x1dc] sm:$0xff]
  %v94 = vld [vmem:[%s3 + $0x1e4] sm:$0xff]
  %v95 = vld [vmem:[%s3 + $0x1ec] sm:$0xff]
  %v96 = vld [vmem:[%s3 + $0x1f4] sm:$0xf]
  %v97 = vld [vmem:[%s3 + $0x1f8] sm:$0xff]
  %v98 = vld [vmem:[%s3 + $0x200] sm:$0xff]
  %v99 = vld [vmem:[%s3 + $0x208] sm:$0xff]
  %v100 = vld [vmem:[%s3 + $0x210] sm:$0xff]
  %v101 = vld [vmem:[%s3 + $0x218] sm:$0xf]
  %v102 = vld [vmem:[%s3 + $0x21c] sm:$0xff]
  %v103 = vld [vmem:[%s3 + $0x224] sm:$0xff]
  %v104 = vld [vmem:[%s3 + $0x22c] sm:$0xff]
  %v105 = vld [vmem:[%s3 + $0x234] sm:$0xff]
  %v106 = vld [vmem:[%s3 + $0x23c] sm:$0xf]
  %v107 = vld [vmem:[%s3 + $0x240] sm:$0xff]
  %v108 = vld [vmem:[%s3 + $0x248] sm:$0xff]
  %v109 = vld [vmem:[%s3 + $0x250] sm:$0xff]
  %v110 = vld [vmem:[%s3 + $0x258] sm:$0xff]
  %v111 = vld [vmem:[%s3 + $0x260] sm:$0xf]
  %v112 = vld [vmem:[%s3 + $0x264] sm:$0xff]
  %v113 = vld [vmem:[%s3 + $0x26c] sm:$0xff]
  %v114 = vld [vmem:[%s3 + $0x274] sm:$0xff]
  %v115 = vld [vmem:[%s3 + $0x27c] sm:$0xff]
  %v116 = vld [vmem:[%s3 + $0x284] sm:$0xf]
  %v117 = vld [vmem:[%s3 + $0x288] sm:$0xff]
  %v118 = vld [vmem:[%s3 + $0x290] sm:$0xff]
  %v119 = vld [vmem:[%s3 + $0x298] sm:$0xff]
  %v120 = vld [vmem:[%s3 + $0x2a0] sm:$0xff]
  %v121 = vld [vmem:[%s3 + $0x2a8] sm:$0xf]
  %v122 = vld [vmem:[%s3 + $0x2ac] sm:$0xff]
  %v123 = vld [vmem:[%s3 + $0x2b4] sm:$0xff]
  %v124 = vld [vmem:[%s3 + $0x2bc] sm:$0xff]
  %v125 = vld [vmem:[%s3 + $0x2c4] sm:$0xff]
  %v126 = vld [vmem:[%s3 + $0x2cc] sm:$0xf]
  %v127 = vld [vmem:[%s3 + $0x2d0] sm:$0xff]
  %v128 = vld [vmem:[%s3 + $0x2d8] sm:$0xff]
  %v129 = vld [vmem:[%s3 + $0x2e0] sm:$0xff]
  %v130 = vld [vmem:[%s3 + $0x2e8] sm:$0xff]
  %v131 = vld [vmem:[%s3 + $0x2f0] sm:$0xf]
  %v132 = vld [vmem:[%s3 + $0x2f4] sm:$0xff]
  %v133 = vld [vmem:[%s3 + $0x2fc] sm:$0xff]
  %v134 = vld [vmem:[%s3 + $0x304] sm:$0xff]
  %v135 = vld [vmem:[%s3 + $0x30c] sm:$0xff]
  %v136 = vld [vmem:[%s3 + $0x314] sm:$0xf]
  %v137 = vld [vmem:[%s1] sm:$0xff]
  %v138 = vld [vmem:[%s1 + $0x8] sm:$0x1]
  %v139 = vunpack.c.l.bf16 %v27
  %v140 = vunpack.c.h.bf16 %v27
  %v141 = vunpack.c.l.bf16 %v28
  %v142 = vunpack.c.h.bf16 %v28
  %v143 = vunpack.c.l.bf16 %v29
  %v144 = vunpack.c.h.bf16 %v29
  %v145 = vunpack.c.l.bf16 %v30
  %v146 = vunpack.c.h.bf16 %v30
  %v147 = vunpack.c.l.bf16 %v31
  %v148 = vunpack.c.l.bf16 %v32
  %v149 = vunpack.c.h.bf16 %v32
  %v150 = vunpack.c.l.bf16 %v33
  %v151 = vunpack.c.h.bf16 %v33
  %v152 = vunpack.c.l.bf16 %v34
  %v153 = vunpack.c.h.bf16 %v34
  %v154 = vunpack.c.l.bf16 %v35
  %v155 = vunpack.c.h.bf16 %v35
  %v156 = vunpack.c.l.bf16 %v36
  %v157 = vunpack.c.l.bf16 %v37
  %v158 = vunpack.c.h.bf16 %v37
  %v159 = vunpack.c.l.bf16 %v38
  %v160 = vunpack.c.h.bf16 %v38
  %v161 = vunpack.c.l.bf16 %v39
  %v162 = vunpack.c.h.bf16 %v39
  %v163 = vunpack.c.l.bf16 %v40
  %v164 = vunpack.c.h.bf16 %v40
  %v165 = vunpack.c.l.bf16 %v41
  %v166 = vunpack.c.l.bf16 %v42
  %v167 = vunpack.c.h.bf16 %v42
  %v168 = vunpack.c.l.bf16 %v43
  %v169 = vunpack.c.h.bf16 %v43
  %v170 = vunpack.c.l.bf16 %v44
  %v171 = vunpack.c.h.bf16 %v44
  %v172 = vunpack.c.l.bf16 %v45
  %v173 = vunpack.c.h.bf16 %v45
  %v174 = vunpack.c.l.bf16 %v46
  %v175 = vunpack.c.l.bf16 %v47
  %v176 = vunpack.c.h.bf16 %v47
  %v177 = vunpack.c.l.bf16 %v48
  %v178 = vunpack.c.h.bf16 %v48
  %v179 = vunpack.c.l.bf16 %v49
  %v180 = vunpack.c.h.bf16 %v49
  %v181 = vunpack.c.l.bf16 %v50
  %v182 = vunpack.c.h.bf16 %v50
  %v183 = vunpack.c.l.bf16 %v51
  %v184 = vunpack.c.l.bf16 %v52
  %v185 = vunpack.c.h.bf16 %v52
  %v186 = vunpack.c.l.bf16 %v53
  %v187 = vunpack.c.h.bf16 %v53
  %v188 = vunpack.c.l.bf16 %v54
  %v189 = vunpack.c.h.bf16 %v54
  %v190 = vunpack.c.l.bf16 %v55
  %v191 = vunpack.c.h.bf16 %v55
  %v192 = vunpack.c.l.bf16 %v56
  %v193 = vunpack.c.l.bf16 %v57
  %v194 = vunpack.c.h.bf16 %v57
  %v195 = vunpack.c.l.bf16 %v58
  %v196 = vunpack.c.h.bf16 %v58
  %v197 = vunpack.c.l.bf16 %v59
  %v198 = vunpack.c.h.bf16 %v59
  %v199 = vunpack.c.l.bf16 %v60
  %v200 = vunpack.c.h.bf16 %v60
  %v201 = vunpack.c.l.bf16 %v61
  %v202 = vunpack.c.l.bf16 %v62
  %v203 = vunpack.c.h.bf16 %v62
  %v204 = vunpack.c.l.bf16 %v63
  %v205 = vunpack.c.h.bf16 %v63
  %v206 = vunpack.c.l.bf16 %v64
  %v207 = vunpack.c.h.bf16 %v64
  %v208 = vunpack.c.l.bf16 %v65
  %v209 = vunpack.c.h.bf16 %v65
  %v210 = vunpack.c.l.bf16 %v66
  %v211 = vunpack.c.l.bf16 %v67
  %v212 = vunpack.c.h.bf16 %v67
  %v213 = vunpack.c.l.bf16 %v68
  %v214 = vunpack.c.h.bf16 %v68
  %v215 = vunpack.c.l.bf16 %v69
  %v216 = vunpack.c.h.bf16 %v69
  %v217 = vunpack.c.l.bf16 %v70
  %v218 = vunpack.c.h.bf16 %v70
  %v219 = vunpack.c.l.bf16 %v71
  %v220 = vunpack.c.l.bf16 %v72
  %v221 = vunpack.c.h.bf16 %v72
  %v222 = vunpack.c.l.bf16 %v73
  %v223 = vunpack.c.h.bf16 %v73
  %v224 = vunpack.c.l.bf16 %v74
  %v225 = vunpack.c.h.bf16 %v74
  %v226 = vunpack.c.l.bf16 %v75
  %v227 = vunpack.c.h.bf16 %v75
  %v228 = vunpack.c.l.bf16 %v76
  %v229 = vunpack.c.l.bf16 %v77
  %v230 = vunpack.c.h.bf16 %v77
  %v231 = vunpack.c.l.bf16 %v78
  %v232 = vunpack.c.h.bf16 %v78
  %v233 = vunpack.c.l.bf16 %v79
  %v234 = vunpack.c.h.bf16 %v79
  %v235 = vunpack.c.l.bf16 %v80
  %v236 = vunpack.c.h.bf16 %v80
  %v237 = vunpack.c.l.bf16 %v81
  %v238 = vunpack.c.l.bf16 %v82
  %v239 = vunpack.c.h.bf16 %v82
  %v240 = vunpack.c.l.bf16 %v83
  %v241 = vunpack.c.h.bf16 %v83
  %v242 = vunpack.c.l.bf16 %v84
  %v243 = vunpack.c.h.bf16 %v84
  %v244 = vunpack.c.l.bf16 %v85
  %v245 = vunpack.c.h.bf16 %v85
  %v246 = vunpack.c.l.bf16 %v86
  %v247 = vunpack.c.l.bf16 %v87
  %v248 = vunpack.c.h.bf16 %v87
  %v249 = vunpack.c.l.bf16 %v88
  %v250 = vunpack.c.h.bf16 %v88
  %v251 = vunpack.c.l.bf16 %v89
  %v252 = vunpack.c.h.bf16 %v89
  %v253 = vunpack.c.l.bf16 %v90
  %v254 = vunpack.c.h.bf16 %v90
  %v255 = vunpack.c.l.bf16 %v91
  %v256 = vunpack.c.l.bf16 %v92
  %v257 = vunpack.c.h.bf16 %v92
  %v258 = vunpack.c.l.bf16 %v93
  %v259 = vunpack.c.h.bf16 %v93
  %v260 = vunpack.c.l.bf16 %v94
  %v261 = vunpack.c.h.bf16 %v94
  %v262 = vunpack.c.l.bf16 %v95
  %v263 = vunpack.c.h.bf16 %v95
  %v264 = vunpack.c.l.bf16 %v96
  %v265 = vunpack.c.l.bf16 %v97
  %v266 = vunpack.c.h.bf16 %v97
  %v267 = vunpack.c.l.bf16 %v98
  %v268 = vunpack.c.h.bf16 %v98
  %v269 = vunpack.c.l.bf16 %v99
  %v270 = vunpack.c.h.bf16 %v99
  %v271 = vunpack.c.l.bf16 %v100
  %v272 = vunpack.c.h.bf16 %v100
  %v273 = vunpack.c.l.bf16 %v101
  %v274 = vunpack.c.l.bf16 %v102
  %v275 = vunpack.c.h.bf16 %v102
  %v276 = vunpack.c.l.bf16 %v103
  %v277 = vunpack.c.h.bf16 %v103
  %v278 = vunpack.c.l.bf16 %v104
  %v279 = vunpack.c.h.bf16 %v104
  %v280 = vunpack.c.l.bf16 %v105
  %v281 = vunpack.c.h.bf16 %v105
  %v282 = vunpack.c.l.bf16 %v106
  %v283 = vunpack.c.l.bf16 %v107
  %v284 = vunpack.c.h.bf16 %v107
  %v285 = vunpack.c.l.bf16 %v108
  %v286 = vunpack.c.h.bf16 %v108
  %v287 = vunpack.c.l.bf16 %v109
  %v288 = vunpack.c.h.bf16 %v109
  %v289 = vunpack.c.l.bf16 %v110
  %v290 = vunpack.c.h.bf16 %v110
  %v291 = vunpack.c.l.bf16 %v111
  %v292 = vunpack.c.l.bf16 %v112
  %v293 = vunpack.c.h.bf16 %v112
  %v294 = vunpack.c.l.bf16 %v113
  %v295 = vunpack.c.h.bf16 %v113
  %v296 = vunpack.c.l.bf16 %v114
  %v297 = vunpack.c.h.bf16 %v114
  %v298 = vunpack.c.l.bf16 %v115
  %v299 = vunpack.c.h.bf16 %v115
  %v300 = vunpack.c.l.bf16 %v116
  %v301 = vunpack.c.l.bf16 %v117
  %v302 = vunpack.c.h.bf16 %v117
  %v303 = vunpack.c.l.bf16 %v118
  %v304 = vunpack.c.h.bf16 %v118
  %v305 = vunpack.c.l.bf16 %v119
  %v306 = vunpack.c.h.bf16 %v119
  %v307 = vunpack.c.l.bf16 %v120
  %v308 = vunpack.c.h.bf16 %v120
  %v309 = vunpack.c.l.bf16 %v121
  %v310 = vunpack.c.l.bf16 %v122
  %v311 = vunpack.c.h.bf16 %v122
  %v312 = vunpack.c.l.bf16 %v123
  %v313 = vunpack.c.h.bf16 %v123
  %v314 = vunpack.c.l.bf16 %v124
  %v315 = vunpack.c.h.bf16 %v124
  %v316 = vunpack.c.l.bf16 %v125
  %v317 = vunpack.c.h.bf16 %v125
  %v318 = vunpack.c.l.bf16 %v126
  %v319 = vunpack.c.l.bf16 %v127
  %v320 = vunpack.c.h.bf16 %v127
  %v321 = vunpack.c.l.bf16 %v128
  %v322 = vunpack.c.h.bf16 %v128
  %v323 = vunpack.c.l.bf16 %v129
  %v324 = vunpack.c.h.bf16 %v129
  %v325 = vunpack.c.l.bf16 %v130
  %v326 = vunpack.c.h.bf16 %v130
  %v327 = vunpack.c.l.bf16 %v131
  %v328 = vunpack.c.l.bf16 %v132
  %v329 = vunpack.c.h.bf16 %v132
  %v330 = vunpack.c.l.bf16 %v133
  %v331 = vunpack.c.h.bf16 %v133
  %v332 = vunpack.c.l.bf16 %v134
  %v333 = vunpack.c.h.bf16 %v134
  %v334 = vunpack.c.l.bf16 %v135
  %v335 = vunpack.c.h.bf16 %v135
  %v336 = vunpack.c.l.bf16 %v136
  %v339 = vperm.slane %v137, 0
  %v340 = vperm.slane %v137, 1
  %v341 = vperm.slane %v137, 2
  %v342 = vperm.slane %v137, 3
  %v343 = vperm.slane %v137, 4
  %v344 = vperm.slane %v137, 5
  %v345 = vperm.slane %v137, 6
  %v346 = vperm.slane %v137, 7
  %v347 = vperm.slane %v138, 0
  %v357 = vmul.f32 %v139, %v339
  %v358 = vmul.f32 %v140, %v340
  %v359 = vmul.f32 %v141, %v341
  %v360 = vmul.f32 %v142, %v342
  %v361 = vmul.f32 %v143, %v343
  %v362 = vmul.f32 %v144, %v344
  %v363 = vmul.f32 %v145, %v345
  %v364 = vmul.f32 %v146, %v346
  %v365 = vmul.f32 %v147, %v347
  %v366 = vmul.f32 %v148, %v339
  %v367 = vmul.f32 %v149, %v340
  %v368 = vmul.f32 %v150, %v341
  %v369 = vmul.f32 %v151, %v342
  %v370 = vmul.f32 %v152, %v343
  %v371 = vmul.f32 %v153, %v344
  %v372 = vmul.f32 %v154, %v345
  %v373 = vmul.f32 %v155, %v346
  %v374 = vmul.f32 %v156, %v347
  %v375 = vmul.f32 %v157, %v339
  %v376 = vmul.f32 %v158, %v340
  %v377 = vmul.f32 %v159, %v341
  %v378 = vmul.f32 %v160, %v342
  %v379 = vmul.f32 %v161, %v343
  %v380 = vmul.f32 %v162, %v344
  %v381 = vmul.f32 %v163, %v345
  %v382 = vmul.f32 %v164, %v346
  %v383 = vmul.f32 %v165, %v347
  %v384 = vmul.f32 %v166, %v339
  %v385 = vmul.f32 %v167, %v340
  %v386 = vmul.f32 %v168, %v341
  %v387 = vmul.f32 %v169, %v342
  %v388 = vmul.f32 %v170, %v343
  %v389 = vmul.f32 %v171, %v344
  %v390 = vmul.f32 %v172, %v345
  %v391 = vmul.f32 %v173, %v346
  %v392 = vmul.f32 %v174, %v347
  %v393 = vmul.f32 %v175, %v339
  %v394 = vmul.f32 %v176, %v340
  %v395 = vmul.f32 %v177, %v341
  %v396 = vmul.f32 %v178, %v342
  %v397 = vmul.f32 %v179, %v343
  %v398 = vmul.f32 %v180, %v344
  %v399 = vmul.f32 %v181, %v345
  %v400 = vmul.f32 %v182, %v346
  %v401 = vmul.f32 %v183, %v347
  %v402 = vmul.f32 %v184, %v339
  %v403 = vmul.f32 %v185, %v340
  %v404 = vmul.f32 %v186, %v341
  %v405 = vmul.f32 %v187, %v342
  %v406 = vmul.f32 %v188, %v343
  %v407 = vmul.f32 %v189, %v344
  %v408 = vmul.f32 %v190, %v345
  %v409 = vmul.f32 %v191, %v346
  %v410 = vmul.f32 %v192, %v347
  %v411 = vmul.f32 %v193, %v339
  %v412 = vmul.f32 %v194, %v340
  %v413 = vmul.f32 %v195, %v341
  %v414 = vmul.f32 %v196, %v342
  %v415 = vmul.f32 %v197, %v343
  %v416 = vmul.f32 %v198, %v344
  %v417 = vmul.f32 %v199, %v345
  %v418 = vmul.f32 %v200, %v346
  %v419 = vmul.f32 %v201, %v347
  %v420 = vmul.f32 %v202, %v339
  %v421 = vmul.f32 %v203, %v340
  %v422 = vmul.f32 %v204, %v341
  %v423 = vmul.f32 %v205, %v342
  %v424 = vmul.f32 %v206, %v343
  %v425 = vmul.f32 %v207, %v344
  %v426 = vmul.f32 %v208, %v345
  %v427 = vmul.f32 %v209, %v346
  %v428 = vmul.f32 %v210, %v347
  %v429 = vmul.f32 %v211, %v339
  %v430 = vmul.f32 %v212, %v340
  %v431 = vmul.f32 %v213, %v341
  %v432 = vmul.f32 %v214, %v342
  %v433 = vmul.f32 %v215, %v343
  %v434 = vmul.f32 %v216, %v344
  %v435 = vmul.f32 %v217, %v345
  %v436 = vmul.f32 %v218, %v346
  %v437 = vmul.f32 %v219, %v347
  %v438 = vmul.f32 %v220, %v339
  %v439 = vmul.f32 %v221, %v340
  %v440 = vmul.f32 %v222, %v341
  %v441 = vmul.f32 %v223, %v342
  %v442 = vmul.f32 %v224, %v343
  %v443 = vmul.f32 %v225, %v344
  %v444 = vmul.f32 %v226, %v345
  %v445 = vmul.f32 %v227, %v346
  %v446 = vmul.f32 %v228, %v347
  %v447 = vmul.f32 %v229, %v339
  %v448 = vmul.f32 %v230, %v340
  %v449 = vmul.f32 %v231, %v341
  %v450 = vmul.f32 %v232, %v342
  %v451 = vmul.f32 %v233, %v343
  %v452 = vmul.f32 %v234, %v344
  %v453 = vmul.f32 %v235, %v345
  %v454 = vmul.f32 %v236, %v346
  %v455 = vmul.f32 %v237, %v347
  %v456 = vmul.f32 %v238, %v339
  %v457 = vmul.f32 %v239, %v340
  %v458 = vmul.f32 %v240, %v341
  %v459 = vmul.f32 %v241, %v342
  %v460 = vmul.f32 %v242, %v343
  %v461 = vmul.f32 %v243, %v344
  %v462 = vmul.f32 %v244, %v345
  %v463 = vmul.f32 %v245, %v346
  %v464 = vmul.f32 %v246, %v347
  %v465 = vmul.f32 %v247, %v339
  %v466 = vmul.f32 %v248, %v340
  %v467 = vmul.f32 %v249, %v341
  %v468 = vmul.f32 %v250, %v342
  %v469 = vmul.f32 %v251, %v343
  %v470 = vmul.f32 %v252, %v344
  %v471 = vmul.f32 %v253, %v345
  %v472 = vmul.f32 %v254, %v346
  %v473 = vmul.f32 %v255, %v347
  %v474 = vmul.f32 %v256, %v339
  %v475 = vmul.f32 %v257, %v340
  %v476 = vmul.f32 %v258, %v341
  %v477 = vmul.f32 %v259, %v342
  %v478 = vmul.f32 %v260, %v343
  %v479 = vmul.f32 %v261, %v344
  %v480 = vmul.f32 %v262, %v345
  %v481 = vmul.f32 %v263, %v346
  %v482 = vmul.f32 %v264, %v347
  %v483 = vmul.f32 %v265, %v339
  %v484 = vmul.f32 %v266, %v340
  %v485 = vmul.f32 %v267, %v341
  %v486 = vmul.f32 %v268, %v342
  %v487 = vmul.f32 %v269, %v343
  %v488 = vmul.f32 %v270, %v344
  %v489 = vmul.f32 %v271, %v345
  %v490 = vmul.f32 %v272, %v346
  %v491 = vmul.f32 %v273, %v347
  %v492 = vmul.f32 %v274, %v339
  %v493 = vmul.f32 %v275, %v340
  %v494 = vmul.f32 %v276, %v341
  %v495 = vmul.f32 %v277, %v342
  %v496 = vmul.f32 %v278, %v343
  %v497 = vmul.f32 %v279, %v344
  %v498 = vmul.f32 %v280, %v345
  %v499 = vmul.f32 %v281, %v346
  %v500 = vmul.f32 %v282, %v347
  %v501 = vmul.f32 %v283, %v339
  %v502 = vmul.f32 %v284, %v340
  %v503 = vmul.f32 %v285, %v341
  %v504 = vmul.f32 %v286, %v342
  %v505 = vmul.f32 %v287, %v343
  %v506 = vmul.f32 %v288, %v344
  %v507 = vmul.f32 %v289, %v345
  %v508 = vmul.f32 %v290, %v346
  %v509 = vmul.f32 %v291, %v347
  %v510 = vmul.f32 %v292, %v339
  %v511 = vmul.f32 %v293, %v340
  %v512 = vmul.f32 %v294, %v341
  %v513 = vmul.f32 %v295, %v342
  %v514 = vmul.f32 %v296, %v343
  %v515 = vmul.f32 %v297, %v344
  %v516 = vmul.f32 %v298, %v345
  %v517 = vmul.f32 %v299, %v346
  %v518 = vmul.f32 %v300, %v347
  %v519 = vmul.f32 %v301, %v339
  %v520 = vmul.f32 %v302, %v340
  %v521 = vmul.f32 %v303, %v341
  %v522 = vmul.f32 %v304, %v342
  %v523 = vmul.f32 %v305, %v343
  %v524 = vmul.f32 %v306, %v344
  %v525 = vmul.f32 %v307, %v345
  %v526 = vmul.f32 %v308, %v346
  %v527 = vmul.f32 %v309, %v347
  %v528 = vmul.f32 %v310, %v339
  %v529 = vmul.f32 %v311, %v340
  %v530 = vmul.f32 %v312, %v341
  %v531 = vmul.f32 %v313, %v342
  %v532 = vmul.f32 %v314, %v343
  %v533 = vmul.f32 %v315, %v344
  %v534 = vmul.f32 %v316, %v345
  %v535 = vmul.f32 %v317, %v346
  %v536 = vmul.f32 %v318, %v347
  %v537 = vmul.f32 %v319, %v339
  %v538 = vmul.f32 %v320, %v340
  %v539 = vmul.f32 %v321, %v341
  %v540 = vmul.f32 %v322, %v342
  %v541 = vmul.f32 %v323, %v343
  %v542 = vmul.f32 %v324, %v344
  %v543 = vmul.f32 %v325, %v345
  %v544 = vmul.f32 %v326, %v346
  %v545 = vmul.f32 %v327, %v347
  %v546 = vmul.f32 %v328, %v339
  %v547 = vmul.f32 %v329, %v340
  %v548 = vmul.f32 %v330, %v341
  %v549 = vmul.f32 %v331, %v342
  %v550 = vmul.f32 %v332, %v343
  %v551 = vmul.f32 %v333, %v344
  %v552 = vmul.f32 %v334, %v345
  %v553 = vmul.f32 %v335, %v346
  %v554 = vmul.f32 %v336, %v347
  %v555 = vpack.c.bf16 %v366, %v357
  %v556 = vpack.c.bf16 %v367, %v358
  %v557 = vpack.c.bf16 %v368, %v359
  %v558 = vpack.c.bf16 %v369, %v360
  %v559 = vpack.c.bf16 %v370, %v361
  %v560 = vpack.c.bf16 %v371, %v362
  %v561 = vpack.c.bf16 %v372, %v363
  %v562 = vpack.c.bf16 %v373, %v364
  %v563 = vpack.c.bf16 %v374, %v365
  %v564 = vpack.c.bf16 %v384, %v375
  %v565 = vpack.c.bf16 %v385, %v376
  %v566 = vpack.c.bf16 %v386, %v377
  %v567 = vpack.c.bf16 %v387, %v378
  %v568 = vpack.c.bf16 %v388, %v379
  %v569 = vpack.c.bf16 %v389, %v380
  %v570 = vpack.c.bf16 %v390, %v381
  %v571 = vpack.c.bf16 %v391, %v382
  %v572 = vpack.c.bf16 %v392, %v383
  %v573 = vpack.c.bf16 %v402, %v393
  %v574 = vpack.c.bf16 %v403, %v394
  %v575 = vpack.c.bf16 %v404, %v395
  %v576 = vpack.c.bf16 %v405, %v396
  %v577 = vpack.c.bf16 %v406, %v397
  %v578 = vpack.c.bf16 %v407, %v398
  %v579 = vpack.c.bf16 %v408, %v399
  %v580 = vpack.c.bf16 %v409, %v400
  %v581 = vpack.c.bf16 %v410, %v401
  %v582 = vpack.c.bf16 %v420, %v411
  %v583 = vpack.c.bf16 %v421, %v412
  %v584 = vpack.c.bf16 %v422, %v413
  %v585 = vpack.c.bf16 %v423, %v414
  %v586 = vpack.c.bf16 %v424, %v415
  %v587 = vpack.c.bf16 %v425, %v416
  %v588 = vpack.c.bf16 %v426, %v417
  %v589 = vpack.c.bf16 %v427, %v418
  %v590 = vpack.c.bf16 %v428, %v419
  %v591 = vpack.c.bf16 %v438, %v429
  %v592 = vpack.c.bf16 %v439, %v430
  %v593 = vpack.c.bf16 %v440, %v431
  %v594 = vpack.c.bf16 %v441, %v432
  %v595 = vpack.c.bf16 %v442, %v433
  %v596 = vpack.c.bf16 %v443, %v434
  %v597 = vpack.c.bf16 %v444, %v435
  %v598 = vpack.c.bf16 %v445, %v436
  %v599 = vpack.c.bf16 %v446, %v437
  %v600 = vpack.c.bf16 %v456, %v447
  %v601 = vpack.c.bf16 %v457, %v448
  %v602 = vpack.c.bf16 %v458, %v449
  %v603 = vpack.c.bf16 %v459, %v450
  %v604 = vpack.c.bf16 %v460, %v451
  %v605 = vpack.c.bf16 %v461, %v452
  %v606 = vpack.c.bf16 %v462, %v453
  %v607 = vpack.c.bf16 %v463, %v454
  %v608 = vpack.c.bf16 %v464, %v455
  %v609 = vpack.c.bf16 %v474, %v465
  %v610 = vpack.c.bf16 %v475, %v466
  %v611 = vpack.c.bf16 %v476, %v467
  %v612 = vpack.c.bf16 %v477, %v468
  %v613 = vpack.c.bf16 %v478, %v469
  %v614 = vpack.c.bf16 %v479, %v470
  %v615 = vpack.c.bf16 %v480, %v471
  %v616 = vpack.c.bf16 %v481, %v472
  %v617 = vpack.c.bf16 %v482, %v473
  %v618 = vpack.c.bf16 %v492, %v483
  %v619 = vpack.c.bf16 %v493, %v484
  %v620 = vpack.c.bf16 %v494, %v485
  %v621 = vpack.c.bf16 %v495, %v486
  %v622 = vpack.c.bf16 %v496, %v487
  %v623 = vpack.c.bf16 %v497, %v488
  %v624 = vpack.c.bf16 %v498, %v489
  %v625 = vpack.c.bf16 %v499, %v490
  %v626 = vpack.c.bf16 %v500, %v491
  %v627 = vpack.c.bf16 %v510, %v501
  %v628 = vpack.c.bf16 %v511, %v502
  %v629 = vpack.c.bf16 %v512, %v503
  %v630 = vpack.c.bf16 %v513, %v504
  %v631 = vpack.c.bf16 %v514, %v505
  %v632 = vpack.c.bf16 %v515, %v506
  %v633 = vpack.c.bf16 %v516, %v507
  %v634 = vpack.c.bf16 %v517, %v508
  %v635 = vpack.c.bf16 %v518, %v509
  %v636 = vpack.c.bf16 %v528, %v519
  %v637 = vpack.c.bf16 %v529, %v520
  %v638 = vpack.c.bf16 %v530, %v521
  %v639 = vpack.c.bf16 %v531, %v522
  %v640 = vpack.c.bf16 %v532, %v523
  %v641 = vpack.c.bf16 %v533, %v524
  %v642 = vpack.c.bf16 %v534, %v525
  %v643 = vpack.c.bf16 %v535, %v526
  %v644 = vpack.c.bf16 %v536, %v527
  %v645 = vpack.c.bf16 %v546, %v537
  %v646 = vpack.c.bf16 %v547, %v538
  %v647 = vpack.c.bf16 %v548, %v539
  %v648 = vpack.c.bf16 %v549, %v540
  %v649 = vpack.c.bf16 %v550, %v541
  %v650 = vpack.c.bf16 %v551, %v542
  %v651 = vpack.c.bf16 %v552, %v543
  %v652 = vpack.c.bf16 %v553, %v544
  %v653 = vpack.c.bf16 %v554, %v545
  %v654 = vld [vmem:[%s0] sm:$0xff]
  %v655 = vld [vmem:[%s0 + $0x8] sm:$0xff]
  %v656 = vld [vmem:[%s0 + $0x10] sm:$0xff]
  %v657 = vld [vmem:[%s0 + $0x18] sm:$0xff]
  %v658 = vld [vmem:[%s0 + $0x20] sm:$0xff]
  %v659 = vld [vmem:[%s0 + $0x28] sm:$0xff]
  %v660 = vld [vmem:[%s0 + $0x30] sm:$0xff]
  %v661 = vld [vmem:[%s0 + $0x38] sm:$0xff]
  %v662 = vld [vmem:[%s0 + $0x40] sm:$0xff]
  %v663 = vld [vmem:[%s0 + $0x48] sm:$0xff]
  %v664 = vld [vmem:[%s0 + $0x50] sm:$0xff]
  %v665 = vld [vmem:[%s0 + $0x58] sm:$0xff]
  %v666 = vld [vmem:[%s0 + $0x60] sm:$0xff]
  %v667 = vld [vmem:[%s0 + $0x68] sm:$0xff]
  %v668 = vld [vmem:[%s0 + $0x70] sm:$0xff]
  %v669 = vld [vmem:[%s0 + $0x78] sm:$0xff]
  %v670 = vld [vmem:[%s0 + $0x80] sm:$0xff]
  %v671 = vld [vmem:[%s0 + $0x88] sm:$0xff]
  %v672 = vld [vmem:[%s0 + $0x90] sm:$0xff]
  %v673 = vld [vmem:[%s0 + $0x98] sm:$0xff]
  %v674 = vld [vmem:[%s0 + $0xa0] sm:$0xff]
  %v675 = vld [vmem:[%s0 + $0xa8] sm:$0xff]
  %v676 = vld [vmem:[%s0 + $0xb0] sm:$0xff]
  %v677 = vld [vmem:[%s0 + $0xb8] sm:$0xff]
  %v678 = vld [vmem:[%s0 + $0xc0] sm:$0xff]
  %v679 = vld [vmem:[%s0 + $0xc8] sm:$0xff]
  %v680 = vld [vmem:[%s0 + $0xd0] sm:$0xff]
  %v681 = vld [vmem:[%s0 + $0xd8] sm:$0xff]
  %v682 = vld [vmem:[%s0 + $0xe0] sm:$0xff]
  %v683 = vld [vmem:[%s0 + $0xe8] sm:$0xff]
  %v684 = vld [vmem:[%s0 + $0xf0] sm:$0xff]
  %v685 = vld [vmem:[%s0 + $0xf8] sm:$0xff]
  %v686 = vld [vmem:[%s0 + $0x100] sm:$0xff]
  %v687 = vld [vmem:[%s0 + $0x108] sm:$0xff]
  %v688 = vld [vmem:[%s0 + $0x110] sm:$0xff]
  %v689 = vld [vmem:[%s0 + $0x118] sm:$0xff]
  %v690 = vld [vmem:[%s0 + $0x120] sm:$0xff]
  %v691 = vld [vmem:[%s0 + $0x128] sm:$0xff]
  %v692 = vld [vmem:[%s0 + $0x130] sm:$0xff]
  %v693 = vld [vmem:[%s0 + $0x138] sm:$0xff]
  %v694 = vld [vmem:[%s0 + $0x140] sm:$0xff]
  %v695 = vld [vmem:[%s0 + $0x148] sm:$0xff]
  %v696 = vld [vmem:[%s0 + $0x150] sm:$0xff]
  %v697 = vld [vmem:[%s0 + $0x158] sm:$0xff]
  %v698 = vld [vmem:[%s0 + $0x160] sm:$0xff]
  %v699 = vld [vmem:[%s0 + $0x168] sm:$0xff]
  %v700 = vld [vmem:[%s0 + $0x170] sm:$0xff]
  %v701 = vld [vmem:[%s0 + $0x178] sm:$0xff]
  %v702 = vld [vmem:[%s0 + $0x180] sm:$0xff]
  %v703 = vld [vmem:[%s0 + $0x188] sm:$0xff]
  %v704 = vld [vmem:[%s0 + $0x190] sm:$0xff]
  %v705 = vld [vmem:[%s0 + $0x198] sm:$0xff]
  %v706 = vld [vmem:[%s0 + $0x1a0] sm:$0xff]
  %v707 = vld [vmem:[%s0 + $0x1a8] sm:$0xff]
  %v708 = vld [vmem:[%s0 + $0x1b0] sm:$0xff]
  %v709 = vld [vmem:[%s0 + $0x1b8] sm:$0xff]
  %v710 = vld [vmem:[%s0 + $0x1c0] sm:$0xff]
  %v711 = vld [vmem:[%s0 + $0x1c8] sm:$0xff]
  %v712 = vld [vmem:[%s0 + $0x1d0] sm:$0xff]
  %v713 = vld [vmem:[%s0 + $0x1d8] sm:$0xff]
  %v714 = vld [vmem:[%s0 + $0x1e0] sm:$0xff]
  %v715 = vld [vmem:[%s0 + $0x1e8] sm:$0xff]
  %v716 = vld [vmem:[%s0 + $0x1f0] sm:$0xff]
  %v717 = vld [vmem:[%s0 + $0x1f8] sm:$0xff]
  %v718 = vld [vmem:[%s0 + $0x200] sm:$0xff]
  %v719 = vld [vmem:[%s0 + $0x208] sm:$0xff]
  %v720 = vld [vmem:[%s0 + $0x210] sm:$0xff]
  %v721 = vld [vmem:[%s0 + $0x218] sm:$0xff]
  %v722 = vld [vmem:[%s0 + $0x220] sm:$0xff]
  %v723 = vld [vmem:[%s0 + $0x228] sm:$0xff]
  %v724 = vld [vmem:[%s0 + $0x230] sm:$0xff]
  %v725 = vld [vmem:[%s0 + $0x238] sm:$0xff]
  %v726 = vld [vmem:[%s0 + $0x240] sm:$0xff]
  %v727 = vld [vmem:[%s0 + $0x248] sm:$0xff]
  %v728 = vld [vmem:[%s0 + $0x250] sm:$0xff]
  %v729 = vld [vmem:[%s0 + $0x258] sm:$0xff]
  %v730 = vld [vmem:[%s0 + $0x260] sm:$0xff]
  %v731 = vld [vmem:[%s0 + $0x268] sm:$0xff]
  %v732 = vld [vmem:[%s0 + $0x270] sm:$0xff]
  %v733 = vld [vmem:[%s0 + $0x278] sm:$0xff]
  %v734 = vld [vmem:[%s0 + $0x280] sm:$0xff]
  %v735 = vld [vmem:[%s0 + $0x288] sm:$0xff]
  %v736 = vld [vmem:[%s0 + $0x290] sm:$0xff]
  %v737 = vld [vmem:[%s0 + $0x298] sm:$0xff]
  %v738 = vld [vmem:[%s0 + $0x2a0] sm:$0xff]
  %v739 = vld [vmem:[%s0 + $0x2a8] sm:$0xff]
  %v740 = vld [vmem:[%s0 + $0x2b0] sm:$0xff]
  %v741 = vld [vmem:[%s0 + $0x2b8] sm:$0xff]
  %v742 = vld [vmem:[%s0 + $0x2c0] sm:$0xff]
  %v743 = vld [vmem:[%s0 + $0x2c8] sm:$0xff]
  %v744 = vld [vmem:[%s0 + $0x2d0] sm:$0xff]
  %v745 = vld [vmem:[%s0 + $0x2d8] sm:$0xff]
  %v746 = vld [vmem:[%s0 + $0x2e0] sm:$0xff]
  %v747 = vld [vmem:[%s0 + $0x2e8] sm:$0xff]
  %v748 = vld [vmem:[%s0 + $0x2f0] sm:$0xff]
  %v749 = vld [vmem:[%s0 + $0x2f8] sm:$0xff]
  %v750 = vld [vmem:[%s0 + $0x300] sm:$0xff]
  %v751 = vld [vmem:[%s0 + $0x308] sm:$0xff]
  %v752 = vld [vmem:[%s0 + $0x310] sm:$0xff]
  %v753 = vld [vmem:[%s0 + $0x318] sm:$0xff]
  %v754 = vld [vmem:[%s0 + $0x320] sm:$0xff]
  %v755 = vld [vmem:[%s0 + $0x328] sm:$0xff]
  %v756 = vld [vmem:[%s0 + $0x330] sm:$0xff]
  %v757 = vld [vmem:[%s0 + $0x338] sm:$0xff]
  %v758 = vld [vmem:[%s0 + $0x340] sm:$0xff]
  %v759 = vld [vmem:[%s0 + $0x348] sm:$0xff]
  %v760 = vld [vmem:[%s0 + $0x350] sm:$0xff]
  %v761 = vld [vmem:[%s0 + $0x358] sm:$0xff]
  %v762 = vld [vmem:[%s0 + $0x360] sm:$0xff]
  %v763 = vld [vmem:[%s0 + $0x368] sm:$0xff]
  %v764 = vld [vmem:[%s0 + $0x370] sm:$0xff]
  %v765 = vld [vmem:[%s0 + $0x378] sm:$0xff]
  %v766 = vld [vmem:[%s0 + $0x380] sm:$0xff]
  %v767 = vld [vmem:[%s0 + $0x388] sm:$0xff]
  %v768 = vld [vmem:[%s0 + $0x390] sm:$0xff]
  %v769 = vld [vmem:[%s0 + $0x398] sm:$0xff]
  %v770 = vld [vmem:[%s0 + $0x3a0] sm:$0xff]
  %v771 = vld [vmem:[%s0 + $0x3a8] sm:$0xff]
  %v772 = vld [vmem:[%s0 + $0x3b0] sm:$0xff]
  %v773 = vld [vmem:[%s0 + $0x3b8] sm:$0xff]
  %v774 = vld [vmem:[%s0 + $0x3c0] sm:$0xff]
  %v775 = vld [vmem:[%s0 + $0x3c8] sm:$0xff]
  %v776 = vld [vmem:[%s0 + $0x3d0] sm:$0xff]
  %v777 = vld [vmem:[%s0 + $0x3d8] sm:$0xff]
  %v778 = vld [vmem:[%s0 + $0x3e0] sm:$0xff]
  %v779 = vld [vmem:[%s0 + $0x3e8] sm:$0xff]
  %v780 = vld [vmem:[%s0 + $0x3f0] sm:$0xff]
  %v781 = vld [vmem:[%s0 + $0x3f8] sm:$0xff]
  %v782 = vld [vmem:[%s0 + $0x400] sm:$0xff]
  %v783 = vld [vmem:[%s0 + $0x408] sm:$0xff]
  %v784 = vld [vmem:[%s0 + $0x410] sm:$0xff]
  %v785 = vld [vmem:[%s0 + $0x418] sm:$0xff]
  %v786 = vld [vmem:[%s0 + $0x420] sm:$0xff]
  %v787 = vld [vmem:[%s0 + $0x428] sm:$0xff]
  %v788 = vld [vmem:[%s0 + $0x430] sm:$0xff]
  %v789 = vld [vmem:[%s0 + $0x438] sm:$0xff]
  %v790 = vld [vmem:[%s0 + $0x440] sm:$0xff]
  %v791 = vld [vmem:[%s0 + $0x448] sm:$0xff]
  %v792 = vld [vmem:[%s0 + $0x450] sm:$0xff]
  %v793 = vld [vmem:[%s0 + $0x458] sm:$0xff]
  %v794 = vld [vmem:[%s0 + $0x460] sm:$0xff]
  %v795 = vld [vmem:[%s0 + $0x468] sm:$0xff]
  %v796 = vld [vmem:[%s0 + $0x470] sm:$0xff]
  %v797 = vld [vmem:[%s0 + $0x478] sm:$0xff]
  %v798 = vld [vmem:[%s0 + $0x480] sm:$0xff]
  %v799 = vld [vmem:[%s0 + $0x488] sm:$0xff]
  %v800 = vld [vmem:[%s0 + $0x490] sm:$0xff]
  %v801 = vld [vmem:[%s0 + $0x498] sm:$0xff]
  %v802 = vld [vmem:[%s0 + $0x4a0] sm:$0xff]
  %v803 = vld [vmem:[%s0 + $0x4a8] sm:$0xff]
  %v804 = vld [vmem:[%s0 + $0x4b0] sm:$0xff]
  %v805 = vld [vmem:[%s0 + $0x4b8] sm:$0xff]
  %v806 = vld [vmem:[%s0 + $0x4c0] sm:$0xff]
  %v807 = vld [vmem:[%s0 + $0x4c8] sm:$0xff]
  %v808 = vld [vmem:[%s0 + $0x4d0] sm:$0xff]
  %v809 = vld [vmem:[%s0 + $0x4d8] sm:$0xff]
  %v810 = vld [vmem:[%s0 + $0x4e0] sm:$0xff]
  %v811 = vld [vmem:[%s0 + $0x4e8] sm:$0xff]
  %v812 = vld [vmem:[%s0 + $0x4f0] sm:$0xff]
  %v813 = vld [vmem:[%s0 + $0x4f8] sm:$0xff]
  %v814 = vld [vmem:[%s0 + $0x500] sm:$0xff]
  %v815 = vld [vmem:[%s0 + $0x508] sm:$0xff]
  %v816 = vld [vmem:[%s0 + $0x510] sm:$0xff]
  %v817 = vld [vmem:[%s0 + $0x518] sm:$0xff]
  %v818 = vld [vmem:[%s0 + $0x520] sm:$0xff]
  %v819 = vld [vmem:[%s0 + $0x528] sm:$0xff]
  %v820 = vld [vmem:[%s0 + $0x530] sm:$0xff]
  %v821 = vld [vmem:[%s0 + $0x538] sm:$0xff]
  %v822 = vld [vmem:[%s0 + $0x540] sm:$0xff]
  %v823 = vld [vmem:[%s0 + $0x548] sm:$0xff]
  %v824 = vld [vmem:[%s0 + $0x550] sm:$0xff]
  %v825 = vld [vmem:[%s0 + $0x558] sm:$0xff]
  %v826 = vld [vmem:[%s0 + $0x560] sm:$0xff]
  %v827 = vld [vmem:[%s0 + $0x568] sm:$0xff]
  %v828 = vld [vmem:[%s0 + $0x570] sm:$0xff]
  %v829 = vld [vmem:[%s0 + $0x578] sm:$0xff]
  %v830 = vld [vmem:[%s0 + $0x580] sm:$0xff]
  %v831 = vld [vmem:[%s0 + $0x588] sm:$0xff]
  %v832 = vld [vmem:[%s0 + $0x590] sm:$0xff]
  %v833 = vld [vmem:[%s0 + $0x598] sm:$0xff]
  %v834 = vld [vmem:[%s0 + $0x5a0] sm:$0xff]
  %v835 = vld [vmem:[%s0 + $0x5a8] sm:$0xff]
  %v836 = vld [vmem:[%s0 + $0x5b0] sm:$0xff]
  %v837 = vld [vmem:[%s0 + $0x5b8] sm:$0xff]
  %v838 = vld [vmem:[%s0 + $0x5c0] sm:$0xff]
  %v839 = vld [vmem:[%s0 + $0x5c8] sm:$0xff]
  %v840 = vld [vmem:[%s0 + $0x5d0] sm:$0xff]
  %v841 = vld [vmem:[%s0 + $0x5d8] sm:$0xff]
  %v842 = vld [vmem:[%s0 + $0x5e0] sm:$0xff]
  %v843 = vld [vmem:[%s0 + $0x5e8] sm:$0xff]
  %v844 = vld [vmem:[%s0 + $0x5f0] sm:$0xff]
  %v845 = vld [vmem:[%s0 + $0x5f8] sm:$0xff]
  %v846 = vld [vmem:[%s0 + $0x600] sm:$0xff]
  %v847 = vld [vmem:[%s0 + $0x608] sm:$0xff]
  %v848 = vld [vmem:[%s0 + $0x610] sm:$0xff]
  %v849 = vld [vmem:[%s0 + $0x618] sm:$0xff]
  %v850 = vld [vmem:[%s0 + $0x620] sm:$0xff]
  %v851 = vld [vmem:[%s0 + $0x628] sm:$0xff]
  %v852 = vld [vmem:[%s0 + $0x630] sm:$0xff]
  %v853 = vld [vmem:[%s0 + $0x638] sm:$0xff]
  %v854 = vld [vmem:[%s0 + $0x640] sm:$0xff]
  %v855 = vld [vmem:[%s0 + $0x648] sm:$0xff]
  %v856 = vld [vmem:[%s0 + $0x650] sm:$0xff]
  %v857 = vld [vmem:[%s0 + $0x658] sm:$0xff]
  %v858 = vld [vmem:[%s0 + $0x660] sm:$0xff]
  %v859 = vld [vmem:[%s0 + $0x668] sm:$0xff]
  %v860 = vld [vmem:[%s0 + $0x670] sm:$0xff]
  %v861 = vld [vmem:[%s0 + $0x678] sm:$0xff]
  %v862 = vld [vmem:[%s0 + $0x680] sm:$0xff]
  %v863 = vld [vmem:[%s0 + $0x688] sm:$0xff]
  %v864 = vld [vmem:[%s0 + $0x690] sm:$0xff]
  %v865 = vld [vmem:[%s0 + $0x698] sm:$0xff]
  %v866 = vld [vmem:[%s0 + $0x6a0] sm:$0xff]
  %v867 = vld [vmem:[%s0 + $0x6a8] sm:$0xff]
  %v868 = vld [vmem:[%s0 + $0x6b0] sm:$0xff]
  %v869 = vld [vmem:[%s0 + $0x6b8] sm:$0xff]
  %v870 = vld [vmem:[%s0 + $0x6c0] sm:$0xff]
  %v871 = vld [vmem:[%s0 + $0x6c8] sm:$0xff]
  %v872 = vld [vmem:[%s0 + $0x6d0] sm:$0xff]
  %v873 = vld [vmem:[%s0 + $0x6d8] sm:$0xff]
  %v874 = vld [vmem:[%s0 + $0x6e0] sm:$0xff]
  %v875 = vld [vmem:[%s0 + $0x6e8] sm:$0xff]
  %v876 = vld [vmem:[%s0 + $0x6f0] sm:$0xff]
  %v877 = vld [vmem:[%s0 + $0x6f8] sm:$0xff]
  %v878 = vld [vmem:[%s0 + $0x700] sm:$0xff]
  %v879 = vld [vmem:[%s0 + $0x708] sm:$0xff]
  %v880 = vld [vmem:[%s0 + $0x710] sm:$0xff]
  %v881 = vld [vmem:[%s0 + $0x718] sm:$0xff]
  %v882 = vld [vmem:[%s0 + $0x720] sm:$0xff]
  %v883 = vld [vmem:[%s0 + $0x728] sm:$0xff]
  %v884 = vld [vmem:[%s0 + $0x730] sm:$0xff]
  %v885 = vld [vmem:[%s0 + $0x738] sm:$0xff]
  %v886 = vld [vmem:[%s0 + $0x740] sm:$0xff]
  %v887 = vld [vmem:[%s0 + $0x748] sm:$0xff]
  %v888 = vld [vmem:[%s0 + $0x750] sm:$0xff]
  %v889 = vld [vmem:[%s0 + $0x758] sm:$0xff]
  %v890 = vld [vmem:[%s0 + $0x760] sm:$0xff]
  %v891 = vld [vmem:[%s0 + $0x768] sm:$0xff]
  %v892 = vld [vmem:[%s0 + $0x770] sm:$0xff]
  %v893 = vld [vmem:[%s0 + $0x778] sm:$0xff]
  %v894 = vld [vmem:[%s0 + $0x780] sm:$0xff]
  %v895 = vld [vmem:[%s0 + $0x788] sm:$0xff]
  %v896 = vld [vmem:[%s0 + $0x790] sm:$0xff]
  %v897 = vld [vmem:[%s0 + $0x798] sm:$0xff]
  %v898 = vld [vmem:[%s0 + $0x7a0] sm:$0xff]
  %v899 = vld [vmem:[%s0 + $0x7a8] sm:$0xff]
  %v900 = vld [vmem:[%s0 + $0x7b0] sm:$0xff]
  %v901 = vld [vmem:[%s0 + $0x7b8] sm:$0xff]
  %v902 = vld [vmem:[%s0 + $0x7c0] sm:$0xff]
  %v903 = vld [vmem:[%s0 + $0x7c8] sm:$0xff]
  %v904 = vld [vmem:[%s0 + $0x7d0] sm:$0xff]
  %v905 = vld [vmem:[%s0 + $0x7d8] sm:$0xff]
  %v906 = vld [vmem:[%s0 + $0x7e0] sm:$0xff]
  %v907 = vld [vmem:[%s0 + $0x7e8] sm:$0xff]
  %v908 = vld [vmem:[%s0 + $0x7f0] sm:$0xff]
  %v909 = vld [vmem:[%s0 + $0x7f8] sm:$0xff]
  %v910 = vld [vmem:[%s0 + $0x800] sm:$0xff]
  %v911 = vld [vmem:[%s0 + $0x808] sm:$0xff]
  %v912 = vld [vmem:[%s0 + $0x810] sm:$0xff]
  %v913 = vld [vmem:[%s0 + $0x818] sm:$0xff]
  %v914 = vld [vmem:[%s0 + $0x820] sm:$0xff]
  %v915 = vld [vmem:[%s0 + $0x828] sm:$0xff]
  %v916 = vld [vmem:[%s0 + $0x830] sm:$0xff]
  %v917 = vld [vmem:[%s0 + $0x838] sm:$0xff]
  %v918 = vpack.c.bf16 %v656, %v654
  %v919 = vpack.c.bf16 %v657, %v655
  %v920 = vpack.c.bf16 %v660, %v658
  %v921 = vpack.c.bf16 %v661, %v659
  %v922 = vpack.c.bf16 %v664, %v662
  %v923 = vpack.c.bf16 %v665, %v663
  %v924 = vpack.c.bf16 %v668, %v666
  %v925 = vpack.c.bf16 %v669, %v667
  %v926 = vpack.c.bf16 %v672, %v670
  %v927 = vpack.c.bf16 %v673, %v671
  %v928 = vpack.c.bf16 %v676, %v674
  %v929 = vpack.c.bf16 %v677, %v675
  %v930 = vpack.c.bf16 %v680, %v678
  %v931 = vpack.c.bf16 %v681, %v679
  %v932 = vpack.c.bf16 %v684, %v682
  %v933 = vpack.c.bf16 %v685, %v683
  %v934 = vpack.c.bf16 %v688, %v686
  %v935 = vpack.c.bf16 %v689, %v687
  %v936 = vpack.c.bf16 %v692, %v690
  %v937 = vpack.c.bf16 %v693, %v691
  %v938 = vpack.c.bf16 %v696, %v694
  %v939 = vpack.c.bf16 %v697, %v695
  %v940 = vpack.c.bf16 %v700, %v698
  %v941 = vpack.c.bf16 %v701, %v699
  %v942 = vpack.c.bf16 %v704, %v702
  %v943 = vpack.c.bf16 %v705, %v703
  %v944 = vpack.c.bf16 %v708, %v706
  %v945 = vpack.c.bf16 %v709, %v707
  %v946 = vpack.c.bf16 %v712, %v710
  %v947 = vpack.c.bf16 %v713, %v711
  %v948 = vpack.c.bf16 %v716, %v714
  %v949 = vpack.c.bf16 %v717, %v715
  %v950 = vpack.c.bf16 %v720, %v718
  %v951 = vpack.c.bf16 %v721, %v719
  %v952 = vpack.c.bf16 %v724, %v722
  %v953 = vpack.c.bf16 %v725, %v723
  %v954 = vpack.c.bf16 %v728, %v726
  %v955 = vpack.c.bf16 %v729, %v727
  %v956 = vpack.c.bf16 %v732, %v730
  %v957 = vpack.c.bf16 %v733, %v731
  %v958 = vpack.c.bf16 %v736, %v734
  %v959 = vpack.c.bf16 %v737, %v735
  %v960 = vpack.c.bf16 %v740, %v738
  %v961 = vpack.c.bf16 %v741, %v739
  %v962 = vpack.c.bf16 %v744, %v742
  %v963 = vpack.c.bf16 %v745, %v743
  %v964 = vpack.c.bf16 %v748, %v746
  %v965 = vpack.c.bf16 %v749, %v747
  %v966 = vpack.c.bf16 %v752, %v750
  %v967 = vpack.c.bf16 %v753, %v751
  %v968 = vpack.c.bf16 %v756, %v754
  %v969 = vpack.c.bf16 %v757, %v755
  %v970 = vpack.c.bf16 %v760, %v758
  %v971 = vpack.c.bf16 %v761, %v759
  %v972 = vpack.c.bf16 %v764, %v762
  %v973 = vpack.c.bf16 %v765, %v763
  %v974 = vpack.c.bf16 %v768, %v766
  %v975 = vpack.c.bf16 %v769, %v767
  %v976 = vpack.c.bf16 %v772, %v770
  %v977 = vpack.c.bf16 %v773, %v771
  %v978 = vpack.c.bf16 %v776, %v774
  %v979 = vpack.c.bf16 %v777, %v775
  %v980 = vpack.c.bf16 %v780, %v778
  %v981 = vpack.c.bf16 %v781, %v779
  %v982 = vpack.c.bf16 %v784, %v782
  %v983 = vpack.c.bf16 %v785, %v783
  %v984 = vpack.c.bf16 %v788, %v786
  %v985 = vpack.c.bf16 %v789, %v787
  %v986 = vpack.c.bf16 %v792, %v790
  %v987 = vpack.c.bf16 %v793, %v791
  %v988 = vpack.c.bf16 %v796, %v794
  %v989 = vpack.c.bf16 %v797, %v795
  %v990 = vpack.c.bf16 %v800, %v798
  %v991 = vpack.c.bf16 %v801, %v799
  %v992 = vpack.c.bf16 %v804, %v802
  %v993 = vpack.c.bf16 %v805, %v803
  %v994 = vpack.c.bf16 %v808, %v806
  %v995 = vpack.c.bf16 %v809, %v807
  %v996 = vpack.c.bf16 %v812, %v810
  %v997 = vpack.c.bf16 %v813, %v811
  %v998 = vpack.c.bf16 %v816, %v814
  %v999 = vpack.c.bf16 %v817, %v815
  %v1000 = vpack.c.bf16 %v820, %v818
  %v1001 = vpack.c.bf16 %v821, %v819
  %v1002 = vpack.c.bf16 %v824, %v822
  %v1003 = vpack.c.bf16 %v825, %v823
  %v1004 = vpack.c.bf16 %v828, %v826
  %v1005 = vpack.c.bf16 %v829, %v827
  %v1006 = vpack.c.bf16 %v832, %v830
  %v1007 = vpack.c.bf16 %v833, %v831
  %v1008 = vpack.c.bf16 %v836, %v834
  %v1009 = vpack.c.bf16 %v837, %v835
  %v1010 = vpack.c.bf16 %v840, %v838
  %v1011 = vpack.c.bf16 %v841, %v839
  %v1012 = vpack.c.bf16 %v844, %v842
  %v1013 = vpack.c.bf16 %v845, %v843
  %v1014 = vpack.c.bf16 %v848, %v846
  %v1015 = vpack.c.bf16 %v849, %v847
  %v1016 = vpack.c.bf16 %v852, %v850
  %v1017 = vpack.c.bf16 %v853, %v851
  %v1018 = vpack.c.bf16 %v856, %v854
  %v1019 = vpack.c.bf16 %v857, %v855
  %v1020 = vpack.c.bf16 %v860, %v858
  %v1021 = vpack.c.bf16 %v861, %v859
  %v1022 = vpack.c.bf16 %v864, %v862
  %v1023 = vpack.c.bf16 %v865, %v863
  %v1024 = vpack.c.bf16 %v868, %v866
  %v1025 = vpack.c.bf16 %v869, %v867
  %v1026 = vpack.c.bf16 %v872, %v870
  %v1027 = vpack.c.bf16 %v873, %v871
  %v1028 = vpack.c.bf16 %v876, %v874
  %v1029 = vpack.c.bf16 %v877, %v875
  %v1030 = vpack.c.bf16 %v880, %v878
  %v1031 = vpack.c.bf16 %v881, %v879
  %v1032 = vpack.c.bf16 %v884, %v882
  %v1033 = vpack.c.bf16 %v885, %v883
  %v1034 = vpack.c.bf16 %v888, %v886
  %v1035 = vpack.c.bf16 %v889, %v887
  %v1036 = vpack.c.bf16 %v892, %v890
  %v1037 = vpack.c.bf16 %v893, %v891
  %v1038 = vpack.c.bf16 %v896, %v894
  %v1039 = vpack.c.bf16 %v897, %v895
  %v1040 = vpack.c.bf16 %v900, %v898
  %v1041 = vpack.c.bf16 %v901, %v899
  %v1042 = vpack.c.bf16 %v904, %v902
  %v1043 = vpack.c.bf16 %v905, %v903
  %v1044 = vpack.c.bf16 %v908, %v906
  %v1045 = vpack.c.bf16 %v909, %v907
  %v1046 = vpack.c.bf16 %v912, %v910
  %v1047 = vpack.c.bf16 %v913, %v911
  %v1048 = vpack.c.bf16 %v916, %v914
  %v1049 = vpack.c.bf16 %v917, %v915
  %vm1050 = vcmask 261120
  %v1052 = vsel %vm1050, %v563, 0
  %v1055 = vsel %vm1050, %v572, 0
  %v1058 = vsel %vm1050, %v581, 0
  %v1061 = vsel %vm1050, %v590, 0
  %v1064 = vsel %vm1050, %v599, 0
  %v1067 = vsel %vm1050, %v608, 0
  %v1070 = vsel %vm1050, %v617, 0
  %v1073 = vsel %vm1050, %v626, 0
  %v1076 = vsel %vm1050, %v635, 0
  %v1079 = vsel %vm1050, %v644, 0
  %v1082 = vsel %vm1050, %v653, 0
  %1084 = vmatpush.bf16.msra.mxu0 %v932
  %1085 = vmatpush.bf16.msra.mxu0 %v930
  %1086 = vmatpush.bf16.msra.mxu0 %v928
  %1087 = vmatpush.bf16.msra.mxu0 %v926
  %1088 = vmatpush.bf16.msra.mxu0 %v924
  %1089 = vmatpush.bf16.msra.mxu0 %v922
  %1090 = vmatpush.bf16.msra.mxu0 %v920
  %1091 = vmatpush.bf16.msra.mxu0 %v918
  %1092 = vmatmul.bf16.gmra.mxu0 %v555
  %v1093 = vpop.f32.mrf.mxu0
  %v1094 = vadd.f32 0.0, %v1093
  %v1095 = vpop.f32.mrf.mxu0
  %v1096 = vadd.f32 0.0, %v1095
  %1097 = vmatmul.bf16.gmra.mxu0 %v564
  %v1098 = vpop.f32.mrf.mxu0
  %v1099 = vadd.f32 0.0, %v1098
  %v1100 = vpop.f32.mrf.mxu0
  %v1101 = vadd.f32 0.0, %v1100
  %1102 = vmatmul.bf16.gmra.mxu0 %v573
  %v1103 = vpop.f32.mrf.mxu0
  %v1104 = vadd.f32 0.0, %v1103
  %v1105 = vpop.f32.mrf.mxu0
  %v1106 = vadd.f32 0.0, %v1105
  %1107 = vmatmul.bf16.gmra.mxu0 %v582
  %v1108 = vpop.f32.mrf.mxu0
  %v1109 = vadd.f32 0.0, %v1108
  %v1110 = vpop.f32.mrf.mxu0
  %v1111 = vadd.f32 0.0, %v1110
  %1112 = vmatmul.bf16.gmra.mxu0 %v591
  %v1113 = vpop.f32.mrf.mxu0
  %v1114 = vadd.f32 0.0, %v1113
  %v1115 = vpop.f32.mrf.mxu0
  %v1116 = vadd.f32 0.0, %v1115
  %1117 = vmatmul.bf16.gmra.mxu0 %v600
  %v1118 = vpop.f32.mrf.mxu0
  %v1119 = vadd.f32 0.0, %v1118
  %v1120 = vpop.f32.mrf.mxu0
  %v1121 = vadd.f32 0.0, %v1120
  %1122 = vmatmul.bf16.gmra.mxu0 %v609
  %v1123 = vpop.f32.mrf.mxu0
  %v1124 = vadd.f32 0.0, %v1123
  %v1125 = vpop.f32.mrf.mxu0
  %v1126 = vadd.f32 0.0, %v1125
  %1127 = vmatmul.bf16.gmra.mxu0 %v618
  %v1128 = vpop.f32.mrf.mxu0
  %v1129 = vadd.f32 0.0, %v1128
  %v1130 = vpop.f32.mrf.mxu0
  %v1131 = vadd.f32 0.0, %v1130
  %1132 = vmatmul.bf16.gmra.mxu0 %v627
  %v1133 = vpop.f32.mrf.mxu0
  %v1134 = vadd.f32 0.0, %v1133
  %v1135 = vpop.f32.mrf.mxu0
  %v1136 = vadd.f32 0.0, %v1135
  %1137 = vmatmul.bf16.gmra.mxu0 %v636
  %v1138 = vpop.f32.mrf.mxu0
  %v1139 = vadd.f32 0.0, %v1138
  %v1140 = vpop.f32.mrf.mxu0
  %v1141 = vadd.f32 0.0, %v1140
  %1142 = vmatmul.bf16.gmra.mxu0 %v645
  %v1143 = vpop.f32.mrf.mxu0
  %v1144 = vadd.f32 0.0, %v1143
  %v1145 = vpop.f32.mrf.mxu0
  %v1146 = vadd.f32 0.0, %v1145
  %1147 = vdwg.mxu0
  %1148 = vmatpush.bf16.msra.mxu0 %v948
  %1149 = vmatpush.bf16.msra.mxu0 %v946
  %1150 = vmatpush.bf16.msra.mxu0 %v944
  %1151 = vmatpush.bf16.msra.mxu0 %v942
  %1152 = vmatpush.bf16.msra.mxu0 %v940
  %1153 = vmatpush.bf16.msra.mxu0 %v938
  %1154 = vmatpush.bf16.msra.mxu0 %v936
  %1155 = vmatpush.bf16.msra.mxu0 %v934
  %1156 = vmatmul.bf16.gmra.mxu0 %v556
  %v1157 = vpop.f32.mrf.mxu0
  %v1158 = vadd.f32 %v1094, %v1157
  %v1159 = vpop.f32.mrf.mxu0
  %v1160 = vadd.f32 %v1096, %v1159
  %1161 = vmatmul.bf16.gmra.mxu0 %v565
  %v1162 = vpop.f32.mrf.mxu0
  %v1163 = vadd.f32 %v1099, %v1162
  %v1164 = vpop.f32.mrf.mxu0
  %v1165 = vadd.f32 %v1101, %v1164
  %1166 = vmatmul.bf16.gmra.mxu0 %v574
  %v1167 = vpop.f32.mrf.mxu0
  %v1168 = vadd.f32 %v1104, %v1167
  %v1169 = vpop.f32.mrf.mxu0
  %v1170 = vadd.f32 %v1106, %v1169
  %1171 = vmatmul.bf16.gmra.mxu0 %v583
  %v1172 = vpop.f32.mrf.mxu0
  %v1173 = vadd.f32 %v1109, %v1172
  %v1174 = vpop.f32.mrf.mxu0
  %v1175 = vadd.f32 %v1111, %v1174
  %1176 = vmatmul.bf16.gmra.mxu0 %v592
  %v1177 = vpop.f32.mrf.mxu0
  %v1178 = vadd.f32 %v1114, %v1177
  %v1179 = vpop.f32.mrf.mxu0
  %v1180 = vadd.f32 %v1116, %v1179
  %1181 = vmatmul.bf16.gmra.mxu0 %v601
  %v1182 = vpop.f32.mrf.mxu0
  %v1183 = vadd.f32 %v1119, %v1182
  %v1184 = vpop.f32.mrf.mxu0
  %v1185 = vadd.f32 %v1121, %v1184
  %1186 = vmatmul.bf16.gmra.mxu0 %v610
  %v1187 = vpop.f32.mrf.mxu0
  %v1188 = vadd.f32 %v1124, %v1187
  %v1189 = vpop.f32.mrf.mxu0
  %v1190 = vadd.f32 %v1126, %v1189
  %1191 = vmatmul.bf16.gmra.mxu0 %v619
  %v1192 = vpop.f32.mrf.mxu0
  %v1193 = vadd.f32 %v1129, %v1192
  %v1194 = vpop.f32.mrf.mxu0
  %v1195 = vadd.f32 %v1131, %v1194
  %1196 = vmatmul.bf16.gmra.mxu0 %v628
  %v1197 = vpop.f32.mrf.mxu0
  %v1198 = vadd.f32 %v1134, %v1197
  %v1199 = vpop.f32.mrf.mxu0
  %v1200 = vadd.f32 %v1136, %v1199
  %1201 = vmatmul.bf16.gmra.mxu0 %v637
  %v1202 = vpop.f32.mrf.mxu0
  %v1203 = vadd.f32 %v1139, %v1202
  %v1204 = vpop.f32.mrf.mxu0
  %v1205 = vadd.f32 %v1141, %v1204
  %1206 = vmatmul.bf16.gmra.mxu0 %v646
  %v1207 = vpop.f32.mrf.mxu0
  %v1208 = vadd.f32 %v1144, %v1207
  %v1209 = vpop.f32.mrf.mxu0
  %v1210 = vadd.f32 %v1146, %v1209
  %1211 = vdwg.mxu0
  %1212 = vmatpush.bf16.msra.mxu0 %v964
  %1213 = vmatpush.bf16.msra.mxu0 %v962
  %1214 = vmatpush.bf16.msra.mxu0 %v960
  %1215 = vmatpush.bf16.msra.mxu0 %v958
  %1216 = vmatpush.bf16.msra.mxu0 %v956
  %1217 = vmatpush.bf16.msra.mxu0 %v954
  %1218 = vmatpush.bf16.msra.mxu0 %v952
  %1219 = vmatpush.bf16.msra.mxu0 %v950
  %1220 = vmatmul.bf16.gmra.mxu0 %v557
  %v1221 = vpop.f32.mrf.mxu0
  %v1222 = vadd.f32 %v1158, %v1221
  %v1223 = vpop.f32.mrf.mxu0
  %v1224 = vadd.f32 %v1160, %v1223
  %1225 = vmatmul.bf16.gmra.mxu0 %v566
  %v1226 = vpop.f32.mrf.mxu0
  %v1227 = vadd.f32 %v1163, %v1226
  %v1228 = vpop.f32.mrf.mxu0
  %v1229 = vadd.f32 %v1165, %v1228
  %1230 = vmatmul.bf16.gmra.mxu0 %v575
  %v1231 = vpop.f32.mrf.mxu0
  %v1232 = vadd.f32 %v1168, %v1231
  %v1233 = vpop.f32.mrf.mxu0
  %v1234 = vadd.f32 %v1170, %v1233
  %1235 = vmatmul.bf16.gmra.mxu0 %v584
  %v1236 = vpop.f32.mrf.mxu0
  %v1237 = vadd.f32 %v1173, %v1236
  %v1238 = vpop.f32.mrf.mxu0
  %v1239 = vadd.f32 %v1175, %v1238
  %1240 = vmatmul.bf16.gmra.mxu0 %v593
  %v1241 = vpop.f32.mrf.mxu0
  %v1242 = vadd.f32 %v1178, %v1241
  %v1243 = vpop.f32.mrf.mxu0
  %v1244 = vadd.f32 %v1180, %v1243
  %1245 = vmatmul.bf16.gmra.mxu0 %v602
  %v1246 = vpop.f32.mrf.mxu0
  %v1247 = vadd.f32 %v1183, %v1246
  %v1248 = vpop.f32.mrf.mxu0
  %v1249 = vadd.f32 %v1185, %v1248
  %1250 = vmatmul.bf16.gmra.mxu0 %v611
  %v1251 = vpop.f32.mrf.mxu0
  %v1252 = vadd.f32 %v1188, %v1251
  %v1253 = vpop.f32.mrf.mxu0
  %v1254 = vadd.f32 %v1190, %v1253
  %1255 = vmatmul.bf16.gmra.mxu0 %v620
  %v1256 = vpop.f32.mrf.mxu0
  %v1257 = vadd.f32 %v1193, %v1256
  %v1258 = vpop.f32.mrf.mxu0
  %v1259 = vadd.f32 %v1195, %v1258
  %1260 = vmatmul.bf16.gmra.mxu0 %v629
  %v1261 = vpop.f32.mrf.mxu0
  %v1262 = vadd.f32 %v1198, %v1261
  %v1263 = vpop.f32.mrf.mxu0
  %v1264 = vadd.f32 %v1200, %v1263
  %1265 = vmatmul.bf16.gmra.mxu0 %v638
  %v1266 = vpop.f32.mrf.mxu0
  %v1267 = vadd.f32 %v1203, %v1266
  %v1268 = vpop.f32.mrf.mxu0
  %v1269 = vadd.f32 %v1205, %v1268
  %1270 = vmatmul.bf16.gmra.mxu0 %v647
  %v1271 = vpop.f32.mrf.mxu0
  %v1272 = vadd.f32 %v1208, %v1271
  %v1273 = vpop.f32.mrf.mxu0
  %v1274 = vadd.f32 %v1210, %v1273
  %1275 = vdwg.mxu0
  %1276 = vmatpush.bf16.msra.mxu0 %v980
  %1277 = vmatpush.bf16.msra.mxu0 %v978
  %1278 = vmatpush.bf16.msra.mxu0 %v976
  %1279 = vmatpush.bf16.msra.mxu0 %v974
  %1280 = vmatpush.bf16.msra.mxu0 %v972
  %1281 = vmatpush.bf16.msra.mxu0 %v970
  %1282 = vmatpush.bf16.msra.mxu0 %v968
  %1283 = vmatpush.bf16.msra.mxu0 %v966
  %1284 = vmatmul.bf16.gmra.mxu0 %v558
  %v1285 = vpop.f32.mrf.mxu0
  %v1286 = vadd.f32 %v1222, %v1285
  %v1287 = vpop.f32.mrf.mxu0
  %v1288 = vadd.f32 %v1224, %v1287
  %1289 = vmatmul.bf16.gmra.mxu0 %v567
  %v1290 = vpop.f32.mrf.mxu0
  %v1291 = vadd.f32 %v1227, %v1290
  %v1292 = vpop.f32.mrf.mxu0
  %v1293 = vadd.f32 %v1229, %v1292
  %1294 = vmatmul.bf16.gmra.mxu0 %v576
  %v1295 = vpop.f32.mrf.mxu0
  %v1296 = vadd.f32 %v1232, %v1295
  %v1297 = vpop.f32.mrf.mxu0
  %v1298 = vadd.f32 %v1234, %v1297
  %1299 = vmatmul.bf16.gmra.mxu0 %v585
  %v1300 = vpop.f32.mrf.mxu0
  %v1301 = vadd.f32 %v1237, %v1300
  %v1302 = vpop.f32.mrf.mxu0
  %v1303 = vadd.f32 %v1239, %v1302
  %1304 = vmatmul.bf16.gmra.mxu0 %v594
  %v1305 = vpop.f32.mrf.mxu0
  %v1306 = vadd.f32 %v1242, %v1305
  %v1307 = vpop.f32.mrf.mxu0
  %v1308 = vadd.f32 %v1244, %v1307
  %1309 = vmatmul.bf16.gmra.mxu0 %v603
  %v1310 = vpop.f32.mrf.mxu0
  %v1311 = vadd.f32 %v1247, %v1310
  %v1312 = vpop.f32.mrf.mxu0
  %v1313 = vadd.f32 %v1249, %v1312
  %1314 = vmatmul.bf16.gmra.mxu0 %v612
  %v1315 = vpop.f32.mrf.mxu0
  %v1316 = vadd.f32 %v1252, %v1315
  %v1317 = vpop.f32.mrf.mxu0
  %v1318 = vadd.f32 %v1254, %v1317
  %1319 = vmatmul.bf16.gmra.mxu0 %v621
  %v1320 = vpop.f32.mrf.mxu0
  %v1321 = vadd.f32 %v1257, %v1320
  %v1322 = vpop.f32.mrf.mxu0
  %v1323 = vadd.f32 %v1259, %v1322
  %1324 = vmatmul.bf16.gmra.mxu0 %v630
  %v1325 = vpop.f32.mrf.mxu0
  %v1326 = vadd.f32 %v1262, %v1325
  %v1327 = vpop.f32.mrf.mxu0
  %v1328 = vadd.f32 %v1264, %v1327
  %1329 = vmatmul.bf16.gmra.mxu0 %v639
  %v1330 = vpop.f32.mrf.mxu0
  %v1331 = vadd.f32 %v1267, %v1330
  %v1332 = vpop.f32.mrf.mxu0
  %v1333 = vadd.f32 %v1269, %v1332
  %1334 = vmatmul.bf16.gmra.mxu0 %v648
  %v1335 = vpop.f32.mrf.mxu0
  %v1336 = vadd.f32 %v1272, %v1335
  %v1337 = vpop.f32.mrf.mxu0
  %v1338 = vadd.f32 %v1274, %v1337
  %1339 = vdwg.mxu0
  %1340 = vmatpush.bf16.msra.mxu0 %v996
  %1341 = vmatpush.bf16.msra.mxu0 %v994
  %1342 = vmatpush.bf16.msra.mxu0 %v992
  %1343 = vmatpush.bf16.msra.mxu0 %v990
  %1344 = vmatpush.bf16.msra.mxu0 %v988
  %1345 = vmatpush.bf16.msra.mxu0 %v986
  %1346 = vmatpush.bf16.msra.mxu0 %v984
  %1347 = vmatpush.bf16.msra.mxu0 %v982
  %1348 = vmatmul.bf16.gmra.mxu0 %v559
  %v1349 = vpop.f32.mrf.mxu0
  %v1350 = vadd.f32 %v1286, %v1349
  %v1351 = vpop.f32.mrf.mxu0
  %v1352 = vadd.f32 %v1288, %v1351
  %1353 = vmatmul.bf16.gmra.mxu0 %v568
  %v1354 = vpop.f32.mrf.mxu0
  %v1355 = vadd.f32 %v1291, %v1354
  %v1356 = vpop.f32.mrf.mxu0
  %v1357 = vadd.f32 %v1293, %v1356
  %1358 = vmatmul.bf16.gmra.mxu0 %v577
  %v1359 = vpop.f32.mrf.mxu0
  %v1360 = vadd.f32 %v1296, %v1359
  %v1361 = vpop.f32.mrf.mxu0
  %v1362 = vadd.f32 %v1298, %v1361
  %1363 = vmatmul.bf16.gmra.mxu0 %v586
  %v1364 = vpop.f32.mrf.mxu0
  %v1365 = vadd.f32 %v1301, %v1364
  %v1366 = vpop.f32.mrf.mxu0
  %v1367 = vadd.f32 %v1303, %v1366
  %1368 = vmatmul.bf16.gmra.mxu0 %v595
  %v1369 = vpop.f32.mrf.mxu0
  %v1370 = vadd.f32 %v1306, %v1369
  %v1371 = vpop.f32.mrf.mxu0
  %v1372 = vadd.f32 %v1308, %v1371
  %1373 = vmatmul.bf16.gmra.mxu0 %v604
  %v1374 = vpop.f32.mrf.mxu0
  %v1375 = vadd.f32 %v1311, %v1374
  %v1376 = vpop.f32.mrf.mxu0
  %v1377 = vadd.f32 %v1313, %v1376
  %1378 = vmatmul.bf16.gmra.mxu0 %v613
  %v1379 = vpop.f32.mrf.mxu0
  %v1380 = vadd.f32 %v1316, %v1379
  %v1381 = vpop.f32.mrf.mxu0
  %v1382 = vadd.f32 %v1318, %v1381
  %1383 = vmatmul.bf16.gmra.mxu0 %v622
  %v1384 = vpop.f32.mrf.mxu0
  %v1385 = vadd.f32 %v1321, %v1384
  %v1386 = vpop.f32.mrf.mxu0
  %v1387 = vadd.f32 %v1323, %v1386
  %1388 = vmatmul.bf16.gmra.mxu0 %v631
  %v1389 = vpop.f32.mrf.mxu0
  %v1390 = vadd.f32 %v1326, %v1389
  %v1391 = vpop.f32.mrf.mxu0
  %v1392 = vadd.f32 %v1328, %v1391
  %1393 = vmatmul.bf16.gmra.mxu0 %v640
  %v1394 = vpop.f32.mrf.mxu0
  %v1395 = vadd.f32 %v1331, %v1394
  %v1396 = vpop.f32.mrf.mxu0
  %v1397 = vadd.f32 %v1333, %v1396
  %1398 = vmatmul.bf16.gmra.mxu0 %v649
  %v1399 = vpop.f32.mrf.mxu0
  %v1400 = vadd.f32 %v1336, %v1399
  %v1401 = vpop.f32.mrf.mxu0
  %v1402 = vadd.f32 %v1338, %v1401
  %1403 = vdwg.mxu0
  %1404 = vmatpush.bf16.msra.mxu0 %v1012
  %1405 = vmatpush.bf16.msra.mxu0 %v1010
  %1406 = vmatpush.bf16.msra.mxu0 %v1008
  %1407 = vmatpush.bf16.msra.mxu0 %v1006
  %1408 = vmatpush.bf16.msra.mxu0 %v1004
  %1409 = vmatpush.bf16.msra.mxu0 %v1002
  %1410 = vmatpush.bf16.msra.mxu0 %v1000
  %1411 = vmatpush.bf16.msra.mxu0 %v998
  %1412 = vmatmul.bf16.gmra.mxu0 %v560
  %v1413 = vpop.f32.mrf.mxu0
  %v1414 = vadd.f32 %v1350, %v1413
  %v1415 = vpop.f32.mrf.mxu0
  %v1416 = vadd.f32 %v1352, %v1415
  %1417 = vmatmul.bf16.gmra.mxu0 %v569
  %v1418 = vpop.f32.mrf.mxu0
  %v1419 = vadd.f32 %v1355, %v1418
  %v1420 = vpop.f32.mrf.mxu0
  %v1421 = vadd.f32 %v1357, %v1420
  %1422 = vmatmul.bf16.gmra.mxu0 %v578
  %v1423 = vpop.f32.mrf.mxu0
  %v1424 = vadd.f32 %v1360, %v1423
  %v1425 = vpop.f32.mrf.mxu0
  %v1426 = vadd.f32 %v1362, %v1425
  %1427 = vmatmul.bf16.gmra.mxu0 %v587
  %v1428 = vpop.f32.mrf.mxu0
  %v1429 = vadd.f32 %v1365, %v1428
  %v1430 = vpop.f32.mrf.mxu0
  %v1431 = vadd.f32 %v1367, %v1430
  %1432 = vmatmul.bf16.gmra.mxu0 %v596
  %v1433 = vpop.f32.mrf.mxu0
  %v1434 = vadd.f32 %v1370, %v1433
  %v1435 = vpop.f32.mrf.mxu0
  %v1436 = vadd.f32 %v1372, %v1435
  %1437 = vmatmul.bf16.gmra.mxu0 %v605
  %v1438 = vpop.f32.mrf.mxu0
  %v1439 = vadd.f32 %v1375, %v1438
  %v1440 = vpop.f32.mrf.mxu0
  %v1441 = vadd.f32 %v1377, %v1440
  %1442 = vmatmul.bf16.gmra.mxu0 %v614
  %v1443 = vpop.f32.mrf.mxu0
  %v1444 = vadd.f32 %v1380, %v1443
  %v1445 = vpop.f32.mrf.mxu0
  %v1446 = vadd.f32 %v1382, %v1445
  %1447 = vmatmul.bf16.gmra.mxu0 %v623
  %v1448 = vpop.f32.mrf.mxu0
  %v1449 = vadd.f32 %v1385, %v1448
  %v1450 = vpop.f32.mrf.mxu0
  %v1451 = vadd.f32 %v1387, %v1450
  %1452 = vmatmul.bf16.gmra.mxu0 %v632
  %v1453 = vpop.f32.mrf.mxu0
  %v1454 = vadd.f32 %v1390, %v1453
  %v1455 = vpop.f32.mrf.mxu0
  %v1456 = vadd.f32 %v1392, %v1455
  %1457 = vmatmul.bf16.gmra.mxu0 %v641
  %v1458 = vpop.f32.mrf.mxu0
  %v1459 = vadd.f32 %v1395, %v1458
  %v1460 = vpop.f32.mrf.mxu0
  %v1461 = vadd.f32 %v1397, %v1460
  %1462 = vmatmul.bf16.gmra.mxu0 %v650
  %v1463 = vpop.f32.mrf.mxu0
  %v1464 = vadd.f32 %v1400, %v1463
  %v1465 = vpop.f32.mrf.mxu0
  %v1466 = vadd.f32 %v1402, %v1465
  %1467 = vdwg.mxu0
  %1468 = vmatpush.bf16.msra.mxu0 %v1028
  %1469 = vmatpush.bf16.msra.mxu0 %v1026
  %1470 = vmatpush.bf16.msra.mxu0 %v1024
  %1471 = vmatpush.bf16.msra.mxu0 %v1022
  %1472 = vmatpush.bf16.msra.mxu0 %v1020
  %1473 = vmatpush.bf16.msra.mxu0 %v1018
  %1474 = vmatpush.bf16.msra.mxu0 %v1016
  %1475 = vmatpush.bf16.msra.mxu0 %v1014
  %1476 = vmatmul.bf16.gmra.mxu0 %v561
  %v1477 = vpop.f32.mrf.mxu0
  %v1478 = vadd.f32 %v1414, %v1477
  %v1479 = vpop.f32.mrf.mxu0
  %v1480 = vadd.f32 %v1416, %v1479
  %1481 = vmatmul.bf16.gmra.mxu0 %v570
  %v1482 = vpop.f32.mrf.mxu0
  %v1483 = vadd.f32 %v1419, %v1482
  %v1484 = vpop.f32.mrf.mxu0
  %v1485 = vadd.f32 %v1421, %v1484
  %1486 = vmatmul.bf16.gmra.mxu0 %v579
  %v1487 = vpop.f32.mrf.mxu0
  %v1488 = vadd.f32 %v1424, %v1487
  %v1489 = vpop.f32.mrf.mxu0
  %v1490 = vadd.f32 %v1426, %v1489
  %1491 = vmatmul.bf16.gmra.mxu0 %v588
  %v1492 = vpop.f32.mrf.mxu0
  %v1493 = vadd.f32 %v1429, %v1492
  %v1494 = vpop.f32.mrf.mxu0
  %v1495 = vadd.f32 %v1431, %v1494
  %1496 = vmatmul.bf16.gmra.mxu0 %v597
  %v1497 = vpop.f32.mrf.mxu0
  %v1498 = vadd.f32 %v1434, %v1497
  %v1499 = vpop.f32.mrf.mxu0
  %v1500 = vadd.f32 %v1436, %v1499
  %1501 = vmatmul.bf16.gmra.mxu0 %v606
  %v1502 = vpop.f32.mrf.mxu0
  %v1503 = vadd.f32 %v1439, %v1502
  %v1504 = vpop.f32.mrf.mxu0
  %v1505 = vadd.f32 %v1441, %v1504
  %1506 = vmatmul.bf16.gmra.mxu0 %v615
  %v1507 = vpop.f32.mrf.mxu0
  %v1508 = vadd.f32 %v1444, %v1507
  %v1509 = vpop.f32.mrf.mxu0
  %v1510 = vadd.f32 %v1446, %v1509
  %1511 = vmatmul.bf16.gmra.mxu0 %v624
  %v1512 = vpop.f32.mrf.mxu0
  %v1513 = vadd.f32 %v1449, %v1512
  %v1514 = vpop.f32.mrf.mxu0
  %v1515 = vadd.f32 %v1451, %v1514
  %1516 = vmatmul.bf16.gmra.mxu0 %v633
  %v1517 = vpop.f32.mrf.mxu0
  %v1518 = vadd.f32 %v1454, %v1517
  %v1519 = vpop.f32.mrf.mxu0
  %v1520 = vadd.f32 %v1456, %v1519
  %1521 = vmatmul.bf16.gmra.mxu0 %v642
  %v1522 = vpop.f32.mrf.mxu0
  %v1523 = vadd.f32 %v1459, %v1522
  %v1524 = vpop.f32.mrf.mxu0
  %v1525 = vadd.f32 %v1461, %v1524
  %1526 = vmatmul.bf16.gmra.mxu0 %v651
  %v1527 = vpop.f32.mrf.mxu0
  %v1528 = vadd.f32 %v1464, %v1527
  %v1529 = vpop.f32.mrf.mxu0
  %v1530 = vadd.f32 %v1466, %v1529
  %1531 = vdwg.mxu0
  %1532 = vmatpush.bf16.msra.mxu0 %v1044
  %1533 = vmatpush.bf16.msra.mxu0 %v1042
  %1534 = vmatpush.bf16.msra.mxu0 %v1040
  %1535 = vmatpush.bf16.msra.mxu0 %v1038
  %1536 = vmatpush.bf16.msra.mxu0 %v1036
  %1537 = vmatpush.bf16.msra.mxu0 %v1034
  %1538 = vmatpush.bf16.msra.mxu0 %v1032
  %1539 = vmatpush.bf16.msra.mxu0 %v1030
  %1540 = vmatmul.bf16.gmra.mxu0 %v562
  %v1541 = vpop.f32.mrf.mxu0
  %v1542 = vadd.f32 %v1478, %v1541
  %v1543 = vpop.f32.mrf.mxu0
  %v1544 = vadd.f32 %v1480, %v1543
  %1545 = vmatmul.bf16.gmra.mxu0 %v571
  %v1546 = vpop.f32.mrf.mxu0
  %v1547 = vadd.f32 %v1483, %v1546
  %v1548 = vpop.f32.mrf.mxu0
  %v1549 = vadd.f32 %v1485, %v1548
  %1550 = vmatmul.bf16.gmra.mxu0 %v580
  %v1551 = vpop.f32.mrf.mxu0
  %v1552 = vadd.f32 %v1488, %v1551
  %v1553 = vpop.f32.mrf.mxu0
  %v1554 = vadd.f32 %v1490, %v1553
  %1555 = vmatmul.bf16.gmra.mxu0 %v589
  %v1556 = vpop.f32.mrf.mxu0
  %v1557 = vadd.f32 %v1493, %v1556
  %v1558 = vpop.f32.mrf.mxu0
  %v1559 = vadd.f32 %v1495, %v1558
  %1560 = vmatmul.bf16.gmra.mxu0 %v598
  %v1561 = vpop.f32.mrf.mxu0
  %v1562 = vadd.f32 %v1498, %v1561
  %v1563 = vpop.f32.mrf.mxu0
  %v1564 = vadd.f32 %v1500, %v1563
  %1565 = vmatmul.bf16.gmra.mxu0 %v607
  %v1566 = vpop.f32.mrf.mxu0
  %v1567 = vadd.f32 %v1503, %v1566
  %v1568 = vpop.f32.mrf.mxu0
  %v1569 = vadd.f32 %v1505, %v1568
  %1570 = vmatmul.bf16.gmra.mxu0 %v616
  %v1571 = vpop.f32.mrf.mxu0
  %v1572 = vadd.f32 %v1508, %v1571
  %v1573 = vpop.f32.mrf.mxu0
  %v1574 = vadd.f32 %v1510, %v1573
  %1575 = vmatmul.bf16.gmra.mxu0 %v625
  %v1576 = vpop.f32.mrf.mxu0
  %v1577 = vadd.f32 %v1513, %v1576
  %v1578 = vpop.f32.mrf.mxu0
  %v1579 = vadd.f32 %v1515, %v1578
  %1580 = vmatmul.bf16.gmra.mxu0 %v634
  %v1581 = vpop.f32.mrf.mxu0
  %v1582 = vadd.f32 %v1518, %v1581
  %v1583 = vpop.f32.mrf.mxu0
  %v1584 = vadd.f32 %v1520, %v1583
  %1585 = vmatmul.bf16.gmra.mxu0 %v643
  %v1586 = vpop.f32.mrf.mxu0
  %v1587 = vadd.f32 %v1523, %v1586
  %v1588 = vpop.f32.mrf.mxu0
  %v1589 = vadd.f32 %v1525, %v1588
  %1590 = vmatmul.bf16.gmra.mxu0 %v652
  %v1591 = vpop.f32.mrf.mxu0
  %v1592 = vadd.f32 %v1528, %v1591
  %v1593 = vpop.f32.mrf.mxu0
  %v1594 = vadd.f32 %v1530, %v1593
  %1595 = vdwg.mxu0
  %1596 = vmatpush.bf16.msra.mxu0 0
  %1597 = vmatpush.bf16.msra.mxu0 0
  %1598 = vmatpush.bf16.msra.mxu0 0
  %1599 = vmatpush.bf16.msra.mxu0 0
  %1600 = vmatpush.bf16.msra.mxu0 0
  %1601 = vmatpush.bf16.msra.mxu0 0
  %1602 = vmatpush.bf16.msra.mxu0 %v1048
  %1603 = vmatpush.bf16.msra.mxu0 %v1046
  %1604 = vmatmul.bf16.gmra.mxu0 %v1052
  %v1605 = vpop.f32.mrf.mxu0
  %v1606 = vadd.f32 %v1542, %v1605
  %v1607 = vpop.f32.mrf.mxu0
  %v1608 = vadd.f32 %v1544, %v1607
  %1609 = vmatmul.bf16.gmra.mxu0 %v1055
  %v1610 = vpop.f32.mrf.mxu0
  %v1611 = vadd.f32 %v1547, %v1610
  %v1612 = vpop.f32.mrf.mxu0
  %v1613 = vadd.f32 %v1549, %v1612
  %1614 = vmatmul.bf16.gmra.mxu0 %v1058
  %v1615 = vpop.f32.mrf.mxu0
  %v1616 = vadd.f32 %v1552, %v1615
  %v1617 = vpop.f32.mrf.mxu0
  %v1618 = vadd.f32 %v1554, %v1617
  %1619 = vmatmul.bf16.gmra.mxu0 %v1061
  %v1620 = vpop.f32.mrf.mxu0
  %v1621 = vadd.f32 %v1557, %v1620
  %v1622 = vpop.f32.mrf.mxu0
  %v1623 = vadd.f32 %v1559, %v1622
  %1624 = vmatmul.bf16.gmra.mxu0 %v1064
  %v1625 = vpop.f32.mrf.mxu0
  %v1626 = vadd.f32 %v1562, %v1625
  %v1627 = vpop.f32.mrf.mxu0
  %v1628 = vadd.f32 %v1564, %v1627
  %1629 = vmatmul.bf16.gmra.mxu0 %v1067
  %v1630 = vpop.f32.mrf.mxu0
  %v1631 = vadd.f32 %v1567, %v1630
  %v1632 = vpop.f32.mrf.mxu0
  %v1633 = vadd.f32 %v1569, %v1632
  %1634 = vmatmul.bf16.gmra.mxu0 %v1070
  %v1635 = vpop.f32.mrf.mxu0
  %v1636 = vadd.f32 %v1572, %v1635
  %v1637 = vpop.f32.mrf.mxu0
  %v1638 = vadd.f32 %v1574, %v1637
  %1639 = vmatmul.bf16.gmra.mxu0 %v1073
  %v1640 = vpop.f32.mrf.mxu0
  %v1641 = vadd.f32 %v1577, %v1640
  %v1642 = vpop.f32.mrf.mxu0
  %v1643 = vadd.f32 %v1579, %v1642
  %1644 = vmatmul.bf16.gmra.mxu0 %v1076
  %v1645 = vpop.f32.mrf.mxu0
  %v1646 = vadd.f32 %v1582, %v1645
  %v1647 = vpop.f32.mrf.mxu0
  %v1648 = vadd.f32 %v1584, %v1647
  %1649 = vmatmul.bf16.gmra.mxu0 %v1079
  %v1650 = vpop.f32.mrf.mxu0
  %v1651 = vadd.f32 %v1587, %v1650
  %v1652 = vpop.f32.mrf.mxu0
  %v1653 = vadd.f32 %v1589, %v1652
  %1654 = vmatmul.bf16.gmra.mxu0 %v1082
  %v1655 = vpop.f32.mrf.mxu0
  %v1656 = vadd.f32 %v1592, %v1655
  %v1657 = vpop.f32.mrf.mxu0
  %v1658 = vadd.f32 %v1594, %v1657
  %1659 = vdwg.mxu0
  %1660 = vmatpush.bf16.msra.mxu0 %v933
  %1661 = vmatpush.bf16.msra.mxu0 %v931
  %1662 = vmatpush.bf16.msra.mxu0 %v929
  %1663 = vmatpush.bf16.msra.mxu0 %v927
  %1664 = vmatpush.bf16.msra.mxu0 %v925
  %1665 = vmatpush.bf16.msra.mxu0 %v923
  %1666 = vmatpush.bf16.msra.mxu0 %v921
  %1667 = vmatpush.bf16.msra.mxu0 %v919
  %1668 = vmatmul.bf16.gmra.mxu0 %v555
  %v1669 = vpop.f32.mrf.mxu0
  %v1670 = vadd.f32 0.0, %v1669
  %v1671 = vpop.f32.mrf.mxu0
  %v1672 = vadd.f32 0.0, %v1671
  %1673 = vmatmul.bf16.gmra.mxu0 %v564
  %v1674 = vpop.f32.mrf.mxu0
  %v1675 = vadd.f32 0.0, %v1674
  %v1676 = vpop.f32.mrf.mxu0
  %v1677 = vadd.f32 0.0, %v1676
  %1678 = vmatmul.bf16.gmra.mxu0 %v573
  %v1679 = vpop.f32.mrf.mxu0
  %v1680 = vadd.f32 0.0, %v1679
  %v1681 = vpop.f32.mrf.mxu0
  %v1682 = vadd.f32 0.0, %v1681
  %1683 = vmatmul.bf16.gmra.mxu0 %v582
  %v1684 = vpop.f32.mrf.mxu0
  %v1685 = vadd.f32 0.0, %v1684
  %v1686 = vpop.f32.mrf.mxu0
  %v1687 = vadd.f32 0.0, %v1686
  %1688 = vmatmul.bf16.gmra.mxu0 %v591
  %v1689 = vpop.f32.mrf.mxu0
  %v1690 = vadd.f32 0.0, %v1689
  %v1691 = vpop.f32.mrf.mxu0
  %v1692 = vadd.f32 0.0, %v1691
  %1693 = vmatmul.bf16.gmra.mxu0 %v600
  %v1694 = vpop.f32.mrf.mxu0
  %v1695 = vadd.f32 0.0, %v1694
  %v1696 = vpop.f32.mrf.mxu0
  %v1697 = vadd.f32 0.0, %v1696
  %1698 = vmatmul.bf16.gmra.mxu0 %v609
  %v1699 = vpop.f32.mrf.mxu0
  %v1700 = vadd.f32 0.0, %v1699
  %v1701 = vpop.f32.mrf.mxu0
  %v1702 = vadd.f32 0.0, %v1701
  %1703 = vmatmul.bf16.gmra.mxu0 %v618
  %v1704 = vpop.f32.mrf.mxu0
  %v1705 = vadd.f32 0.0, %v1704
  %v1706 = vpop.f32.mrf.mxu0
  %v1707 = vadd.f32 0.0, %v1706
  %1708 = vmatmul.bf16.gmra.mxu0 %v627
  %v1709 = vpop.f32.mrf.mxu0
  %v1710 = vadd.f32 0.0, %v1709
  %v1711 = vpop.f32.mrf.mxu0
  %v1712 = vadd.f32 0.0, %v1711
  %1713 = vmatmul.bf16.gmra.mxu0 %v636
  %v1714 = vpop.f32.mrf.mxu0
  %v1715 = vadd.f32 0.0, %v1714
  %v1716 = vpop.f32.mrf.mxu0
  %v1717 = vadd.f32 0.0, %v1716
  %1718 = vmatmul.bf16.gmra.mxu0 %v645
  %v1719 = vpop.f32.mrf.mxu0
  %v1720 = vadd.f32 0.0, %v1719
  %v1721 = vpop.f32.mrf.mxu0
  %v1722 = vadd.f32 0.0, %v1721
  %1723 = vdwg.mxu0
  %1724 = vmatpush.bf16.msra.mxu0 %v949
  %1725 = vmatpush.bf16.msra.mxu0 %v947
  %1726 = vmatpush.bf16.msra.mxu0 %v945
  %1727 = vmatpush.bf16.msra.mxu0 %v943
  %1728 = vmatpush.bf16.msra.mxu0 %v941
  %1729 = vmatpush.bf16.msra.mxu0 %v939
  %1730 = vmatpush.bf16.msra.mxu0 %v937
  %1731 = vmatpush.bf16.msra.mxu0 %v935
  %1732 = vmatmul.bf16.gmra.mxu0 %v556
  %v1733 = vpop.f32.mrf.mxu0
  %v1734 = vadd.f32 %v1670, %v1733
  %v1735 = vpop.f32.mrf.mxu0
  %v1736 = vadd.f32 %v1672, %v1735
  %1737 = vmatmul.bf16.gmra.mxu0 %v565
  %v1738 = vpop.f32.mrf.mxu0
  %v1739 = vadd.f32 %v1675, %v1738
  %v1740 = vpop.f32.mrf.mxu0
  %v1741 = vadd.f32 %v1677, %v1740
  %1742 = vmatmul.bf16.gmra.mxu0 %v574
  %v1743 = vpop.f32.mrf.mxu0
  %v1744 = vadd.f32 %v1680, %v1743
  %v1745 = vpop.f32.mrf.mxu0
  %v1746 = vadd.f32 %v1682, %v1745
  %1747 = vmatmul.bf16.gmra.mxu0 %v583
  %v1748 = vpop.f32.mrf.mxu0
  %v1749 = vadd.f32 %v1685, %v1748
  %v1750 = vpop.f32.mrf.mxu0
  %v1751 = vadd.f32 %v1687, %v1750
  %1752 = vmatmul.bf16.gmra.mxu0 %v592
  %v1753 = vpop.f32.mrf.mxu0
  %v1754 = vadd.f32 %v1690, %v1753
  %v1755 = vpop.f32.mrf.mxu0
  %v1756 = vadd.f32 %v1692, %v1755
  %1757 = vmatmul.bf16.gmra.mxu0 %v601
  %v1758 = vpop.f32.mrf.mxu0
  %v1759 = vadd.f32 %v1695, %v1758
  %v1760 = vpop.f32.mrf.mxu0
  %v1761 = vadd.f32 %v1697, %v1760
  %1762 = vmatmul.bf16.gmra.mxu0 %v610
  %v1763 = vpop.f32.mrf.mxu0
  %v1764 = vadd.f32 %v1700, %v1763
  %v1765 = vpop.f32.mrf.mxu0
  %v1766 = vadd.f32 %v1702, %v1765
  %1767 = vmatmul.bf16.gmra.mxu0 %v619
  %v1768 = vpop.f32.mrf.mxu0
  %v1769 = vadd.f32 %v1705, %v1768
  %v1770 = vpop.f32.mrf.mxu0
  %v1771 = vadd.f32 %v1707, %v1770
  %1772 = vmatmul.bf16.gmra.mxu0 %v628
  %v1773 = vpop.f32.mrf.mxu0
  %v1774 = vadd.f32 %v1710, %v1773
  %v1775 = vpop.f32.mrf.mxu0
  %v1776 = vadd.f32 %v1712, %v1775
  %1777 = vmatmul.bf16.gmra.mxu0 %v637
  %v1778 = vpop.f32.mrf.mxu0
  %v1779 = vadd.f32 %v1715, %v1778
  %v1780 = vpop.f32.mrf.mxu0
  %v1781 = vadd.f32 %v1717, %v1780
  %1782 = vmatmul.bf16.gmra.mxu0 %v646
  %v1783 = vpop.f32.mrf.mxu0
  %v1784 = vadd.f32 %v1720, %v1783
  %v1785 = vpop.f32.mrf.mxu0
  %v1786 = vadd.f32 %v1722, %v1785
  %1787 = vdwg.mxu0
  %1788 = vmatpush.bf16.msra.mxu0 %v965
  %1789 = vmatpush.bf16.msra.mxu0 %v963
  %1790 = vmatpush.bf16.msra.mxu0 %v961
  %1791 = vmatpush.bf16.msra.mxu0 %v959
  %1792 = vmatpush.bf16.msra.mxu0 %v957
  %1793 = vmatpush.bf16.msra.mxu0 %v955
  %1794 = vmatpush.bf16.msra.mxu0 %v953
  %1795 = vmatpush.bf16.msra.mxu0 %v951
  %1796 = vmatmul.bf16.gmra.mxu0 %v557
  %v1797 = vpop.f32.mrf.mxu0
  %v1798 = vadd.f32 %v1734, %v1797
  %v1799 = vpop.f32.mrf.mxu0
  %v1800 = vadd.f32 %v1736, %v1799
  %1801 = vmatmul.bf16.gmra.mxu0 %v566
  %v1802 = vpop.f32.mrf.mxu0
  %v1803 = vadd.f32 %v1739, %v1802
  %v1804 = vpop.f32.mrf.mxu0
  %v1805 = vadd.f32 %v1741, %v1804
  %1806 = vmatmul.bf16.gmra.mxu0 %v575
  %v1807 = vpop.f32.mrf.mxu0
  %v1808 = vadd.f32 %v1744, %v1807
  %v1809 = vpop.f32.mrf.mxu0
  %v1810 = vadd.f32 %v1746, %v1809
  %1811 = vmatmul.bf16.gmra.mxu0 %v584
  %v1812 = vpop.f32.mrf.mxu0
  %v1813 = vadd.f32 %v1749, %v1812
  %v1814 = vpop.f32.mrf.mxu0
  %v1815 = vadd.f32 %v1751, %v1814
  %1816 = vmatmul.bf16.gmra.mxu0 %v593
  %v1817 = vpop.f32.mrf.mxu0
  %v1818 = vadd.f32 %v1754, %v1817
  %v1819 = vpop.f32.mrf.mxu0
  %v1820 = vadd.f32 %v1756, %v1819
  %1821 = vmatmul.bf16.gmra.mxu0 %v602
  %v1822 = vpop.f32.mrf.mxu0
  %v1823 = vadd.f32 %v1759, %v1822
  %v1824 = vpop.f32.mrf.mxu0
  %v1825 = vadd.f32 %v1761, %v1824
  %1826 = vmatmul.bf16.gmra.mxu0 %v611
  %v1827 = vpop.f32.mrf.mxu0
  %v1828 = vadd.f32 %v1764, %v1827
  %v1829 = vpop.f32.mrf.mxu0
  %v1830 = vadd.f32 %v1766, %v1829
  %1831 = vmatmul.bf16.gmra.mxu0 %v620
  %v1832 = vpop.f32.mrf.mxu0
  %v1833 = vadd.f32 %v1769, %v1832
  %v1834 = vpop.f32.mrf.mxu0
  %v1835 = vadd.f32 %v1771, %v1834
  %1836 = vmatmul.bf16.gmra.mxu0 %v629
  %v1837 = vpop.f32.mrf.mxu0
  %v1838 = vadd.f32 %v1774, %v1837
  %v1839 = vpop.f32.mrf.mxu0
  %v1840 = vadd.f32 %v1776, %v1839
  %1841 = vmatmul.bf16.gmra.mxu0 %v638
  %v1842 = vpop.f32.mrf.mxu0
  %v1843 = vadd.f32 %v1779, %v1842
  %v1844 = vpop.f32.mrf.mxu0
  %v1845 = vadd.f32 %v1781, %v1844
  %1846 = vmatmul.bf16.gmra.mxu0 %v647
  %v1847 = vpop.f32.mrf.mxu0
  %v1848 = vadd.f32 %v1784, %v1847
  %v1849 = vpop.f32.mrf.mxu0
  %v1850 = vadd.f32 %v1786, %v1849
  %1851 = vdwg.mxu0
  %1852 = vmatpush.bf16.msra.mxu0 %v981
  %1853 = vmatpush.bf16.msra.mxu0 %v979
  %1854 = vmatpush.bf16.msra.mxu0 %v977
  %1855 = vmatpush.bf16.msra.mxu0 %v975
  %1856 = vmatpush.bf16.msra.mxu0 %v973
  %1857 = vmatpush.bf16.msra.mxu0 %v971
  %1858 = vmatpush.bf16.msra.mxu0 %v969
  %1859 = vmatpush.bf16.msra.mxu0 %v967
  %1860 = vmatmul.bf16.gmra.mxu0 %v558
  %v1861 = vpop.f32.mrf.mxu0
  %v1862 = vadd.f32 %v1798, %v1861
  %v1863 = vpop.f32.mrf.mxu0
  %v1864 = vadd.f32 %v1800, %v1863
  %1865 = vmatmul.bf16.gmra.mxu0 %v567
  %v1866 = vpop.f32.mrf.mxu0
  %v1867 = vadd.f32 %v1803, %v1866
  %v1868 = vpop.f32.mrf.mxu0
  %v1869 = vadd.f32 %v1805, %v1868
  %1870 = vmatmul.bf16.gmra.mxu0 %v576
  %v1871 = vpop.f32.mrf.mxu0
  %v1872 = vadd.f32 %v1808, %v1871
  %v1873 = vpop.f32.mrf.mxu0
  %v1874 = vadd.f32 %v1810, %v1873
  %1875 = vmatmul.bf16.gmra.mxu0 %v585
  %v1876 = vpop.f32.mrf.mxu0
  %v1877 = vadd.f32 %v1813, %v1876
  %v1878 = vpop.f32.mrf.mxu0
  %v1879 = vadd.f32 %v1815, %v1878
  %1880 = vmatmul.bf16.gmra.mxu0 %v594
  %v1881 = vpop.f32.mrf.mxu0
  %v1882 = vadd.f32 %v1818, %v1881
  %v1883 = vpop.f32.mrf.mxu0
  %v1884 = vadd.f32 %v1820, %v1883
  %1885 = vmatmul.bf16.gmra.mxu0 %v603
  %v1886 = vpop.f32.mrf.mxu0
  %v1887 = vadd.f32 %v1823, %v1886
  %v1888 = vpop.f32.mrf.mxu0
  %v1889 = vadd.f32 %v1825, %v1888
  %1890 = vmatmul.bf16.gmra.mxu0 %v612
  %v1891 = vpop.f32.mrf.mxu0
  %v1892 = vadd.f32 %v1828, %v1891
  %v1893 = vpop.f32.mrf.mxu0
  %v1894 = vadd.f32 %v1830, %v1893
  %1895 = vmatmul.bf16.gmra.mxu0 %v621
  %v1896 = vpop.f32.mrf.mxu0
  %v1897 = vadd.f32 %v1833, %v1896
  %v1898 = vpop.f32.mrf.mxu0
  %v1899 = vadd.f32 %v1835, %v1898
  %1900 = vmatmul.bf16.gmra.mxu0 %v630
  %v1901 = vpop.f32.mrf.mxu0
  %v1902 = vadd.f32 %v1838, %v1901
  %v1903 = vpop.f32.mrf.mxu0
  %v1904 = vadd.f32 %v1840, %v1903
  %1905 = vmatmul.bf16.gmra.mxu0 %v639
  %v1906 = vpop.f32.mrf.mxu0
  %v1907 = vadd.f32 %v1843, %v1906
  %v1908 = vpop.f32.mrf.mxu0
  %v1909 = vadd.f32 %v1845, %v1908
  %1910 = vmatmul.bf16.gmra.mxu0 %v648
  %v1911 = vpop.f32.mrf.mxu0
  %v1912 = vadd.f32 %v1848, %v1911
  %v1913 = vpop.f32.mrf.mxu0
  %v1914 = vadd.f32 %v1850, %v1913
  %1915 = vdwg.mxu0
  %1916 = vmatpush.bf16.msra.mxu0 %v997
  %1917 = vmatpush.bf16.msra.mxu0 %v995
  %1918 = vmatpush.bf16.msra.mxu0 %v993
  %1919 = vmatpush.bf16.msra.mxu0 %v991
  %1920 = vmatpush.bf16.msra.mxu0 %v989
  %1921 = vmatpush.bf16.msra.mxu0 %v987
  %1922 = vmatpush.bf16.msra.mxu0 %v985
  %1923 = vmatpush.bf16.msra.mxu0 %v983
  %1924 = vmatmul.bf16.gmra.mxu0 %v559
  %v1925 = vpop.f32.mrf.mxu0
  %v1926 = vadd.f32 %v1862, %v1925
  %v1927 = vpop.f32.mrf.mxu0
  %v1928 = vadd.f32 %v1864, %v1927
  %1929 = vmatmul.bf16.gmra.mxu0 %v568
  %v1930 = vpop.f32.mrf.mxu0
  %v1931 = vadd.f32 %v1867, %v1930
  %v1932 = vpop.f32.mrf.mxu0
  %v1933 = vadd.f32 %v1869, %v1932
  %1934 = vmatmul.bf16.gmra.mxu0 %v577
  %v1935 = vpop.f32.mrf.mxu0
  %v1936 = vadd.f32 %v1872, %v1935
  %v1937 = vpop.f32.mrf.mxu0
  %v1938 = vadd.f32 %v1874, %v1937
  %1939 = vmatmul.bf16.gmra.mxu0 %v586
  %v1940 = vpop.f32.mrf.mxu0
  %v1941 = vadd.f32 %v1877, %v1940
  %v1942 = vpop.f32.mrf.mxu0
  %v1943 = vadd.f32 %v1879, %v1942
  %1944 = vmatmul.bf16.gmra.mxu0 %v595
  %v1945 = vpop.f32.mrf.mxu0
  %v1946 = vadd.f32 %v1882, %v1945
  %v1947 = vpop.f32.mrf.mxu0
  %v1948 = vadd.f32 %v1884, %v1947
  %1949 = vmatmul.bf16.gmra.mxu0 %v604
  %v1950 = vpop.f32.mrf.mxu0
  %v1951 = vadd.f32 %v1887, %v1950
  %v1952 = vpop.f32.mrf.mxu0
  %v1953 = vadd.f32 %v1889, %v1952
  %1954 = vmatmul.bf16.gmra.mxu0 %v613
  %v1955 = vpop.f32.mrf.mxu0
  %v1956 = vadd.f32 %v1892, %v1955
  %v1957 = vpop.f32.mrf.mxu0
  %v1958 = vadd.f32 %v1894, %v1957
  %1959 = vmatmul.bf16.gmra.mxu0 %v622
  %v1960 = vpop.f32.mrf.mxu0
  %v1961 = vadd.f32 %v1897, %v1960
  %v1962 = vpop.f32.mrf.mxu0
  %v1963 = vadd.f32 %v1899, %v1962
  %1964 = vmatmul.bf16.gmra.mxu0 %v631
  %v1965 = vpop.f32.mrf.mxu0
  %v1966 = vadd.f32 %v1902, %v1965
  %v1967 = vpop.f32.mrf.mxu0
  %v1968 = vadd.f32 %v1904, %v1967
  %1969 = vmatmul.bf16.gmra.mxu0 %v640
  %v1970 = vpop.f32.mrf.mxu0
  %v1971 = vadd.f32 %v1907, %v1970
  %v1972 = vpop.f32.mrf.mxu0
  %v1973 = vadd.f32 %v1909, %v1972
  %1974 = vmatmul.bf16.gmra.mxu0 %v649
  %v1975 = vpop.f32.mrf.mxu0
  %v1976 = vadd.f32 %v1912, %v1975
  %v1977 = vpop.f32.mrf.mxu0
  %v1978 = vadd.f32 %v1914, %v1977
  %1979 = vdwg.mxu0
  %1980 = vmatpush.bf16.msra.mxu0 %v1013
  %1981 = vmatpush.bf16.msra.mxu0 %v1011
  %1982 = vmatpush.bf16.msra.mxu0 %v1009
  %1983 = vmatpush.bf16.msra.mxu0 %v1007
  %1984 = vmatpush.bf16.msra.mxu0 %v1005
  %1985 = vmatpush.bf16.msra.mxu0 %v1003
  %1986 = vmatpush.bf16.msra.mxu0 %v1001
  %1987 = vmatpush.bf16.msra.mxu0 %v999
  %1988 = vmatmul.bf16.gmra.mxu0 %v560
  %v1989 = vpop.f32.mrf.mxu0
  %v1990 = vadd.f32 %v1926, %v1989
  %v1991 = vpop.f32.mrf.mxu0
  %v1992 = vadd.f32 %v1928, %v1991
  %1993 = vmatmul.bf16.gmra.mxu0 %v569
  %v1994 = vpop.f32.mrf.mxu0
  %v1995 = vadd.f32 %v1931, %v1994
  %v1996 = vpop.f32.mrf.mxu0
  %v1997 = vadd.f32 %v1933, %v1996
  %1998 = vmatmul.bf16.gmra.mxu0 %v578
  %v1999 = vpop.f32.mrf.mxu0
  %v2000 = vadd.f32 %v1936, %v1999
  %v2001 = vpop.f32.mrf.mxu0
  %v2002 = vadd.f32 %v1938, %v2001
  %2003 = vmatmul.bf16.gmra.mxu0 %v587
  %v2004 = vpop.f32.mrf.mxu0
  %v2005 = vadd.f32 %v1941, %v2004
  %v2006 = vpop.f32.mrf.mxu0
  %v2007 = vadd.f32 %v1943, %v2006
  %2008 = vmatmul.bf16.gmra.mxu0 %v596
  %v2009 = vpop.f32.mrf.mxu0
  %v2010 = vadd.f32 %v1946, %v2009
  %v2011 = vpop.f32.mrf.mxu0
  %v2012 = vadd.f32 %v1948, %v2011
  %2013 = vmatmul.bf16.gmra.mxu0 %v605
  %v2014 = vpop.f32.mrf.mxu0
  %v2015 = vadd.f32 %v1951, %v2014
  %v2016 = vpop.f32.mrf.mxu0
  %v2017 = vadd.f32 %v1953, %v2016
  %2018 = vmatmul.bf16.gmra.mxu0 %v614
  %v2019 = vpop.f32.mrf.mxu0
  %v2020 = vadd.f32 %v1956, %v2019
  %v2021 = vpop.f32.mrf.mxu0
  %v2022 = vadd.f32 %v1958, %v2021
  %2023 = vmatmul.bf16.gmra.mxu0 %v623
  %v2024 = vpop.f32.mrf.mxu0
  %v2025 = vadd.f32 %v1961, %v2024
  %v2026 = vpop.f32.mrf.mxu0
  %v2027 = vadd.f32 %v1963, %v2026
  %2028 = vmatmul.bf16.gmra.mxu0 %v632
  %v2029 = vpop.f32.mrf.mxu0
  %v2030 = vadd.f32 %v1966, %v2029
  %v2031 = vpop.f32.mrf.mxu0
  %v2032 = vadd.f32 %v1968, %v2031
  %2033 = vmatmul.bf16.gmra.mxu0 %v641
  %v2034 = vpop.f32.mrf.mxu0
  %v2035 = vadd.f32 %v1971, %v2034
  %v2036 = vpop.f32.mrf.mxu0
  %v2037 = vadd.f32 %v1973, %v2036
  %2038 = vmatmul.bf16.gmra.mxu0 %v650
  %v2039 = vpop.f32.mrf.mxu0
  %v2040 = vadd.f32 %v1976, %v2039
  %v2041 = vpop.f32.mrf.mxu0
  %v2042 = vadd.f32 %v1978, %v2041
  %2043 = vdwg.mxu0
  %2044 = vmatpush.bf16.msra.mxu0 %v1029
  %2045 = vmatpush.bf16.msra.mxu0 %v1027
  %2046 = vmatpush.bf16.msra.mxu0 %v1025
  %2047 = vmatpush.bf16.msra.mxu0 %v1023
  %2048 = vmatpush.bf16.msra.mxu0 %v1021
  %2049 = vmatpush.bf16.msra.mxu0 %v1019
  %2050 = vmatpush.bf16.msra.mxu0 %v1017
  %2051 = vmatpush.bf16.msra.mxu0 %v1015
  %2052 = vmatmul.bf16.gmra.mxu0 %v561
  %v2053 = vpop.f32.mrf.mxu0
  %v2054 = vadd.f32 %v1990, %v2053
  %v2055 = vpop.f32.mrf.mxu0
  %v2056 = vadd.f32 %v1992, %v2055
  %2057 = vmatmul.bf16.gmra.mxu0 %v570
  %v2058 = vpop.f32.mrf.mxu0
  %v2059 = vadd.f32 %v1995, %v2058
  %v2060 = vpop.f32.mrf.mxu0
  %v2061 = vadd.f32 %v1997, %v2060
  %2062 = vmatmul.bf16.gmra.mxu0 %v579
  %v2063 = vpop.f32.mrf.mxu0
  %v2064 = vadd.f32 %v2000, %v2063
  %v2065 = vpop.f32.mrf.mxu0
  %v2066 = vadd.f32 %v2002, %v2065
  %2067 = vmatmul.bf16.gmra.mxu0 %v588
  %v2068 = vpop.f32.mrf.mxu0
  %v2069 = vadd.f32 %v2005, %v2068
  %v2070 = vpop.f32.mrf.mxu0
  %v2071 = vadd.f32 %v2007, %v2070
  %2072 = vmatmul.bf16.gmra.mxu0 %v597
  %v2073 = vpop.f32.mrf.mxu0
  %v2074 = vadd.f32 %v2010, %v2073
  %v2075 = vpop.f32.mrf.mxu0
  %v2076 = vadd.f32 %v2012, %v2075
  %2077 = vmatmul.bf16.gmra.mxu0 %v606
  %v2078 = vpop.f32.mrf.mxu0
  %v2079 = vadd.f32 %v2015, %v2078
  %v2080 = vpop.f32.mrf.mxu0
  %v2081 = vadd.f32 %v2017, %v2080
  %2082 = vmatmul.bf16.gmra.mxu0 %v615
  %v2083 = vpop.f32.mrf.mxu0
  %v2084 = vadd.f32 %v2020, %v2083
  %v2085 = vpop.f32.mrf.mxu0
  %v2086 = vadd.f32 %v2022, %v2085
  %2087 = vmatmul.bf16.gmra.mxu0 %v624
  %v2088 = vpop.f32.mrf.mxu0
  %v2089 = vadd.f32 %v2025, %v2088
  %v2090 = vpop.f32.mrf.mxu0
  %v2091 = vadd.f32 %v2027, %v2090
  %2092 = vmatmul.bf16.gmra.mxu0 %v633
  %v2093 = vpop.f32.mrf.mxu0
  %v2094 = vadd.f32 %v2030, %v2093
  %v2095 = vpop.f32.mrf.mxu0
  %v2096 = vadd.f32 %v2032, %v2095
  %2097 = vmatmul.bf16.gmra.mxu0 %v642
  %v2098 = vpop.f32.mrf.mxu0
  %v2099 = vadd.f32 %v2035, %v2098
  %v2100 = vpop.f32.mrf.mxu0
  %v2101 = vadd.f32 %v2037, %v2100
  %2102 = vmatmul.bf16.gmra.mxu0 %v651
  %v2103 = vpop.f32.mrf.mxu0
  %v2104 = vadd.f32 %v2040, %v2103
  %v2105 = vpop.f32.mrf.mxu0
  %v2106 = vadd.f32 %v2042, %v2105
  %2107 = vdwg.mxu0
  %2108 = vmatpush.bf16.msra.mxu0 %v1045
  %2109 = vmatpush.bf16.msra.mxu0 %v1043
  %2110 = vmatpush.bf16.msra.mxu0 %v1041
  %2111 = vmatpush.bf16.msra.mxu0 %v1039
  %2112 = vmatpush.bf16.msra.mxu0 %v1037
  %2113 = vmatpush.bf16.msra.mxu0 %v1035
  %2114 = vmatpush.bf16.msra.mxu0 %v1033
  %2115 = vmatpush.bf16.msra.mxu0 %v1031
  %2116 = vmatmul.bf16.gmra.mxu0 %v562
  %v2117 = vpop.f32.mrf.mxu0
  %v2118 = vadd.f32 %v2054, %v2117
  %v2119 = vpop.f32.mrf.mxu0
  %v2120 = vadd.f32 %v2056, %v2119
  %2121 = vmatmul.bf16.gmra.mxu0 %v571
  %v2122 = vpop.f32.mrf.mxu0
  %v2123 = vadd.f32 %v2059, %v2122
  %v2124 = vpop.f32.mrf.mxu0
  %v2125 = vadd.f32 %v2061, %v2124
  %2126 = vmatmul.bf16.gmra.mxu0 %v580
  %v2127 = vpop.f32.mrf.mxu0
  %v2128 = vadd.f32 %v2064, %v2127
  %v2129 = vpop.f32.mrf.mxu0
  %v2130 = vadd.f32 %v2066, %v2129
  %2131 = vmatmul.bf16.gmra.mxu0 %v589
  %v2132 = vpop.f32.mrf.mxu0
  %v2133 = vadd.f32 %v2069, %v2132
  %v2134 = vpop.f32.mrf.mxu0
  %v2135 = vadd.f32 %v2071, %v2134
  %2136 = vmatmul.bf16.gmra.mxu0 %v598
  %v2137 = vpop.f32.mrf.mxu0
  %v2138 = vadd.f32 %v2074, %v2137
  %v2139 = vpop.f32.mrf.mxu0
  %v2140 = vadd.f32 %v2076, %v2139
  %2141 = vmatmul.bf16.gmra.mxu0 %v607
  %v2142 = vpop.f32.mrf.mxu0
  %v2143 = vadd.f32 %v2079, %v2142
  %v2144 = vpop.f32.mrf.mxu0
  %v2145 = vadd.f32 %v2081, %v2144
  %2146 = vmatmul.bf16.gmra.mxu0 %v616
  %v2147 = vpop.f32.mrf.mxu0
  %v2148 = vadd.f32 %v2084, %v2147
  %v2149 = vpop.f32.mrf.mxu0
  %v2150 = vadd.f32 %v2086, %v2149
  %2151 = vmatmul.bf16.gmra.mxu0 %v625
  %v2152 = vpop.f32.mrf.mxu0
  %v2153 = vadd.f32 %v2089, %v2152
  %v2154 = vpop.f32.mrf.mxu0
  %v2155 = vadd.f32 %v2091, %v2154
  %2156 = vmatmul.bf16.gmra.mxu0 %v634
  %v2157 = vpop.f32.mrf.mxu0
  %v2158 = vadd.f32 %v2094, %v2157
  %v2159 = vpop.f32.mrf.mxu0
  %v2160 = vadd.f32 %v2096, %v2159
  %2161 = vmatmul.bf16.gmra.mxu0 %v643
  %v2162 = vpop.f32.mrf.mxu0
  %v2163 = vadd.f32 %v2099, %v2162
  %v2164 = vpop.f32.mrf.mxu0
  %v2165 = vadd.f32 %v2101, %v2164
  %2166 = vmatmul.bf16.gmra.mxu0 %v652
  %v2167 = vpop.f32.mrf.mxu0
  %v2168 = vadd.f32 %v2104, %v2167
  %v2169 = vpop.f32.mrf.mxu0
  %v2170 = vadd.f32 %v2106, %v2169
  %2171 = vdwg.mxu0
  %2172 = vmatpush.bf16.msra.mxu0 0
  %2173 = vmatpush.bf16.msra.mxu0 0
  %2174 = vmatpush.bf16.msra.mxu0 0
  %2175 = vmatpush.bf16.msra.mxu0 0
  %2176 = vmatpush.bf16.msra.mxu0 0
  %2177 = vmatpush.bf16.msra.mxu0 0
  %2178 = vmatpush.bf16.msra.mxu0 %v1049
  %2179 = vmatpush.bf16.msra.mxu0 %v1047
  %2180 = vmatmul.bf16.gmra.mxu0 %v1052
  %v2181 = vpop.f32.mrf.mxu0
  %v2182 = vadd.f32 %v2118, %v2181
  %v2183 = vpop.f32.mrf.mxu0
  %v2184 = vadd.f32 %v2120, %v2183
  %2185 = vmatmul.bf16.gmra.mxu0 %v1055
  %v2186 = vpop.f32.mrf.mxu0
  %v2187 = vadd.f32 %v2123, %v2186
  %v2188 = vpop.f32.mrf.mxu0
  %v2189 = vadd.f32 %v2125, %v2188
  %2190 = vmatmul.bf16.gmra.mxu0 %v1058
  %v2191 = vpop.f32.mrf.mxu0
  %v2192 = vadd.f32 %v2128, %v2191
  %v2193 = vpop.f32.mrf.mxu0
  %v2194 = vadd.f32 %v2130, %v2193
  %2195 = vmatmul.bf16.gmra.mxu0 %v1061
  %v2196 = vpop.f32.mrf.mxu0
  %v2197 = vadd.f32 %v2133, %v2196
  %v2198 = vpop.f32.mrf.mxu0
  %v2199 = vadd.f32 %v2135, %v2198
  %2200 = vmatmul.bf16.gmra.mxu0 %v1064
  %v2201 = vpop.f32.mrf.mxu0
  %v2202 = vadd.f32 %v2138, %v2201
  %v2203 = vpop.f32.mrf.mxu0
  %v2204 = vadd.f32 %v2140, %v2203
  %2205 = vmatmul.bf16.gmra.mxu0 %v1067
  %v2206 = vpop.f32.mrf.mxu0
  %v2207 = vadd.f32 %v2143, %v2206
  %v2208 = vpop.f32.mrf.mxu0
  %v2209 = vadd.f32 %v2145, %v2208
  %2210 = vmatmul.bf16.gmra.mxu0 %v1070
  %v2211 = vpop.f32.mrf.mxu0
  %v2212 = vadd.f32 %v2148, %v2211
  %v2213 = vpop.f32.mrf.mxu0
  %v2214 = vadd.f32 %v2150, %v2213
  %2215 = vmatmul.bf16.gmra.mxu0 %v1073
  %v2216 = vpop.f32.mrf.mxu0
  %v2217 = vadd.f32 %v2153, %v2216
  %v2218 = vpop.f32.mrf.mxu0
  %v2219 = vadd.f32 %v2155, %v2218
  %2220 = vmatmul.bf16.gmra.mxu0 %v1076
  %v2221 = vpop.f32.mrf.mxu0
  %v2222 = vadd.f32 %v2158, %v2221
  %v2223 = vpop.f32.mrf.mxu0
  %v2224 = vadd.f32 %v2160, %v2223
  %2225 = vmatmul.bf16.gmra.mxu0 %v1079
  %v2226 = vpop.f32.mrf.mxu0
  %v2227 = vadd.f32 %v2163, %v2226
  %v2228 = vpop.f32.mrf.mxu0
  %v2229 = vadd.f32 %v2165, %v2228
  %2230 = vmatmul.bf16.gmra.mxu0 %v1082
  %v2231 = vpop.f32.mrf.mxu0
  %v2232 = vadd.f32 %v2168, %v2231
  %v2233 = vpop.f32.mrf.mxu0
  %v2234 = vadd.f32 %v2170, %v2233
  %2235 = vdwg.mxu0
  %vm2236 = vcmask 556032
  %v2237 = vsel %vm2236, %v2182, 0.0
  %v2238 = vadd.f32 %v1606, %v2237
  %2239 = vadd.xlane.f32.xlu0 %v2238
  %v2240 = vpop.xlane.xlu0 %2239
  %v2241 = vsel %vm2236, %v2184, 0.0
  %v2242 = vadd.f32 %v1608, %v2241
  %2243 = vadd.xlane.f32.xlu0 %v2242
  %v2244 = vpop.xlane.xlu0 %2243
  %v2245 = vsel %vm2236, %v2187, 0.0
  %v2246 = vadd.f32 %v1611, %v2245
  %2247 = vadd.xlane.f32.xlu0 %v2246
  %v2248 = vpop.xlane.xlu0 %2247
  %v2249 = vsel %vm2236, %v2189, 0.0
  %v2250 = vadd.f32 %v1613, %v2249
  %2251 = vadd.xlane.f32.xlu0 %v2250
  %v2252 = vpop.xlane.xlu0 %2251
  %v2253 = vsel %vm2236, %v2192, 0.0
  %v2254 = vadd.f32 %v1616, %v2253
  %2255 = vadd.xlane.f32.xlu0 %v2254
  %v2256 = vpop.xlane.xlu0 %2255
  %v2257 = vsel %vm2236, %v2194, 0.0
  %v2258 = vadd.f32 %v1618, %v2257
  %2259 = vadd.xlane.f32.xlu0 %v2258
  %v2260 = vpop.xlane.xlu0 %2259
  %v2261 = vsel %vm2236, %v2197, 0.0
  %v2262 = vadd.f32 %v1621, %v2261
  %2263 = vadd.xlane.f32.xlu0 %v2262
  %v2264 = vpop.xlane.xlu0 %2263
  %v2265 = vsel %vm2236, %v2199, 0.0
  %v2266 = vadd.f32 %v1623, %v2265
  %2267 = vadd.xlane.f32.xlu0 %v2266
  %v2268 = vpop.xlane.xlu0 %2267
  %v2269 = vsel %vm2236, %v2202, 0.0
  %v2270 = vadd.f32 %v1626, %v2269
  %2271 = vadd.xlane.f32.xlu0 %v2270
  %v2272 = vpop.xlane.xlu0 %2271
  %v2273 = vsel %vm2236, %v2204, 0.0
  %v2274 = vadd.f32 %v1628, %v2273
  %2275 = vadd.xlane.f32.xlu0 %v2274
  %v2276 = vpop.xlane.xlu0 %2275
  %v2277 = vsel %vm2236, %v2207, 0.0
  %v2278 = vadd.f32 %v1631, %v2277
  %2279 = vadd.xlane.f32.xlu0 %v2278
  %v2280 = vpop.xlane.xlu0 %2279
  %v2281 = vsel %vm2236, %v2209, 0.0
  %v2282 = vadd.f32 %v1633, %v2281
  %2283 = vadd.xlane.f32.xlu0 %v2282
  %v2284 = vpop.xlane.xlu0 %2283
  %v2285 = vsel %vm2236, %v2212, 0.0
  %v2286 = vadd.f32 %v1636, %v2285
  %2287 = vadd.xlane.f32.xlu0 %v2286
  %v2288 = vpop.xlane.xlu0 %2287
  %v2289 = vsel %vm2236, %v2214, 0.0
  %v2290 = vadd.f32 %v1638, %v2289
  %2291 = vadd.xlane.f32.xlu0 %v2290
  %v2292 = vpop.xlane.xlu0 %2291
  %v2293 = vsel %vm2236, %v2217, 0.0
  %v2294 = vadd.f32 %v1641, %v2293
  %2295 = vadd.xlane.f32.xlu0 %v2294
  %v2296 = vpop.xlane.xlu0 %2295
  %v2297 = vsel %vm2236, %v2219, 0.0
  %v2298 = vadd.f32 %v1643, %v2297
  %2299 = vadd.xlane.f32.xlu0 %v2298
  %v2300 = vpop.xlane.xlu0 %2299
  %v2301 = vsel %vm2236, %v2222, 0.0
  %v2302 = vadd.f32 %v1646, %v2301
  %2303 = vadd.xlane.f32.xlu0 %v2302
  %v2304 = vpop.xlane.xlu0 %2303
  %v2305 = vsel %vm2236, %v2224, 0.0
  %v2306 = vadd.f32 %v1648, %v2305
  %2307 = vadd.xlane.f32.xlu0 %v2306
  %v2308 = vpop.xlane.xlu0 %2307
  %v2309 = vsel %vm2236, %v2227, 0.0
  %v2310 = vadd.f32 %v1651, %v2309
  %2311 = vadd.xlane.f32.xlu0 %v2310
  %v2312 = vpop.xlane.xlu0 %2311
  %v2313 = vsel %vm2236, %v2229, 0.0
  %v2314 = vadd.f32 %v1653, %v2313
  %2315 = vadd.xlane.f32.xlu0 %v2314
  %v2316 = vpop.xlane.xlu0 %2315
  %v2317 = vsel %vm2236, %v2232, 0.0
  %v2318 = vadd.f32 %v1656, %v2317
  %2319 = vadd.xlane.f32.xlu0 %v2318
  %v2320 = vpop.xlane.xlu0 %2319
  %v2321 = vsel %vm2236, %v2234, 0.0
  %v2322 = vadd.f32 %v1658, %v2321
  %2323 = vadd.xlane.f32.xlu0 %v2322
  %v2324 = vpop.xlane.xlu0 %2323
  %v2325 = vmul.f32 %v2240, 0.0051020407
  %v2326 = vmul.f32 %v2244, 0.0051020407
  %v2327 = vmul.f32 %v2248, 0.0051020407
  %v2328 = vmul.f32 %v2252, 0.0051020407
  %v2329 = vmul.f32 %v2256, 0.0051020407
  %v2330 = vmul.f32 %v2260, 0.0051020407
  %v2331 = vmul.f32 %v2264, 0.0051020407
  %v2332 = vmul.f32 %v2268, 0.0051020407
  %v2333 = vmul.f32 %v2272, 0.0051020407
  %v2334 = vmul.f32 %v2276, 0.0051020407
  %v2335 = vmul.f32 %v2280, 0.0051020407
  %v2336 = vmul.f32 %v2284, 0.0051020407
  %v2337 = vmul.f32 %v2288, 0.0051020407
  %v2338 = vmul.f32 %v2292, 0.0051020407
  %v2339 = vmul.f32 %v2296, 0.0051020407
  %v2340 = vmul.f32 %v2300, 0.0051020407
  %v2341 = vmul.f32 %v2304, 0.0051020407
  %v2342 = vmul.f32 %v2308, 0.0051020407
  %v2343 = vmul.f32 %v2312, 0.0051020407
  %v2344 = vmul.f32 %v2316, 0.0051020407
  %v2345 = vmul.f32 %v2320, 0.0051020407
  %v2346 = vmul.f32 %v2324, 0.0051020407
  %v2347 = vsub.f32 %v1606, %v2325
  %v2348 = vsub.f32 %v2182, %v2325
  %v2349 = vsub.f32 %v1608, %v2326
  %v2350 = vsub.f32 %v2184, %v2326
  %v2351 = vsub.f32 %v1611, %v2327
  %v2352 = vsub.f32 %v2187, %v2327
  %v2353 = vsub.f32 %v1613, %v2328
  %v2354 = vsub.f32 %v2189, %v2328
  %v2355 = vsub.f32 %v1616, %v2329
  %v2356 = vsub.f32 %v2192, %v2329
  %v2357 = vsub.f32 %v1618, %v2330
  %v2358 = vsub.f32 %v2194, %v2330
  %v2359 = vsub.f32 %v1621, %v2331
  %v2360 = vsub.f32 %v2197, %v2331
  %v2361 = vsub.f32 %v1623, %v2332
  %v2362 = vsub.f32 %v2199, %v2332
  %v2363 = vsub.f32 %v1626, %v2333
  %v2364 = vsub.f32 %v2202, %v2333
  %v2365 = vsub.f32 %v1628, %v2334
  %v2366 = vsub.f32 %v2204, %v2334
  %v2367 = vsub.f32 %v1631, %v2335
  %v2368 = vsub.f32 %v2207, %v2335
  %v2369 = vsub.f32 %v1633, %v2336
  %v2370 = vsub.f32 %v2209, %v2336
  %v2371 = vsub.f32 %v1636, %v2337
  %v2372 = vsub.f32 %v2212, %v2337
  %v2373 = vsub.f32 %v1638, %v2338
  %v2374 = vsub.f32 %v2214, %v2338
  %v2375 = vsub.f32 %v1641, %v2339
  %v2376 = vsub.f32 %v2217, %v2339
  %v2377 = vsub.f32 %v1643, %v2340
  %v2378 = vsub.f32 %v2219, %v2340
  %v2379 = vsub.f32 %v1646, %v2341
  %v2380 = vsub.f32 %v2222, %v2341
  %v2381 = vsub.f32 %v1648, %v2342
  %v2382 = vsub.f32 %v2224, %v2342
  %v2383 = vsub.f32 %v1651, %v2343
  %v2384 = vsub.f32 %v2227, %v2343
  %v2385 = vsub.f32 %v1653, %v2344
  %v2386 = vsub.f32 %v2229, %v2344
  %v2387 = vsub.f32 %v1656, %v2345
  %v2388 = vsub.f32 %v2232, %v2345
  %v2389 = vsub.f32 %v1658, %v2346
  %v2390 = vsub.f32 %v2234, %v2346
  %v2391 = vmul.f32 %v2347, %v2347
  %v2392 = vmul.f32 %v2348, %v2348
  %v2393 = vmul.f32 %v2349, %v2349
  %v2394 = vmul.f32 %v2350, %v2350
  %v2395 = vmul.f32 %v2351, %v2351
  %v2396 = vmul.f32 %v2352, %v2352
  %v2397 = vmul.f32 %v2353, %v2353
  %v2398 = vmul.f32 %v2354, %v2354
  %v2399 = vmul.f32 %v2355, %v2355
  %v2400 = vmul.f32 %v2356, %v2356
  %v2401 = vmul.f32 %v2357, %v2357
  %v2402 = vmul.f32 %v2358, %v2358
  %v2403 = vmul.f32 %v2359, %v2359
  %v2404 = vmul.f32 %v2360, %v2360
  %v2405 = vmul.f32 %v2361, %v2361
  %v2406 = vmul.f32 %v2362, %v2362
  %v2407 = vmul.f32 %v2363, %v2363
  %v2408 = vmul.f32 %v2364, %v2364
  %v2409 = vmul.f32 %v2365, %v2365
  %v2410 = vmul.f32 %v2366, %v2366
  %v2411 = vmul.f32 %v2367, %v2367
  %v2412 = vmul.f32 %v2368, %v2368
  %v2413 = vmul.f32 %v2369, %v2369
  %v2414 = vmul.f32 %v2370, %v2370
  %v2415 = vmul.f32 %v2371, %v2371
  %v2416 = vmul.f32 %v2372, %v2372
  %v2417 = vmul.f32 %v2373, %v2373
  %v2418 = vmul.f32 %v2374, %v2374
  %v2419 = vmul.f32 %v2375, %v2375
  %v2420 = vmul.f32 %v2376, %v2376
  %v2421 = vmul.f32 %v2377, %v2377
  %v2422 = vmul.f32 %v2378, %v2378
  %v2423 = vmul.f32 %v2379, %v2379
  %v2424 = vmul.f32 %v2380, %v2380
  %v2425 = vmul.f32 %v2381, %v2381
  %v2426 = vmul.f32 %v2382, %v2382
  %v2427 = vmul.f32 %v2383, %v2383
  %v2428 = vmul.f32 %v2384, %v2384
  %v2429 = vmul.f32 %v2385, %v2385
  %v2430 = vmul.f32 %v2386, %v2386
  %v2431 = vmul.f32 %v2387, %v2387
  %v2432 = vmul.f32 %v2388, %v2388
  %v2433 = vmul.f32 %v2389, %v2389
  %v2434 = vmul.f32 %v2390, %v2390
  %v2435 = vsel %vm2236, %v2392, 0.0
  %v2436 = vadd.f32 %v2391, %v2435
  %2437 = vadd.xlane.f32.xlu0 %v2436
  %v2438 = vpop.xlane.xlu0 %2437
  %v2439 = vsel %vm2236, %v2394, 0.0
  %v2440 = vadd.f32 %v2393, %v2439
  %2441 = vadd.xlane.f32.xlu0 %v2440
  %v2442 = vpop.xlane.xlu0 %2441
  %v2443 = vsel %vm2236, %v2396, 0.0
  %v2444 = vadd.f32 %v2395, %v2443
  %2445 = vadd.xlane.f32.xlu0 %v2444
  %v2446 = vpop.xlane.xlu0 %2445
  %v2447 = vsel %vm2236, %v2398, 0.0
  %v2448 = vadd.f32 %v2397, %v2447
  %2449 = vadd.xlane.f32.xlu0 %v2448
  %v2450 = vpop.xlane.xlu0 %2449
  %v2451 = vsel %vm2236, %v2400, 0.0
  %v2452 = vadd.f32 %v2399, %v2451
  %2453 = vadd.xlane.f32.xlu0 %v2452
  %v2454 = vpop.xlane.xlu0 %2453
  %v2455 = vsel %vm2236, %v2402, 0.0
  %v2456 = vadd.f32 %v2401, %v2455
  %2457 = vadd.xlane.f32.xlu0 %v2456
  %v2458 = vpop.xlane.xlu0 %2457
  %v2459 = vsel %vm2236, %v2404, 0.0
  %v2460 = vadd.f32 %v2403, %v2459
  %2461 = vadd.xlane.f32.xlu0 %v2460
  %v2462 = vpop.xlane.xlu0 %2461
  %v2463 = vsel %vm2236, %v2406, 0.0
  %v2464 = vadd.f32 %v2405, %v2463
  %2465 = vadd.xlane.f32.xlu0 %v2464
  %v2466 = vpop.xlane.xlu0 %2465
  %v2467 = vsel %vm2236, %v2408, 0.0
  %v2468 = vadd.f32 %v2407, %v2467
  %2469 = vadd.xlane.f32.xlu0 %v2468
  %v2470 = vpop.xlane.xlu0 %2469
  %v2471 = vsel %vm2236, %v2410, 0.0
  %v2472 = vadd.f32 %v2409, %v2471
  %2473 = vadd.xlane.f32.xlu0 %v2472
  %v2474 = vpop.xlane.xlu0 %2473
  %v2475 = vsel %vm2236, %v2412, 0.0
  %v2476 = vadd.f32 %v2411, %v2475
  %2477 = vadd.xlane.f32.xlu0 %v2476
  %v2478 = vpop.xlane.xlu0 %2477
  %v2479 = vsel %vm2236, %v2414, 0.0
  %v2480 = vadd.f32 %v2413, %v2479
  %2481 = vadd.xlane.f32.xlu0 %v2480
  %v2482 = vpop.xlane.xlu0 %2481
  %v2483 = vsel %vm2236, %v2416, 0.0
  %v2484 = vadd.f32 %v2415, %v2483
  %2485 = vadd.xlane.f32.xlu0 %v2484
  %v2486 = vpop.xlane.xlu0 %2485
  %v2487 = vsel %vm2236, %v2418, 0.0
  %v2488 = vadd.f32 %v2417, %v2487
  %2489 = vadd.xlane.f32.xlu0 %v2488
  %v2490 = vpop.xlane.xlu0 %2489
  %v2491 = vsel %vm2236, %v2420, 0.0
  %v2492 = vadd.f32 %v2419, %v2491
  %2493 = vadd.xlane.f32.xlu0 %v2492
  %v2494 = vpop.xlane.xlu0 %2493
  %v2495 = vsel %vm2236, %v2422, 0.0
  %v2496 = vadd.f32 %v2421, %v2495
  %2497 = vadd.xlane.f32.xlu0 %v2496
  %v2498 = vpop.xlane.xlu0 %2497
  %v2499 = vsel %vm2236, %v2424, 0.0
  %v2500 = vadd.f32 %v2423, %v2499
  %2501 = vadd.xlane.f32.xlu0 %v2500
  %v2502 = vpop.xlane.xlu0 %2501
  %v2503 = vsel %vm2236, %v2426, 0.0
  %v2504 = vadd.f32 %v2425, %v2503
  %2505 = vadd.xlane.f32.xlu0 %v2504
  %v2506 = vpop.xlane.xlu0 %2505
  %v2507 = vsel %vm2236, %v2428, 0.0
  %v2508 = vadd.f32 %v2427, %v2507
  %2509 = vadd.xlane.f32.xlu0 %v2508
  %v2510 = vpop.xlane.xlu0 %2509
  %v2511 = vsel %vm2236, %v2430, 0.0
  %v2512 = vadd.f32 %v2429, %v2511
  %2513 = vadd.xlane.f32.xlu0 %v2512
  %v2514 = vpop.xlane.xlu0 %2513
  %v2515 = vsel %vm2236, %v2432, 0.0
  %v2516 = vadd.f32 %v2431, %v2515
  %2517 = vadd.xlane.f32.xlu0 %v2516
  %v2518 = vpop.xlane.xlu0 %2517
  %v2519 = vsel %vm2236, %v2434, 0.0
  %v2520 = vadd.f32 %v2433, %v2519
  %2521 = vadd.xlane.f32.xlu0 %v2520
  %v2522 = vpop.xlane.xlu0 %2521
  %v2523 = vmul.f32 %v2438, 0.0051020407
  %v2524 = vmul.f32 %v2442, 0.0051020407
  %v2525 = vmul.f32 %v2446, 0.0051020407
  %v2526 = vmul.f32 %v2450, 0.0051020407
  %v2527 = vmul.f32 %v2454, 0.0051020407
  %v2528 = vmul.f32 %v2458, 0.0051020407
  %v2529 = vmul.f32 %v2462, 0.0051020407
  %v2530 = vmul.f32 %v2466, 0.0051020407
  %v2531 = vmul.f32 %v2470, 0.0051020407
  %v2532 = vmul.f32 %v2474, 0.0051020407
  %v2533 = vmul.f32 %v2478, 0.0051020407
  %v2534 = vmul.f32 %v2482, 0.0051020407
  %v2535 = vmul.f32 %v2486, 0.0051020407
  %v2536 = vmul.f32 %v2490, 0.0051020407
  %v2537 = vmul.f32 %v2494, 0.0051020407
  %v2538 = vmul.f32 %v2498, 0.0051020407
  %v2539 = vmul.f32 %v2502, 0.0051020407
  %v2540 = vmul.f32 %v2506, 0.0051020407
  %v2541 = vmul.f32 %v2510, 0.0051020407
  %v2542 = vmul.f32 %v2514, 0.0051020407
  %v2543 = vmul.f32 %v2518, 0.0051020407
  %v2544 = vmul.f32 %v2522, 0.0051020407
  %v2545 = vld [vmem:[%s4] sm:$0xff]
  %v2546 = vld [vmem:[%s4 + $0x8] sm:$0xff]
  %v2547 = vld [vmem:[%s4 + $0x10] sm:$0xff]
  %v2548 = vld [vmem:[%s4 + $0x18] sm:$0xff]
  %v2549 = vld [vmem:[%s4 + $0x20] sm:$0xff]
  %v2550 = vld [vmem:[%s4 + $0x28] sm:$0xff]
  %v2551 = vld [vmem:[%s4 + $0x30] sm:$0xff]
  %v2552 = vld [vmem:[%s4 + $0x38] sm:$0xff]
  %v2553 = vld [vmem:[%s4 + $0x40] sm:$0xff]
  %v2554 = vld [vmem:[%s4 + $0x48] sm:$0xff]
  %v2555 = vld [vmem:[%s4 + $0x50] sm:$0xff]
  %v2556 = vld [vmem:[%s4 + $0x58] sm:$0xff]
  %v2557 = vld [vmem:[%s4 + $0x60] sm:$0xff]
  %v2558 = vld [vmem:[%s4 + $0x68] sm:$0xff]
  %v2559 = vld [vmem:[%s4 + $0x70] sm:$0xff]
  %v2560 = vld [vmem:[%s4 + $0x78] sm:$0xff]
  %v2561 = vld [vmem:[%s4 + $0x80] sm:$0xff]
  %v2562 = vld [vmem:[%s4 + $0x88] sm:$0xff]
  %v2563 = vld [vmem:[%s4 + $0x90] sm:$0xff]
  %v2564 = vld [vmem:[%s4 + $0x98] sm:$0xff]
  %v2565 = vld [vmem:[%s4 + $0xa0] sm:$0xff]
  %v2566 = vld [vmem:[%s4 + $0xa8] sm:$0xff]
  %v2567 = vadd.f32 %v2523, 1e-05
  %v2568 = vadd.f32 %v2524, 1e-05
  %v2569 = vadd.f32 %v2525, 1e-05
  %v2570 = vadd.f32 %v2526, 1e-05
  %v2571 = vadd.f32 %v2527, 1e-05
  %v2572 = vadd.f32 %v2528, 1e-05
  %v2573 = vadd.f32 %v2529, 1e-05
  %v2574 = vadd.f32 %v2530, 1e-05
  %v2575 = vadd.f32 %v2531, 1e-05
  %v2576 = vadd.f32 %v2532, 1e-05
  %v2577 = vadd.f32 %v2533, 1e-05
  %v2578 = vadd.f32 %v2534, 1e-05
  %v2579 = vadd.f32 %v2535, 1e-05
  %v2580 = vadd.f32 %v2536, 1e-05
  %v2581 = vadd.f32 %v2537, 1e-05
  %v2582 = vadd.f32 %v2538, 1e-05
  %v2583 = vadd.f32 %v2539, 1e-05
  %v2584 = vadd.f32 %v2540, 1e-05
  %v2585 = vadd.f32 %v2541, 1e-05
  %v2586 = vadd.f32 %v2542, 1e-05
  %v2587 = vadd.f32 %v2543, 1e-05
  %v2588 = vadd.f32 %v2544, 1e-05
  %v2589 = vrsqrt.pop %v2567
  %v2590 = vmul.f32 %v2589, %v2567
  %v2591 = vmul.f32 %v2590, %v2589
  %v2592 = vmul.f32 0.5, %v2591
  %v2593 = vsub.f32 1.5, %v2592
  %v2594 = vmul.f32 %v2589, %v2593
  %vm2595 = vweird.f32 %v2567
  %vm2596 = vweird.f32 %v2589
  %vm2597 = vmor %vm2595, %vm2596
  %v2598 = vsel %vm2597, %v2589, %v2594
  %v2599 = vrsqrt.pop %v2568
  %v2600 = vmul.f32 %v2599, %v2568
  %v2601 = vmul.f32 %v2600, %v2599
  %v2602 = vmul.f32 0.5, %v2601
  %v2603 = vsub.f32 1.5, %v2602
  %v2604 = vmul.f32 %v2599, %v2603
  %vm2605 = vweird.f32 %v2568
  %vm2606 = vweird.f32 %v2599
  %vm2607 = vmor %vm2605, %vm2606
  %v2608 = vsel %vm2607, %v2599, %v2604
  %v2609 = vrsqrt.pop %v2569
  %v2610 = vmul.f32 %v2609, %v2569
  %v2611 = vmul.f32 %v2610, %v2609
  %v2612 = vmul.f32 0.5, %v2611
  %v2613 = vsub.f32 1.5, %v2612
  %v2614 = vmul.f32 %v2609, %v2613
  %vm2615 = vweird.f32 %v2569
  %vm2616 = vweird.f32 %v2609
  %vm2617 = vmor %vm2615, %vm2616
  %v2618 = vsel %vm2617, %v2609, %v2614
  %v2619 = vrsqrt.pop %v2570
  %v2620 = vmul.f32 %v2619, %v2570
  %v2621 = vmul.f32 %v2620, %v2619
  %v2622 = vmul.f32 0.5, %v2621
  %v2623 = vsub.f32 1.5, %v2622
  %v2624 = vmul.f32 %v2619, %v2623
  %vm2625 = vweird.f32 %v2570
  %vm2626 = vweird.f32 %v2619
  %vm2627 = vmor %vm2625, %vm2626
  %v2628 = vsel %vm2627, %v2619, %v2624
  %v2629 = vrsqrt.pop %v2571
  %v2630 = vmul.f32 %v2629, %v2571
  %v2631 = vmul.f32 %v2630, %v2629
  %v2632 = vmul.f32 0.5, %v2631
  %v2633 = vsub.f32 1.5, %v2632
  %v2634 = vmul.f32 %v2629, %v2633
  %vm2635 = vweird.f32 %v2571
  %vm2636 = vweird.f32 %v2629
  %vm2637 = vmor %vm2635, %vm2636
  %v2638 = vsel %vm2637, %v2629, %v2634
  %v2639 = vrsqrt.pop %v2572
  %v2640 = vmul.f32 %v2639, %v2572
  %v2641 = vmul.f32 %v2640, %v2639
  %v2642 = vmul.f32 0.5, %v2641
  %v2643 = vsub.f32 1.5, %v2642
  %v2644 = vmul.f32 %v2639, %v2643
  %vm2645 = vweird.f32 %v2572
  %vm2646 = vweird.f32 %v2639
  %vm2647 = vmor %vm2645, %vm2646
  %v2648 = vsel %vm2647, %v2639, %v2644
  %v2649 = vrsqrt.pop %v2573
  %v2650 = vmul.f32 %v2649, %v2573
  %v2651 = vmul.f32 %v2650, %v2649
  %v2652 = vmul.f32 0.5, %v2651
  %v2653 = vsub.f32 1.5, %v2652
  %v2654 = vmul.f32 %v2649, %v2653
  %vm2655 = vweird.f32 %v2573
  %vm2656 = vweird.f32 %v2649
  %vm2657 = vmor %vm2655, %vm2656
  %v2658 = vsel %vm2657, %v2649, %v2654
  %v2659 = vrsqrt.pop %v2574
  %v2660 = vmul.f32 %v2659, %v2574
  %v2661 = vmul.f32 %v2660, %v2659
  %v2662 = vmul.f32 0.5, %v2661
  %v2663 = vsub.f32 1.5, %v2662
  %v2664 = vmul.f32 %v2659, %v2663
  %vm2665 = vweird.f32 %v2574
  %vm2666 = vweird.f32 %v2659
  %vm2667 = vmor %vm2665, %vm2666
  %v2668 = vsel %vm2667, %v2659, %v2664
  %v2669 = vrsqrt.pop %v2575
  %v2670 = vmul.f32 %v2669, %v2575
  %v2671 = vmul.f32 %v2670, %v2669
  %v2672 = vmul.f32 0.5, %v2671
  %v2673 = vsub.f32 1.5, %v2672
  %v2674 = vmul.f32 %v2669, %v2673
  %vm2675 = vweird.f32 %v2575
  %vm2676 = vweird.f32 %v2669
  %vm2677 = vmor %vm2675, %vm2676
  %v2678 = vsel %vm2677, %v2669, %v2674
  %v2679 = vrsqrt.pop %v2576
  %v2680 = vmul.f32 %v2679, %v2576
  %v2681 = vmul.f32 %v2680, %v2679
  %v2682 = vmul.f32 0.5, %v2681
  %v2683 = vsub.f32 1.5, %v2682
  %v2684 = vmul.f32 %v2679, %v2683
  %vm2685 = vweird.f32 %v2576
  %vm2686 = vweird.f32 %v2679
  %vm2687 = vmor %vm2685, %vm2686
  %v2688 = vsel %vm2687, %v2679, %v2684
  %v2689 = vrsqrt.pop %v2577
  %v2690 = vmul.f32 %v2689, %v2577
  %v2691 = vmul.f32 %v2690, %v2689
  %v2692 = vmul.f32 0.5, %v2691
  %v2693 = vsub.f32 1.5, %v2692
  %v2694 = vmul.f32 %v2689, %v2693
  %vm2695 = vweird.f32 %v2577
  %vm2696 = vweird.f32 %v2689
  %vm2697 = vmor %vm2695, %vm2696
  %v2698 = vsel %vm2697, %v2689, %v2694
  %v2699 = vrsqrt.pop %v2578
  %v2700 = vmul.f32 %v2699, %v2578
  %v2701 = vmul.f32 %v2700, %v2699
  %v2702 = vmul.f32 0.5, %v2701
  %v2703 = vsub.f32 1.5, %v2702
  %v2704 = vmul.f32 %v2699, %v2703
  %vm2705 = vweird.f32 %v2578
  %vm2706 = vweird.f32 %v2699
  %vm2707 = vmor %vm2705, %vm2706
  %v2708 = vsel %vm2707, %v2699, %v2704
  %v2709 = vrsqrt.pop %v2579
  %v2710 = vmul.f32 %v2709, %v2579
  %v2711 = vmul.f32 %v2710, %v2709
  %v2712 = vmul.f32 0.5, %v2711
  %v2713 = vsub.f32 1.5, %v2712
  %v2714 = vmul.f32 %v2709, %v2713
  %vm2715 = vweird.f32 %v2579
  %vm2716 = vweird.f32 %v2709
  %vm2717 = vmor %vm2715, %vm2716
  %v2718 = vsel %vm2717, %v2709, %v2714
  %v2719 = vrsqrt.pop %v2580
  %v2720 = vmul.f32 %v2719, %v2580
  %v2721 = vmul.f32 %v2720, %v2719
  %v2722 = vmul.f32 0.5, %v2721
  %v2723 = vsub.f32 1.5, %v2722
  %v2724 = vmul.f32 %v2719, %v2723
  %vm2725 = vweird.f32 %v2580
  %vm2726 = vweird.f32 %v2719
  %vm2727 = vmor %vm2725, %vm2726
  %v2728 = vsel %vm2727, %v2719, %v2724
  %v2729 = vrsqrt.pop %v2581
  %v2730 = vmul.f32 %v2729, %v2581
  %v2731 = vmul.f32 %v2730, %v2729
  %v2732 = vmul.f32 0.5, %v2731
  %v2733 = vsub.f32 1.5, %v2732
  %v2734 = vmul.f32 %v2729, %v2733
  %vm2735 = vweird.f32 %v2581
  %vm2736 = vweird.f32 %v2729
  %vm2737 = vmor %vm2735, %vm2736
  %v2738 = vsel %vm2737, %v2729, %v2734
  %v2739 = vrsqrt.pop %v2582
  %v2740 = vmul.f32 %v2739, %v2582
  %v2741 = vmul.f32 %v2740, %v2739
  %v2742 = vmul.f32 0.5, %v2741
  %v2743 = vsub.f32 1.5, %v2742
  %v2744 = vmul.f32 %v2739, %v2743
  %vm2745 = vweird.f32 %v2582
  %vm2746 = vweird.f32 %v2739
  %vm2747 = vmor %vm2745, %vm2746
  %v2748 = vsel %vm2747, %v2739, %v2744
  %v2749 = vrsqrt.pop %v2583
  %v2750 = vmul.f32 %v2749, %v2583
  %v2751 = vmul.f32 %v2750, %v2749
  %v2752 = vmul.f32 0.5, %v2751
  %v2753 = vsub.f32 1.5, %v2752
  %v2754 = vmul.f32 %v2749, %v2753
  %vm2755 = vweird.f32 %v2583
  %vm2756 = vweird.f32 %v2749
  %vm2757 = vmor %vm2755, %vm2756
  %v2758 = vsel %vm2757, %v2749, %v2754
  %v2759 = vrsqrt.pop %v2584
  %v2760 = vmul.f32 %v2759, %v2584
  %v2761 = vmul.f32 %v2760, %v2759
  %v2762 = vmul.f32 0.5, %v2761
  %v2763 = vsub.f32 1.5, %v2762
  %v2764 = vmul.f32 %v2759, %v2763
  %vm2765 = vweird.f32 %v2584
  %vm2766 = vweird.f32 %v2759
  %vm2767 = vmor %vm2765, %vm2766
  %v2768 = vsel %vm2767, %v2759, %v2764
  %v2769 = vrsqrt.pop %v2585
  %v2770 = vmul.f32 %v2769, %v2585
  %v2771 = vmul.f32 %v2770, %v2769
  %v2772 = vmul.f32 0.5, %v2771
  %v2773 = vsub.f32 1.5, %v2772
  %v2774 = vmul.f32 %v2769, %v2773
  %vm2775 = vweird.f32 %v2585
  %vm2776 = vweird.f32 %v2769
  %vm2777 = vmor %vm2775, %vm2776
  %v2778 = vsel %vm2777, %v2769, %v2774
  %v2779 = vrsqrt.pop %v2586
  %v2780 = vmul.f32 %v2779, %v2586
  %v2781 = vmul.f32 %v2780, %v2779
  %v2782 = vmul.f32 0.5, %v2781
  %v2783 = vsub.f32 1.5, %v2782
  %v2784 = vmul.f32 %v2779, %v2783
  %vm2785 = vweird.f32 %v2586
  %vm2786 = vweird.f32 %v2779
  %vm2787 = vmor %vm2785, %vm2786
  %v2788 = vsel %vm2787, %v2779, %v2784
  %v2789 = vrsqrt.pop %v2587
  %v2790 = vmul.f32 %v2789, %v2587
  %v2791 = vmul.f32 %v2790, %v2789
  %v2792 = vmul.f32 0.5, %v2791
  %v2793 = vsub.f32 1.5, %v2792
  %v2794 = vmul.f32 %v2789, %v2793
  %vm2795 = vweird.f32 %v2587
  %vm2796 = vweird.f32 %v2789
  %vm2797 = vmor %vm2795, %vm2796
  %v2798 = vsel %vm2797, %v2789, %v2794
  %v2799 = vrsqrt.pop %v2588
  %v2800 = vmul.f32 %v2799, %v2588
  %v2801 = vmul.f32 %v2800, %v2799
  %v2802 = vmul.f32 0.5, %v2801
  %v2803 = vsub.f32 1.5, %v2802
  %v2804 = vmul.f32 %v2799, %v2803
  %vm2805 = vweird.f32 %v2588
  %vm2806 = vweird.f32 %v2799
  %vm2807 = vmor %vm2805, %vm2806
  %v2808 = vsel %vm2807, %v2799, %v2804
  %v2809 = vmul.f32 %v2545, %v2598
  %v2810 = vmul.f32 %v2546, %v2608
  %v2811 = vmul.f32 %v2547, %v2618
  %v2812 = vmul.f32 %v2548, %v2628
  %v2813 = vmul.f32 %v2549, %v2638
  %v2814 = vmul.f32 %v2550, %v2648
  %v2815 = vmul.f32 %v2551, %v2658
  %v2816 = vmul.f32 %v2552, %v2668
  %v2817 = vmul.f32 %v2553, %v2678
  %v2818 = vmul.f32 %v2554, %v2688
  %v2819 = vmul.f32 %v2555, %v2698
  %v2820 = vmul.f32 %v2556, %v2708
  %v2821 = vmul.f32 %v2557, %v2718
  %v2822 = vmul.f32 %v2558, %v2728
  %v2823 = vmul.f32 %v2559, %v2738
  %v2824 = vmul.f32 %v2560, %v2748
  %v2825 = vmul.f32 %v2561, %v2758
  %v2826 = vmul.f32 %v2562, %v2768
  %v2827 = vmul.f32 %v2563, %v2778
  %v2828 = vmul.f32 %v2564, %v2788
  %v2829 = vmul.f32 %v2565, %v2798
  %v2830 = vmul.f32 %v2566, %v2808
  %2832 = vset.pattern.permute.xlu0 0
  %2833 = vperm.xlu0 %2832, %v2809
  %v2834 = vpop.permute.xlu0 %2833
  %2837 = vset.pattern.permute.xlu0 0
  %2838 = vperm.xlu0 %2837, %v2810
  %v2839 = vpop.permute.xlu0 %2838
  %2842 = vset.pattern.permute.xlu0 0
  %2843 = vperm.xlu0 %2842, %v2811
  %v2844 = vpop.permute.xlu0 %2843
  %2847 = vset.pattern.permute.xlu0 0
  %2848 = vperm.xlu0 %2847, %v2812
  %v2849 = vpop.permute.xlu0 %2848
  %2852 = vset.pattern.permute.xlu0 0
  %2853 = vperm.xlu0 %2852, %v2813
  %v2854 = vpop.permute.xlu0 %2853
  %2857 = vset.pattern.permute.xlu0 0
  %2858 = vperm.xlu0 %2857, %v2814
  %v2859 = vpop.permute.xlu0 %2858
  %2862 = vset.pattern.permute.xlu0 0
  %2863 = vperm.xlu0 %2862, %v2815
  %v2864 = vpop.permute.xlu0 %2863
  %2867 = vset.pattern.permute.xlu0 0
  %2868 = vperm.xlu0 %2867, %v2816
  %v2869 = vpop.permute.xlu0 %2868
  %2872 = vset.pattern.permute.xlu0 0
  %2873 = vperm.xlu0 %2872, %v2817
  %v2874 = vpop.permute.xlu0 %2873
  %2877 = vset.pattern.permute.xlu0 0
  %2878 = vperm.xlu0 %2877, %v2818
  %v2879 = vpop.permute.xlu0 %2878
  %2882 = vset.pattern.permute.xlu0 0
  %2883 = vperm.xlu0 %2882, %v2819
  %v2884 = vpop.permute.xlu0 %2883
  %2887 = vset.pattern.permute.xlu0 0
  %2888 = vperm.xlu0 %2887, %v2820
  %v2889 = vpop.permute.xlu0 %2888
  %2892 = vset.pattern.permute.xlu0 0
  %2893 = vperm.xlu0 %2892, %v2821
  %v2894 = vpop.permute.xlu0 %2893
  %2897 = vset.pattern.permute.xlu0 0
  %2898 = vperm.xlu0 %2897, %v2822
  %v2899 = vpop.permute.xlu0 %2898
  %2902 = vset.pattern.permute.xlu0 0
  %2903 = vperm.xlu0 %2902, %v2823
  %v2904 = vpop.permute.xlu0 %2903
  %2907 = vset.pattern.permute.xlu0 0
  %2908 = vperm.xlu0 %2907, %v2824
  %v2909 = vpop.permute.xlu0 %2908
  %2912 = vset.pattern.permute.xlu0 0
  %2913 = vperm.xlu0 %2912, %v2825
  %v2914 = vpop.permute.xlu0 %2913
  %2917 = vset.pattern.permute.xlu0 0
  %2918 = vperm.xlu0 %2917, %v2826
  %v2919 = vpop.permute.xlu0 %2918
  %2922 = vset.pattern.permute.xlu0 0
  %2923 = vperm.xlu0 %2922, %v2827
  %v2924 = vpop.permute.xlu0 %2923
  %2927 = vset.pattern.permute.xlu0 0
  %2928 = vperm.xlu0 %2927, %v2828
  %v2929 = vpop.permute.xlu0 %2928
  %2932 = vset.pattern.permute.xlu0 0
  %2933 = vperm.xlu0 %2932, %v2829
  %v2934 = vpop.permute.xlu0 %2933
  %2937 = vset.pattern.permute.xlu0 0
  %2938 = vperm.xlu0 %2937, %v2830
  %v2939 = vpop.permute.xlu0 %2938
  %v2941 = vmul.f32 %v2347, %v2834
  %v2942 = vmul.f32 %v2348, %v2834
  %v2943 = vmul.f32 %v2349, %v2839
  %v2944 = vmul.f32 %v2350, %v2839
  %v2945 = vmul.f32 %v2351, %v2844
  %v2946 = vmul.f32 %v2352, %v2844
  %v2947 = vmul.f32 %v2353, %v2849
  %v2948 = vmul.f32 %v2354, %v2849
  %v2949 = vmul.f32 %v2355, %v2854
  %v2950 = vmul.f32 %v2356, %v2854
  %v2951 = vmul.f32 %v2357, %v2859
  %v2952 = vmul.f32 %v2358, %v2859
  %v2953 = vmul.f32 %v2359, %v2864
  %v2954 = vmul.f32 %v2360, %v2864
  %v2955 = vmul.f32 %v2361, %v2869
  %v2956 = vmul.f32 %v2362, %v2869
  %v2957 = vmul.f32 %v2363, %v2874
  %v2958 = vmul.f32 %v2364, %v2874
  %v2959 = vmul.f32 %v2365, %v2879
  %v2960 = vmul.f32 %v2366, %v2879
  %v2961 = vmul.f32 %v2367, %v2884
  %v2962 = vmul.f32 %v2368, %v2884
  %v2963 = vmul.f32 %v2369, %v2889
  %v2964 = vmul.f32 %v2370, %v2889
  %v2965 = vmul.f32 %v2371, %v2894
  %v2966 = vmul.f32 %v2372, %v2894
  %v2967 = vmul.f32 %v2373, %v2899
  %v2968 = vmul.f32 %v2374, %v2899
  %v2969 = vmul.f32 %v2375, %v2904
  %v2970 = vmul.f32 %v2376, %v2904
  %v2971 = vmul.f32 %v2377, %v2909
  %v2972 = vmul.f32 %v2378, %v2909
  %v2973 = vmul.f32 %v2379, %v2914
  %v2974 = vmul.f32 %v2380, %v2914
  %v2975 = vmul.f32 %v2381, %v2919
  %v2976 = vmul.f32 %v2382, %v2919
  %v2977 = vmul.f32 %v2383, %v2924
  %v2978 = vmul.f32 %v2384, %v2924
  %v2979 = vmul.f32 %v2385, %v2929
  %v2980 = vmul.f32 %v2386, %v2929
  %v2981 = vmul.f32 %v2387, %v2934
  %v2982 = vmul.f32 %v2388, %v2934
  %v2983 = vmul.f32 %v2389, %v2939
  %v2984 = vmul.f32 %v2390, %v2939
  %v2985 = vld [vmem:[%s5] sm:$0xff]
  %v2986 = vld [vmem:[%s5 + $0x8] sm:$0xff]
  %v2987 = vld [vmem:[%s5 + $0x10] sm:$0xff]
  %v2988 = vld [vmem:[%s5 + $0x18] sm:$0xff]
  %v2989 = vld [vmem:[%s5 + $0x20] sm:$0xff]
  %v2990 = vld [vmem:[%s5 + $0x28] sm:$0xff]
  %v2991 = vld [vmem:[%s5 + $0x30] sm:$0xff]
  %v2992 = vld [vmem:[%s5 + $0x38] sm:$0xff]
  %v2993 = vld [vmem:[%s5 + $0x40] sm:$0xff]
  %v2994 = vld [vmem:[%s5 + $0x48] sm:$0xff]
  %v2995 = vld [vmem:[%s5 + $0x50] sm:$0xff]
  %v2996 = vld [vmem:[%s5 + $0x58] sm:$0xff]
  %v2997 = vld [vmem:[%s5 + $0x60] sm:$0xff]
  %v2998 = vld [vmem:[%s5 + $0x68] sm:$0xff]
  %v2999 = vld [vmem:[%s5 + $0x70] sm:$0xff]
  %v3000 = vld [vmem:[%s5 + $0x78] sm:$0xff]
  %v3001 = vld [vmem:[%s5 + $0x80] sm:$0xff]
  %v3002 = vld [vmem:[%s5 + $0x88] sm:$0xff]
  %v3003 = vld [vmem:[%s5 + $0x90] sm:$0xff]
  %v3004 = vld [vmem:[%s5 + $0x98] sm:$0xff]
  %v3005 = vld [vmem:[%s5 + $0xa0] sm:$0xff]
  %v3006 = vld [vmem:[%s5 + $0xa8] sm:$0xff]
  %3008 = vset.pattern.permute.xlu0 0
  %3009 = vperm.xlu0 %3008, %v2985
  %v3010 = vpop.permute.xlu0 %3009
  %3013 = vset.pattern.permute.xlu0 0
  %3014 = vperm.xlu0 %3013, %v2986
  %v3015 = vpop.permute.xlu0 %3014
  %3018 = vset.pattern.permute.xlu0 0
  %3019 = vperm.xlu0 %3018, %v2987
  %v3020 = vpop.permute.xlu0 %3019
  %3023 = vset.pattern.permute.xlu0 0
  %3024 = vperm.xlu0 %3023, %v2988
  %v3025 = vpop.permute.xlu0 %3024
  %3028 = vset.pattern.permute.xlu0 0
  %3029 = vperm.xlu0 %3028, %v2989
  %v3030 = vpop.permute.xlu0 %3029
  %3033 = vset.pattern.permute.xlu0 0
  %3034 = vperm.xlu0 %3033, %v2990
  %v3035 = vpop.permute.xlu0 %3034
  %3038 = vset.pattern.permute.xlu0 0
  %3039 = vperm.xlu0 %3038, %v2991
  %v3040 = vpop.permute.xlu0 %3039
  %3043 = vset.pattern.permute.xlu0 0
  %3044 = vperm.xlu0 %3043, %v2992
  %v3045 = vpop.permute.xlu0 %3044
  %3048 = vset.pattern.permute.xlu0 0
  %3049 = vperm.xlu0 %3048, %v2993
  %v3050 = vpop.permute.xlu0 %3049
  %3053 = vset.pattern.permute.xlu0 0
  %3054 = vperm.xlu0 %3053, %v2994
  %v3055 = vpop.permute.xlu0 %3054
  %3058 = vset.pattern.permute.xlu0 0
  %3059 = vperm.xlu0 %3058, %v2995
  %v3060 = vpop.permute.xlu0 %3059
  %3063 = vset.pattern.permute.xlu0 0
  %3064 = vperm.xlu0 %3063, %v2996
  %v3065 = vpop.permute.xlu0 %3064
  %3068 = vset.pattern.permute.xlu0 0
  %3069 = vperm.xlu0 %3068, %v2997
  %v3070 = vpop.permute.xlu0 %3069
  %3073 = vset.pattern.permute.xlu0 0
  %3074 = vperm.xlu0 %3073, %v2998
  %v3075 = vpop.permute.xlu0 %3074
  %3078 = vset.pattern.permute.xlu0 0
  %3079 = vperm.xlu0 %3078, %v2999
  %v3080 = vpop.permute.xlu0 %3079
  %3083 = vset.pattern.permute.xlu0 0
  %3084 = vperm.xlu0 %3083, %v3000
  %v3085 = vpop.permute.xlu0 %3084
  %3088 = vset.pattern.permute.xlu0 0
  %3089 = vperm.xlu0 %3088, %v3001
  %v3090 = vpop.permute.xlu0 %3089
  %3093 = vset.pattern.permute.xlu0 0
  %3094 = vperm.xlu0 %3093, %v3002
  %v3095 = vpop.permute.xlu0 %3094
  %3098 = vset.pattern.permute.xlu0 0
  %3099 = vperm.xlu0 %3098, %v3003
  %v3100 = vpop.permute.xlu0 %3099
  %3103 = vset.pattern.permute.xlu0 0
  %3104 = vperm.xlu0 %3103, %v3004
  %v3105 = vpop.permute.xlu0 %3104
  %3108 = vset.pattern.permute.xlu0 0
  %3109 = vperm.xlu0 %3108, %v3005
  %v3110 = vpop.permute.xlu0 %3109
  %3113 = vset.pattern.permute.xlu0 0
  %3114 = vperm.xlu0 %3113, %v3006
  %v3115 = vpop.permute.xlu0 %3114
  %v3117 = vadd.f32 %v2941, %v3010
  %v3118 = vadd.f32 %v2942, %v3010
  %v3119 = vadd.f32 %v2943, %v3015
  %v3120 = vadd.f32 %v2944, %v3015
  %v3121 = vadd.f32 %v2945, %v3020
  %v3122 = vadd.f32 %v2946, %v3020
  %v3123 = vadd.f32 %v2947, %v3025
  %v3124 = vadd.f32 %v2948, %v3025
  %v3125 = vadd.f32 %v2949, %v3030
  %v3126 = vadd.f32 %v2950, %v3030
  %v3127 = vadd.f32 %v2951, %v3035
  %v3128 = vadd.f32 %v2952, %v3035
  %v3129 = vadd.f32 %v2953, %v3040
  %v3130 = vadd.f32 %v2954, %v3040
  %v3131 = vadd.f32 %v2955, %v3045
  %v3132 = vadd.f32 %v2956, %v3045
  %v3133 = vadd.f32 %v2957, %v3050
  %v3134 = vadd.f32 %v2958, %v3050
  %v3135 = vadd.f32 %v2959, %v3055
  %v3136 = vadd.f32 %v2960, %v3055
  %v3137 = vadd.f32 %v2961, %v3060
  %v3138 = vadd.f32 %v2962, %v3060
  %v3139 = vadd.f32 %v2963, %v3065
  %v3140 = vadd.f32 %v2964, %v3065
  %v3141 = vadd.f32 %v2965, %v3070
  %v3142 = vadd.f32 %v2966, %v3070
  %v3143 = vadd.f32 %v2967, %v3075
  %v3144 = vadd.f32 %v2968, %v3075
  %v3145 = vadd.f32 %v2969, %v3080
  %v3146 = vadd.f32 %v2970, %v3080
  %v3147 = vadd.f32 %v2971, %v3085
  %v3148 = vadd.f32 %v2972, %v3085
  %v3149 = vadd.f32 %v2973, %v3090
  %v3150 = vadd.f32 %v2974, %v3090
  %v3151 = vadd.f32 %v2975, %v3095
  %v3152 = vadd.f32 %v2976, %v3095
  %v3153 = vadd.f32 %v2977, %v3100
  %v3154 = vadd.f32 %v2978, %v3100
  %v3155 = vadd.f32 %v2979, %v3105
  %v3156 = vadd.f32 %v2980, %v3105
  %v3157 = vadd.f32 %v2981, %v3110
  %v3158 = vadd.f32 %v2982, %v3110
  %v3159 = vadd.f32 %v2983, %v3115
  %v3160 = vadd.f32 %v2984, %v3115
  %v3161 = vld [vmem:[%s2] sm:$0xff]
  %v3162 = vld [vmem:[%s2 + $0x8] sm:$0xff]
  %v3163 = vld [vmem:[%s2 + $0x10] sm:$0xff]
  %v3164 = vld [vmem:[%s2 + $0x18] sm:$0xff]
  %v3165 = vld [vmem:[%s2 + $0x20] sm:$0xff]
  %v3166 = vld [vmem:[%s2 + $0x28] sm:$0xff]
  %v3167 = vld [vmem:[%s2 + $0x30] sm:$0xff]
  %v3168 = vld [vmem:[%s2 + $0x38] sm:$0xff]
  %v3169 = vld [vmem:[%s2 + $0x40] sm:$0xff]
  %v3170 = vld [vmem:[%s2 + $0x48] sm:$0xff]
  %v3171 = vld [vmem:[%s2 + $0x50] sm:$0xff]
  %v3172 = vld [vmem:[%s2 + $0x58] sm:$0xff]
  %v3173 = vld [vmem:[%s2 + $0x60] sm:$0xff]
  %v3174 = vld [vmem:[%s2 + $0x68] sm:$0xff]
  %v3175 = vld [vmem:[%s2 + $0x70] sm:$0xff]
  %v3176 = vld [vmem:[%s2 + $0x78] sm:$0xff]
  %v3177 = vld [vmem:[%s2 + $0x80] sm:$0xff]
  %v3178 = vld [vmem:[%s2 + $0x88] sm:$0xff]
  %v3179 = vld [vmem:[%s2 + $0x90] sm:$0xff]
  %v3180 = vld [vmem:[%s2 + $0x98] sm:$0xff]
  %v3181 = vld [vmem:[%s2 + $0xa0] sm:$0xff]
  %v3182 = vld [vmem:[%s2 + $0xa8] sm:$0xff]
  %v3183 = vld [vmem:[%s2 + $0xb0] sm:$0xff]
  %v3184 = vld [vmem:[%s2 + $0xb8] sm:$0xff]
  %v3185 = vld [vmem:[%s2 + $0xc0] sm:$0xff]
  %v3186 = vld [vmem:[%s2 + $0xc8] sm:$0xff]
  %v3187 = vld [vmem:[%s2 + $0xd0] sm:$0xff]
  %v3188 = vld [vmem:[%s2 + $0xd8] sm:$0xff]
  %v3189 = vld [vmem:[%s2 + $0xe0] sm:$0xff]
  %v3190 = vld [vmem:[%s2 + $0xe8] sm:$0xff]
  %v3191 = vld [vmem:[%s2 + $0xf0] sm:$0xff]
  %v3192 = vld [vmem:[%s2 + $0xf8] sm:$0xff]
  %v3193 = vld [vmem:[%s2 + $0x100] sm:$0xff]
  %v3194 = vld [vmem:[%s2 + $0x108] sm:$0xff]
  %v3195 = vld [vmem:[%s2 + $0x110] sm:$0xff]
  %v3196 = vld [vmem:[%s2 + $0x118] sm:$0xff]
  %v3197 = vld [vmem:[%s2 + $0x120] sm:$0xff]
  %v3198 = vld [vmem:[%s2 + $0x128] sm:$0xff]
  %v3199 = vld [vmem:[%s2 + $0x130] sm:$0xff]
  %v3200 = vld [vmem:[%s2 + $0x138] sm:$0xff]
  %v3201 = vld [vmem:[%s2 + $0x140] sm:$0xff]
  %v3202 = vld [vmem:[%s2 + $0x148] sm:$0xff]
  %v3203 = vld [vmem:[%s2 + $0x150] sm:$0xff]
  %v3204 = vld [vmem:[%s2 + $0x158] sm:$0xff]
  %v3205 = vadd.f32 %v3117, %v3161
  %v3206 = vadd.f32 %v3118, %v3162
  %v3207 = vadd.f32 %v3119, %v3163
  %v3208 = vadd.f32 %v3120, %v3164
  %v3209 = vadd.f32 %v3121, %v3165
  %v3210 = vadd.f32 %v3122, %v3166
  %v3211 = vadd.f32 %v3123, %v3167
  %v3212 = vadd.f32 %v3124, %v3168
  %v3213 = vadd.f32 %v3125, %v3169
  %v3214 = vadd.f32 %v3126, %v3170
  %v3215 = vadd.f32 %v3127, %v3171
  %v3216 = vadd.f32 %v3128, %v3172
  %v3217 = vadd.f32 %v3129, %v3173
  %v3218 = vadd.f32 %v3130, %v3174
  %v3219 = vadd.f32 %v3131, %v3175
  %v3220 = vadd.f32 %v3132, %v3176
  %v3221 = vadd.f32 %v3133, %v3177
  %v3222 = vadd.f32 %v3134, %v3178
  %v3223 = vadd.f32 %v3135, %v3179
  %v3224 = vadd.f32 %v3136, %v3180
  %v3225 = vadd.f32 %v3137, %v3181
  %v3226 = vadd.f32 %v3138, %v3182
  %v3227 = vadd.f32 %v3139, %v3183
  %v3228 = vadd.f32 %v3140, %v3184
  %v3229 = vadd.f32 %v3141, %v3185
  %v3230 = vadd.f32 %v3142, %v3186
  %v3231 = vadd.f32 %v3143, %v3187
  %v3232 = vadd.f32 %v3144, %v3188
  %v3233 = vadd.f32 %v3145, %v3189
  %v3234 = vadd.f32 %v3146, %v3190
  %v3235 = vadd.f32 %v3147, %v3191
  %v3236 = vadd.f32 %v3148, %v3192
  %v3237 = vadd.f32 %v3149, %v3193
  %v3238 = vadd.f32 %v3150, %v3194
  %v3239 = vadd.f32 %v3151, %v3195
  %v3240 = vadd.f32 %v3152, %v3196
  %v3241 = vadd.f32 %v3153, %v3197
  %v3242 = vadd.f32 %v3154, %v3198
  %v3243 = vadd.f32 %v3155, %v3199
  %v3244 = vadd.f32 %v3156, %v3200
  %v3245 = vadd.f32 %v3157, %v3201
  %v3246 = vadd.f32 %v3158, %v3202
  %v3247 = vadd.f32 %v3159, %v3203
  %v3248 = vadd.f32 %v3160, %v3204
  %v3249 = vpack.c.bf16 %v3207, %v3205
  %v3250 = vpack.c.bf16 %v3208, %v3206
  %v3251 = vpack.c.bf16 %v3211, %v3209
  %v3252 = vpack.c.bf16 %v3212, %v3210
  %v3253 = vpack.c.bf16 %v3215, %v3213
  %v3254 = vpack.c.bf16 %v3216, %v3214
  %v3255 = vpack.c.bf16 %v3219, %v3217
  %v3256 = vpack.c.bf16 %v3220, %v3218
  %v3257 = vpack.c.bf16 %v3223, %v3221
  %v3258 = vpack.c.bf16 %v3224, %v3222
  %v3259 = vpack.c.bf16 %v3227, %v3225
  %v3260 = vpack.c.bf16 %v3228, %v3226
  %v3261 = vpack.c.bf16 %v3231, %v3229
  %v3262 = vpack.c.bf16 %v3232, %v3230
  %v3263 = vpack.c.bf16 %v3235, %v3233
  %v3264 = vpack.c.bf16 %v3236, %v3234
  %v3265 = vpack.c.bf16 %v3239, %v3237
  %v3266 = vpack.c.bf16 %v3240, %v3238
  %v3267 = vpack.c.bf16 %v3243, %v3241
  %v3268 = vpack.c.bf16 %v3244, %v3242
  %v3269 = vpack.c.bf16 %v3247, %v3245
  %v3270 = vpack.c.bf16 %v3248, %v3246
  %v3271 = vld [vmem:[%s6] sm:$0xff]
  %v3272 = vld [vmem:[%s6 + $0x8] sm:$0xff]
  %v3273 = vld [vmem:[%s6 + $0x10] sm:$0xff]
  %v3274 = vld [vmem:[%s6 + $0x18] sm:$0xff]
  %v3275 = vld [vmem:[%s6 + $0x20] sm:$0xff]
  %v3276 = vld [vmem:[%s6 + $0x28] sm:$0xff]
  %v3277 = vld [vmem:[%s6 + $0x30] sm:$0xff]
  %v3278 = vld [vmem:[%s6 + $0x38] sm:$0xff]
  %v3279 = vld [vmem:[%s6 + $0x40] sm:$0xff]
  %v3280 = vld [vmem:[%s6 + $0x48] sm:$0xff]
  %v3281 = vld [vmem:[%s6 + $0x50] sm:$0xff]
  %v3282 = vld [vmem:[%s6 + $0x58] sm:$0xff]
  %v3283 = vld [vmem:[%s6 + $0x60] sm:$0xff]
  %v3284 = vld [vmem:[%s6 + $0x68] sm:$0xff]
  %v3285 = vld [vmem:[%s6 + $0x70] sm:$0xff]
  %v3286 = vld [vmem:[%s6 + $0x78] sm:$0xff]
  %v3287 = vld [vmem:[%s6 + $0x80] sm:$0xff]
  %v3288 = vld [vmem:[%s6 + $0x88] sm:$0xff]
  %v3289 = vld [vmem:[%s6 + $0x90] sm:$0xff]
  %v3290 = vld [vmem:[%s6 + $0x98] sm:$0xff]
  %v3291 = vld [vmem:[%s6 + $0xa0] sm:$0xff]
  %v3292 = vld [vmem:[%s6 + $0xa8] sm:$0xff]
  %v3293 = vld [vmem:[%s6 + $0xb0] sm:$0xff]
  %v3294 = vld [vmem:[%s6 + $0xb8] sm:$0xff]
  %v3295 = vld [vmem:[%s6 + $0xc0] sm:$0xff]
  %v3296 = vld [vmem:[%s6 + $0xc8] sm:$0xff]
  %v3297 = vld [vmem:[%s6 + $0xd0] sm:$0xff]
  %v3298 = vld [vmem:[%s6 + $0xd8] sm:$0xff]
  %v3299 = vld [vmem:[%s6 + $0xe0] sm:$0xff]
  %v3300 = vld [vmem:[%s6 + $0xe8] sm:$0xff]
  %v3301 = vld [vmem:[%s6 + $0xf0] sm:$0xff]
  %v3302 = vld [vmem:[%s6 + $0xf8] sm:$0xff]
  %v3303 = vld [vmem:[%s6 + $0x100] sm:$0xff]
  %v3304 = vld [vmem:[%s6 + $0x108] sm:$0xff]
  %v3305 = vld [vmem:[%s6 + $0x110] sm:$0xff]
  %v3306 = vld [vmem:[%s6 + $0x118] sm:$0xff]
  %v3307 = vld [vmem:[%s6 + $0x120] sm:$0xff]
  %v3308 = vld [vmem:[%s6 + $0x128] sm:$0xff]
  %v3309 = vld [vmem:[%s6 + $0x130] sm:$0xff]
  %v3310 = vld [vmem:[%s6 + $0x138] sm:$0xff]
  %v3311 = vld [vmem:[%s6 + $0x140] sm:$0xff]
  %v3312 = vld [vmem:[%s6 + $0x148] sm:$0xff]
  %v3313 = vld [vmem:[%s6 + $0x150] sm:$0xff]
  %v3314 = vld [vmem:[%s6 + $0x158] sm:$0xff]
  %v3315 = vld [vmem:[%s6 + $0x160] sm:$0xff]
  %v3316 = vld [vmem:[%s6 + $0x168] sm:$0xff]
  %v3317 = vld [vmem:[%s6 + $0x170] sm:$0xff]
  %v3318 = vld [vmem:[%s6 + $0x178] sm:$0xff]
  %v3319 = vld [vmem:[%s6 + $0x180] sm:$0xff]
  %v3320 = vld [vmem:[%s6 + $0x188] sm:$0xff]
  %v3321 = vld [vmem:[%s6 + $0x190] sm:$0xff]
  %v3322 = vld [vmem:[%s6 + $0x198] sm:$0xff]
  %v3323 = vld [vmem:[%s6 + $0x1a0] sm:$0xff]
  %v3324 = vld [vmem:[%s6 + $0x1a8] sm:$0xff]
  %v3325 = vld [vmem:[%s6 + $0x1b0] sm:$0xff]
  %v3326 = vld [vmem:[%s6 + $0x1b8] sm:$0xff]
  %v3327 = vld [vmem:[%s6 + $0x1c0] sm:$0xff]
  %v3328 = vld [vmem:[%s6 + $0x1c8] sm:$0xff]
  %v3329 = vld [vmem:[%s6 + $0x1d0] sm:$0xff]
  %v3330 = vld [vmem:[%s6 + $0x1d8] sm:$0xff]
  %v3331 = vld [vmem:[%s6 + $0x1e0] sm:$0xff]
  %v3332 = vld [vmem:[%s6 + $0x1e8] sm:$0xff]
  %v3333 = vld [vmem:[%s6 + $0x1f0] sm:$0xff]
  %v3334 = vld [vmem:[%s6 + $0x1f8] sm:$0xff]
  %v3335 = vld [vmem:[%s6 + $0x200] sm:$0xff]
  %v3336 = vld [vmem:[%s6 + $0x208] sm:$0xff]
  %v3337 = vld [vmem:[%s6 + $0x210] sm:$0xff]
  %v3338 = vld [vmem:[%s6 + $0x218] sm:$0xff]
  %v3339 = vld [vmem:[%s6 + $0x220] sm:$0xff]
  %v3340 = vld [vmem:[%s6 + $0x228] sm:$0xff]
  %v3341 = vld [vmem:[%s6 + $0x230] sm:$0xff]
  %v3342 = vld [vmem:[%s6 + $0x238] sm:$0xff]
  %v3343 = vld [vmem:[%s6 + $0x240] sm:$0xff]
  %v3344 = vld [vmem:[%s6 + $0x248] sm:$0xff]
  %v3345 = vld [vmem:[%s6 + $0x250] sm:$0xff]
  %v3346 = vld [vmem:[%s6 + $0x258] sm:$0xff]
  %v3347 = vld [vmem:[%s6 + $0x260] sm:$0xff]
  %v3348 = vld [vmem:[%s6 + $0x268] sm:$0xff]
  %v3349 = vld [vmem:[%s6 + $0x270] sm:$0xff]
  %v3350 = vld [vmem:[%s6 + $0x278] sm:$0xff]
  %v3351 = vld [vmem:[%s6 + $0x280] sm:$0xff]
  %v3352 = vld [vmem:[%s6 + $0x288] sm:$0xff]
  %v3353 = vld [vmem:[%s6 + $0x290] sm:$0xff]
  %v3354 = vld [vmem:[%s6 + $0x298] sm:$0xff]
  %v3355 = vld [vmem:[%s6 + $0x2a0] sm:$0xff]
  %v3356 = vld [vmem:[%s6 + $0x2a8] sm:$0xff]
  %v3357 = vld [vmem:[%s6 + $0x2b0] sm:$0xff]
  %v3358 = vld [vmem:[%s6 + $0x2b8] sm:$0xff]
  %v3359 = vld [vmem:[%s6 + $0x2c0] sm:$0xff]
  %v3360 = vld [vmem:[%s6 + $0x2c8] sm:$0xff]
  %v3361 = vld [vmem:[%s6 + $0x2d0] sm:$0xff]
  %v3362 = vld [vmem:[%s6 + $0x2d8] sm:$0xff]
  %v3363 = vld [vmem:[%s6 + $0x2e0] sm:$0xff]
  %v3364 = vld [vmem:[%s6 + $0x2e8] sm:$0xff]
  %v3365 = vld [vmem:[%s6 + $0x2f0] sm:$0xff]
  %v3366 = vld [vmem:[%s6 + $0x2f8] sm:$0xff]
  %v3367 = vld [vmem:[%s6 + $0x300] sm:$0xff]
  %v3368 = vld [vmem:[%s6 + $0x308] sm:$0xff]
  %v3369 = vld [vmem:[%s6 + $0x310] sm:$0xff]
  %v3370 = vld [vmem:[%s6 + $0x318] sm:$0xff]
  %v3371 = vld [vmem:[%s6 + $0x320] sm:$0xff]
  %v3372 = vld [vmem:[%s6 + $0x328] sm:$0xff]
  %v3373 = vld [vmem:[%s6 + $0x330] sm:$0xff]
  %v3374 = vld [vmem:[%s6 + $0x338] sm:$0xff]
  %v3375 = vld [vmem:[%s6 + $0x340] sm:$0xff]
  %v3376 = vld [vmem:[%s6 + $0x348] sm:$0xff]
  %v3377 = vld [vmem:[%s6 + $0x350] sm:$0xff]
  %v3378 = vld [vmem:[%s6 + $0x358] sm:$0xff]
  %v3379 = vld [vmem:[%s6 + $0x360] sm:$0xff]
  %v3380 = vld [vmem:[%s6 + $0x368] sm:$0xff]
  %v3381 = vld [vmem:[%s6 + $0x370] sm:$0xff]
  %v3382 = vld [vmem:[%s6 + $0x378] sm:$0xff]
  %v3383 = vld [vmem:[%s6 + $0x380] sm:$0xff]
  %v3384 = vld [vmem:[%s6 + $0x388] sm:$0xff]
  %v3385 = vld [vmem:[%s6 + $0x390] sm:$0xff]
  %v3386 = vld [vmem:[%s6 + $0x398] sm:$0xff]
  %v3387 = vld [vmem:[%s6 + $0x3a0] sm:$0xff]
  %v3388 = vld [vmem:[%s6 + $0x3a8] sm:$0xff]
  %v3389 = vld [vmem:[%s6 + $0x3b0] sm:$0xff]
  %v3390 = vld [vmem:[%s6 + $0x3b8] sm:$0xff]
  %v3391 = vld [vmem:[%s6 + $0x3c0] sm:$0xff]
  %v3392 = vld [vmem:[%s6 + $0x3c8] sm:$0xff]
  %v3393 = vld [vmem:[%s6 + $0x3d0] sm:$0xff]
  %v3394 = vld [vmem:[%s6 + $0x3d8] sm:$0xff]
  %v3395 = vld [vmem:[%s6 + $0x3e0] sm:$0xff]
  %v3396 = vld [vmem:[%s6 + $0x3e8] sm:$0xff]
  %v3397 = vld [vmem:[%s6 + $0x3f0] sm:$0xff]
  %v3398 = vld [vmem:[%s6 + $0x3f8] sm:$0xff]
  %v3399 = vld [vmem:[%s6 + $0x400] sm:$0xff]
  %v3400 = vld [vmem:[%s6 + $0x408] sm:$0xff]
  %v3401 = vld [vmem:[%s6 + $0x410] sm:$0xff]
  %v3402 = vld [vmem:[%s6 + $0x418] sm:$0xff]
  %v3535 = vunpack.c.l.b16 %v3271
  %v3536 = vunpack.c.h.b16 %v3271
  %v3537 = vunpack.c.l.b16 %v3272
  %v3538 = vunpack.c.h.b16 %v3272
  %v3539 = vunpack.c.l.b16 %v3273
  %v3540 = vunpack.c.h.b16 %v3273
  %v3541 = vunpack.c.l.b16 %v3274
  %v3542 = vunpack.c.h.b16 %v3274
  %v3543 = vunpack.c.l.b16 %v3275
  %v3544 = vunpack.c.h.b16 %v3275
  %v3545 = vunpack.c.l.b16 %v3276
  %v3546 = vunpack.c.h.b16 %v3276
  %v3547 = vunpack.c.l.b16 %v3277
  %v3548 = vunpack.c.h.b16 %v3277
  %v3549 = vunpack.c.l.b16 %v3278
  %v3550 = vunpack.c.h.b16 %v3278
  %v3551 = vunpack.c.l.b16 %v3279
  %v3552 = vunpack.c.h.b16 %v3279
  %v3553 = vunpack.c.l.b16 %v3280
  %v3554 = vunpack.c.h.b16 %v3280
  %v3555 = vunpack.c.l.b16 %v3281
  %v3556 = vunpack.c.h.b16 %v3281
  %v3557 = vunpack.c.l.b16 %v3282
  %v3558 = vunpack.c.h.b16 %v3282
  %v3559 = vunpack.c.l.b16 %v3283
  %v3560 = vunpack.c.h.b16 %v3283
  %v3561 = vunpack.c.l.b16 %v3284
  %v3562 = vunpack.c.h.b16 %v3284
  %v3563 = vunpack.c.l.b16 %v3285
  %v3564 = vunpack.c.h.b16 %v3285
  %v3565 = vunpack.c.l.b16 %v3286
  %v3566 = vunpack.c.h.b16 %v3286
  %v3567 = vunpack.c.l.b16 %v3287
  %v3568 = vunpack.c.h.b16 %v3287
  %v3569 = vunpack.c.l.b16 %v3288
  %v3570 = vunpack.c.h.b16 %v3288
  %v3571 = vunpack.c.l.b16 %v3289
  %v3572 = vunpack.c.h.b16 %v3289
  %v3573 = vunpack.c.l.b16 %v3290
  %v3574 = vunpack.c.h.b16 %v3290
  %v3575 = vunpack.c.l.b16 %v3291
  %v3576 = vunpack.c.h.b16 %v3291
  %v3577 = vunpack.c.l.b16 %v3292
  %v3578 = vunpack.c.h.b16 %v3292
  %v3579 = vunpack.c.l.b16 %v3293
  %v3580 = vunpack.c.h.b16 %v3293
  %v3581 = vunpack.c.l.b16 %v3294
  %v3582 = vunpack.c.h.b16 %v3294
  %v3583 = vunpack.c.l.b16 %v3295
  %v3584 = vunpack.c.h.b16 %v3295
  %v3585 = vunpack.c.l.b16 %v3296
  %v3586 = vunpack.c.h.b16 %v3296
  %v3587 = vunpack.c.l.b16 %v3297
  %v3588 = vunpack.c.h.b16 %v3297
  %v3589 = vunpack.c.l.b16 %v3298
  %v3590 = vunpack.c.h.b16 %v3298
  %v3591 = vunpack.c.l.b16 %v3299
  %v3592 = vunpack.c.h.b16 %v3299
  %v3593 = vunpack.c.l.b16 %v3300
  %v3594 = vunpack.c.h.b16 %v3300
  %v3595 = vunpack.c.l.b16 %v3301
  %v3596 = vunpack.c.h.b16 %v3301
  %v3597 = vunpack.c.l.b16 %v3302
  %v3598 = vunpack.c.h.b16 %v3302
  %v3599 = vunpack.c.l.b16 %v3303
  %v3600 = vunpack.c.h.b16 %v3303
  %v3601 = vunpack.c.l.b16 %v3304
  %v3602 = vunpack.c.h.b16 %v3304
  %v3603 = vunpack.c.l.b16 %v3305
  %v3604 = vunpack.c.h.b16 %v3305
  %v3605 = vunpack.c.l.b16 %v3306
  %v3606 = vunpack.c.h.b16 %v3306
  %v3607 = vunpack.c.l.b16 %v3307
  %v3608 = vunpack.c.h.b16 %v3307
  %v3609 = vunpack.c.l.b16 %v3308
  %v3610 = vunpack.c.h.b16 %v3308
  %v3611 = vunpack.c.l.b16 %v3309
  %v3612 = vunpack.c.h.b16 %v3309
  %v3613 = vunpack.c.l.b16 %v3310
  %v3614 = vunpack.c.h.b16 %v3310
  %v3615 = vunpack.c.l.b16 %v3311
  %v3616 = vunpack.c.h.b16 %v3311
  %v3617 = vunpack.c.l.b16 %v3312
  %v3618 = vunpack.c.h.b16 %v3312
  %v3619 = vunpack.c.l.b16 %v3313
  %v3620 = vunpack.c.h.b16 %v3313
  %v3621 = vunpack.c.l.b16 %v3314
  %v3622 = vunpack.c.h.b16 %v3314
  %v3623 = vunpack.c.l.b16 %v3315
  %v3624 = vunpack.c.h.b16 %v3315
  %v3625 = vunpack.c.l.b16 %v3316
  %v3626 = vunpack.c.h.b16 %v3316
  %v3627 = vunpack.c.l.b16 %v3317
  %v3628 = vunpack.c.h.b16 %v3317
  %v3629 = vunpack.c.l.b16 %v3318
  %v3630 = vunpack.c.h.b16 %v3318
  %v3631 = vunpack.c.l.b16 %v3319
  %v3632 = vunpack.c.h.b16 %v3319
  %v3633 = vunpack.c.l.b16 %v3320
  %v3634 = vunpack.c.h.b16 %v3320
  %v3635 = vunpack.c.l.b16 %v3321
  %v3636 = vunpack.c.h.b16 %v3321
  %v3637 = vunpack.c.l.b16 %v3322
  %v3638 = vunpack.c.h.b16 %v3322
  %v3639 = vunpack.c.l.b16 %v3323
  %v3640 = vunpack.c.h.b16 %v3323
  %v3641 = vunpack.c.l.b16 %v3324
  %v3642 = vunpack.c.h.b16 %v3324
  %v3643 = vunpack.c.l.b16 %v3325
  %v3644 = vunpack.c.h.b16 %v3325
  %v3645 = vunpack.c.l.b16 %v3326
  %v3646 = vunpack.c.h.b16 %v3326
  %v3647 = vunpack.c.l.b16 %v3327
  %v3648 = vunpack.c.h.b16 %v3327
  %v3649 = vunpack.c.l.b16 %v3328
  %v3650 = vunpack.c.h.b16 %v3328
  %v3651 = vunpack.c.l.b16 %v3329
  %v3652 = vunpack.c.h.b16 %v3329
  %v3653 = vunpack.c.l.b16 %v3330
  %v3654 = vunpack.c.h.b16 %v3330
  %v3655 = vunpack.c.l.b16 %v3331
  %v3656 = vunpack.c.h.b16 %v3331
  %v3657 = vunpack.c.l.b16 %v3332
  %v3658 = vunpack.c.h.b16 %v3332
  %v3659 = vunpack.c.l.b16 %v3333
  %v3660 = vunpack.c.h.b16 %v3333
  %v3661 = vunpack.c.l.b16 %v3334
  %v3662 = vunpack.c.h.b16 %v3334
  %v3663 = vunpack.c.l.b16 %v3335
  %v3664 = vunpack.c.h.b16 %v3335
  %v3665 = vunpack.c.l.b16 %v3336
  %v3666 = vunpack.c.h.b16 %v3336
  %v3667 = vunpack.c.l.b16 %v3337
  %v3668 = vunpack.c.h.b16 %v3337
  %v3669 = vunpack.c.l.b16 %v3338
  %v3670 = vunpack.c.h.b16 %v3338
  %v3671 = vunpack.c.l.b16 %v3339
  %v3672 = vunpack.c.h.b16 %v3339
  %v3673 = vunpack.c.l.b16 %v3340
  %v3674 = vunpack.c.h.b16 %v3340
  %v3675 = vunpack.c.l.b16 %v3341
  %v3676 = vunpack.c.h.b16 %v3341
  %v3677 = vunpack.c.l.b16 %v3342
  %v3678 = vunpack.c.h.b16 %v3342
  %v3679 = vunpack.c.l.b16 %v3343
  %v3680 = vunpack.c.h.b16 %v3343
  %v3681 = vunpack.c.l.b16 %v3344
  %v3682 = vunpack.c.h.b16 %v3344
  %v3683 = vunpack.c.l.b16 %v3345
  %v3684 = vunpack.c.h.b16 %v3345
  %v3685 = vunpack.c.l.b16 %v3346
  %v3686 = vunpack.c.h.b16 %v3346
  %v3687 = vunpack.c.l.b16 %v3347
  %v3688 = vunpack.c.h.b16 %v3347
  %v3689 = vunpack.c.l.b16 %v3348
  %v3690 = vunpack.c.h.b16 %v3348
  %v3691 = vunpack.c.l.b16 %v3349
  %v3692 = vunpack.c.h.b16 %v3349
  %v3693 = vunpack.c.l.b16 %v3350
  %v3694 = vunpack.c.h.b16 %v3350
  %v3695 = vunpack.c.l.b16 %v3351
  %v3696 = vunpack.c.h.b16 %v3351
  %v3697 = vunpack.c.l.b16 %v3352
  %v3698 = vunpack.c.h.b16 %v3352
  %v3699 = vunpack.c.l.b16 %v3353
  %v3700 = vunpack.c.h.b16 %v3353
  %v3701 = vunpack.c.l.b16 %v3354
  %v3702 = vunpack.c.h.b16 %v3354
  %v3703 = vunpack.c.l.b16 %v3355
  %v3704 = vunpack.c.h.b16 %v3355
  %v3705 = vunpack.c.l.b16 %v3356
  %v3706 = vunpack.c.h.b16 %v3356
  %v3707 = vunpack.c.l.b16 %v3357
  %v3708 = vunpack.c.h.b16 %v3357
  %v3709 = vunpack.c.l.b16 %v3358
  %v3710 = vunpack.c.h.b16 %v3358
  %v3711 = vunpack.c.l.b16 %v3359
  %v3712 = vunpack.c.h.b16 %v3359
  %v3713 = vunpack.c.l.b16 %v3360
  %v3714 = vunpack.c.h.b16 %v3360
  %v3715 = vunpack.c.l.b16 %v3361
  %v3716 = vunpack.c.h.b16 %v3361
  %v3717 = vunpack.c.l.b16 %v3362
  %v3718 = vunpack.c.h.b16 %v3362
  %v3719 = vunpack.c.l.b16 %v3363
  %v3720 = vunpack.c.h.b16 %v3363
  %v3721 = vunpack.c.l.b16 %v3364
  %v3722 = vunpack.c.h.b16 %v3364
  %v3723 = vunpack.c.l.b16 %v3365
  %v3724 = vunpack.c.h.b16 %v3365
  %v3725 = vunpack.c.l.b16 %v3366
  %v3726 = vunpack.c.h.b16 %v3366
  %v3727 = vunpack.c.l.b16 %v3367
  %v3728 = vunpack.c.h.b16 %v3367
  %v3729 = vunpack.c.l.b16 %v3368
  %v3730 = vunpack.c.h.b16 %v3368
  %v3731 = vunpack.c.l.b16 %v3369
  %v3732 = vunpack.c.h.b16 %v3369
  %v3733 = vunpack.c.l.b16 %v3370
  %v3734 = vunpack.c.h.b16 %v3370
  %v3735 = vunpack.c.l.b16 %v3371
  %v3736 = vunpack.c.h.b16 %v3371
  %v3737 = vunpack.c.l.b16 %v3372
  %v3738 = vunpack.c.h.b16 %v3372
  %v3739 = vunpack.c.l.b16 %v3373
  %v3740 = vunpack.c.h.b16 %v3373
  %v3741 = vunpack.c.l.b16 %v3374
  %v3742 = vunpack.c.h.b16 %v3374
  %v3743 = vunpack.c.l.b16 %v3375
  %v3744 = vunpack.c.h.b16 %v3375
  %v3745 = vunpack.c.l.b16 %v3376
  %v3746 = vunpack.c.h.b16 %v3376
  %v3747 = vunpack.c.l.b16 %v3377
  %v3748 = vunpack.c.h.b16 %v3377
  %v3749 = vunpack.c.l.b16 %v3378
  %v3750 = vunpack.c.h.b16 %v3378
  %v3751 = vunpack.c.l.b16 %v3379
  %v3752 = vunpack.c.h.b16 %v3379
  %v3753 = vunpack.c.l.b16 %v3380
  %v3754 = vunpack.c.h.b16 %v3380
  %v3755 = vunpack.c.l.b16 %v3381
  %v3756 = vunpack.c.h.b16 %v3381
  %v3757 = vunpack.c.l.b16 %v3382
  %v3758 = vunpack.c.h.b16 %v3382
  %v3759 = vunpack.c.l.b16 %v3383
  %v3760 = vunpack.c.h.b16 %v3383
  %v3761 = vunpack.c.l.b16 %v3384
  %v3762 = vunpack.c.h.b16 %v3384
  %v3763 = vunpack.c.l.b16 %v3385
  %v3764 = vunpack.c.h.b16 %v3385
  %v3765 = vunpack.c.l.b16 %v3386
  %v3766 = vunpack.c.h.b16 %v3386
  %v3767 = vunpack.c.l.b16 %v3387
  %v3768 = vunpack.c.h.b16 %v3387
  %v3769 = vunpack.c.l.b16 %v3388
  %v3770 = vunpack.c.h.b16 %v3388
  %v3771 = vunpack.c.l.b16 %v3389
  %v3772 = vunpack.c.h.b16 %v3389
  %v3773 = vunpack.c.l.b16 %v3390
  %v3774 = vunpack.c.h.b16 %v3390
  %v3775 = vunpack.c.l.b16 %v3391
  %v3776 = vunpack.c.h.b16 %v3391
  %v3777 = vunpack.c.l.b16 %v3392
  %v3778 = vunpack.c.h.b16 %v3392
  %v3779 = vunpack.c.l.b16 %v3393
  %v3780 = vunpack.c.h.b16 %v3393
  %v3781 = vunpack.c.l.b16 %v3394
  %v3782 = vunpack.c.h.b16 %v3394
  %v3783 = vunpack.c.l.b16 %v3395
  %v3784 = vunpack.c.h.b16 %v3395
  %v3785 = vunpack.c.l.b16 %v3396
  %v3786 = vunpack.c.h.b16 %v3396
  %v3787 = vunpack.c.l.b16 %v3397
  %v3788 = vunpack.c.h.b16 %v3397
  %v3789 = vunpack.c.l.b16 %v3398
  %v3790 = vunpack.c.h.b16 %v3398
  %v3791 = vunpack.c.l.b16 %v3399
  %v3792 = vunpack.c.h.b16 %v3399
  %v3793 = vunpack.c.l.b16 %v3400
  %v3794 = vunpack.c.h.b16 %v3400
  %v3795 = vunpack.c.l.b16 %v3401
  %v3796 = vunpack.c.h.b16 %v3401
  %v3797 = vunpack.c.l.b16 %v3402
  %v3798 = vunpack.c.h.b16 %v3402
  %v3799 = vpack.c.b16 %v3537, %v3535
  %v3800 = vpack.c.b16 %v3538, %v3536
  %v3801 = vpack.c.b16 %v3541, %v3539
  %v3802 = vpack.c.b16 %v3542, %v3540
  %v3803 = vpack.c.b16 %v3545, %v3543
  %v3804 = vpack.c.b16 %v3546, %v3544
  %v3805 = vpack.c.b16 %v3549, %v3547
  %v3806 = vpack.c.b16 %v3550, %v3548
  %v3807 = vpack.c.b16 %v3553, %v3551
  %v3808 = vpack.c.b16 %v3554, %v3552
  %v3809 = vpack.c.b16 %v3557, %v3555
  %v3810 = vpack.c.b16 %v3558, %v3556
  %v3811 = vpack.c.b16 %v3561, %v3559
  %v3812 = vpack.c.b16 %v3562, %v3560
  %v3813 = vpack.c.b16 %v3565, %v3563
  %v3814 = vpack.c.b16 %v3566, %v3564
  %v3815 = vpack.c.b16 %v3569, %v3567
  %v3816 = vpack.c.b16 %v3570, %v3568
  %v3817 = vpack.c.b16 %v3573, %v3571
  %v3818 = vpack.c.b16 %v3574, %v3572
  %v3819 = vpack.c.b16 %v3577, %v3575
  %v3820 = vpack.c.b16 %v3578, %v3576
  %v3821 = vpack.c.b16 %v3581, %v3579
  %v3822 = vpack.c.b16 %v3582, %v3580
  %v3823 = vpack.c.b16 %v3585, %v3583
  %v3824 = vpack.c.b16 %v3586, %v3584
  %v3825 = vpack.c.b16 %v3589, %v3587
  %v3826 = vpack.c.b16 %v3590, %v3588
  %v3827 = vpack.c.b16 %v3593, %v3591
  %v3828 = vpack.c.b16 %v3594, %v3592
  %v3829 = vpack.c.b16 %v3597, %v3595
  %v3830 = vpack.c.b16 %v3598, %v3596
  %v3831 = vpack.c.b16 %v3601, %v3599
  %v3832 = vpack.c.b16 %v3602, %v3600
  %v3833 = vpack.c.b16 %v3605, %v3603
  %v3834 = vpack.c.b16 %v3606, %v3604
  %v3835 = vpack.c.b16 %v3609, %v3607
  %v3836 = vpack.c.b16 %v3610, %v3608
  %v3837 = vpack.c.b16 %v3613, %v3611
  %v3838 = vpack.c.b16 %v3614, %v3612
  %v3839 = vpack.c.b16 %v3617, %v3615
  %v3840 = vpack.c.b16 %v3618, %v3616
  %v3841 = vpack.c.b16 %v3621, %v3619
  %v3842 = vpack.c.b16 %v3622, %v3620
  %v3843 = vpack.c.b16 %v3625, %v3623
  %v3844 = vpack.c.b16 %v3626, %v3624
  %v3845 = vpack.c.b16 %v3629, %v3627
  %v3846 = vpack.c.b16 %v3630, %v3628
  %v3847 = vpack.c.b16 %v3633, %v3631
  %v3848 = vpack.c.b16 %v3634, %v3632
  %v3849 = vpack.c.b16 %v3637, %v3635
  %v3850 = vpack.c.b16 %v3638, %v3636
  %v3851 = vpack.c.b16 %v3641, %v3639
  %v3852 = vpack.c.b16 %v3642, %v3640
  %v3853 = vpack.c.b16 %v3645, %v3643
  %v3854 = vpack.c.b16 %v3646, %v3644
  %v3855 = vpack.c.b16 %v3649, %v3647
  %v3856 = vpack.c.b16 %v3650, %v3648
  %v3857 = vpack.c.b16 %v3653, %v3651
  %v3858 = vpack.c.b16 %v3654, %v3652
  %v3859 = vpack.c.b16 %v3657, %v3655
  %v3860 = vpack.c.b16 %v3658, %v3656
  %v3861 = vpack.c.b16 %v3661, %v3659
  %v3862 = vpack.c.b16 %v3662, %v3660
  %v3863 = vpack.c.b16 %v3665, %v3663
  %v3864 = vpack.c.b16 %v3666, %v3664
  %v3865 = vpack.c.b16 %v3669, %v3667
  %v3866 = vpack.c.b16 %v3670, %v3668
  %v3867 = vpack.c.b16 %v3673, %v3671
  %v3868 = vpack.c.b16 %v3674, %v3672
  %v3869 = vpack.c.b16 %v3677, %v3675
  %v3870 = vpack.c.b16 %v3678, %v3676
  %v3871 = vpack.c.b16 %v3681, %v3679
  %v3872 = vpack.c.b16 %v3682, %v3680
  %v3873 = vpack.c.b16 %v3685, %v3683
  %v3874 = vpack.c.b16 %v3686, %v3684
  %v3875 = vpack.c.b16 %v3689, %v3687
  %v3876 = vpack.c.b16 %v3690, %v3688
  %v3877 = vpack.c.b16 %v3693, %v3691
  %v3878 = vpack.c.b16 %v3694, %v3692
  %v3879 = vpack.c.b16 %v3697, %v3695
  %v3880 = vpack.c.b16 %v3698, %v3696
  %v3881 = vpack.c.b16 %v3701, %v3699
  %v3882 = vpack.c.b16 %v3702, %v3700
  %v3883 = vpack.c.b16 %v3705, %v3703
  %v3884 = vpack.c.b16 %v3706, %v3704
  %v3885 = vpack.c.b16 %v3709, %v3707
  %v3886 = vpack.c.b16 %v3710, %v3708
  %v3887 = vpack.c.b16 %v3713, %v3711
  %v3888 = vpack.c.b16 %v3714, %v3712
  %v3889 = vpack.c.b16 %v3717, %v3715
  %v3890 = vpack.c.b16 %v3718, %v3716
  %v3891 = vpack.c.b16 %v3721, %v3719
  %v3892 = vpack.c.b16 %v3722, %v3720
  %v3893 = vpack.c.b16 %v3725, %v3723
  %v3894 = vpack.c.b16 %v3726, %v3724
  %v3895 = vpack.c.b16 %v3729, %v3727
  %v3896 = vpack.c.b16 %v3730, %v3728
  %v3897 = vpack.c.b16 %v3733, %v3731
  %v3898 = vpack.c.b16 %v3734, %v3732
  %v3899 = vpack.c.b16 %v3737, %v3735
  %v3900 = vpack.c.b16 %v3738, %v3736
  %v3901 = vpack.c.b16 %v3741, %v3739
  %v3902 = vpack.c.b16 %v3742, %v3740
  %v3903 = vpack.c.b16 %v3745, %v3743
  %v3904 = vpack.c.b16 %v3746, %v3744
  %v3905 = vpack.c.b16 %v3749, %v3747
  %v3906 = vpack.c.b16 %v3750, %v3748
  %v3907 = vpack.c.b16 %v3753, %v3751
  %v3908 = vpack.c.b16 %v3754, %v3752
  %v3909 = vpack.c.b16 %v3757, %v3755
  %v3910 = vpack.c.b16 %v3758, %v3756
  %v3911 = vpack.c.b16 %v3761, %v3759
  %v3912 = vpack.c.b16 %v3762, %v3760
  %v3913 = vpack.c.b16 %v3765, %v3763
  %v3914 = vpack.c.b16 %v3766, %v3764
  %v3915 = vpack.c.b16 %v3769, %v3767
  %v3916 = vpack.c.b16 %v3770, %v3768
  %v3917 = vpack.c.b16 %v3773, %v3771
  %v3918 = vpack.c.b16 %v3774, %v3772
  %v3919 = vpack.c.b16 %v3777, %v3775
  %v3920 = vpack.c.b16 %v3778, %v3776
  %v3921 = vpack.c.b16 %v3781, %v3779
  %v3922 = vpack.c.b16 %v3782, %v3780
  %v3923 = vpack.c.b16 %v3785, %v3783
  %v3924 = vpack.c.b16 %v3786, %v3784
  %v3925 = vpack.c.b16 %v3789, %v3787
  %v3926 = vpack.c.b16 %v3790, %v3788
  %v3927 = vpack.c.b16 %v3793, %v3791
  %v3928 = vpack.c.b16 %v3794, %v3792
  %v3929 = vpack.c.b16 %v3797, %v3795
  %v3930 = vpack.c.b16 %v3798, %v3796
  %vm3997 = vcmask 392192
  %v3999 = vsel %vm3997, %v3800, 0
  %v4002 = vsel %vm3997, %v3802, 0
  %v4005 = vsel %vm3997, %v3804, 0
  %v4008 = vsel %vm3997, %v3806, 0
  %v4011 = vsel %vm3997, %v3808, 0
  %v4014 = vsel %vm3997, %v3810, 0
  %v4017 = vsel %vm3997, %v3812, 0
  %v4020 = vsel %vm3997, %v3814, 0
  %v4023 = vsel %vm3997, %v3816, 0
  %v4026 = vsel %vm3997, %v3818, 0
  %v4029 = vsel %vm3997, %v3820, 0
  %v4032 = vsel %vm3997, %v3822, 0
  %v4035 = vsel %vm3997, %v3824, 0
  %v4038 = vsel %vm3997, %v3826, 0
  %v4041 = vsel %vm3997, %v3828, 0
  %v4044 = vsel %vm3997, %v3830, 0
  %v4047 = vsel %vm3997, %v3832, 0
  %v4050 = vsel %vm3997, %v3834, 0
  %v4053 = vsel %vm3997, %v3836, 0
  %v4056 = vsel %vm3997, %v3838, 0
  %v4059 = vsel %vm3997, %v3840, 0
  %v4062 = vsel %vm3997, %v3842, 0
  %v4065 = vsel %vm3997, %v3844, 0
  %v4068 = vsel %vm3997, %v3846, 0
  %v4071 = vsel %vm3997, %v3848, 0
  %v4074 = vsel %vm3997, %v3850, 0
  %v4077 = vsel %vm3997, %v3852, 0
  %v4080 = vsel %vm3997, %v3854, 0
  %v4083 = vsel %vm3997, %v3856, 0
  %v4086 = vsel %vm3997, %v3858, 0
  %v4089 = vsel %vm3997, %v3860, 0
  %v4092 = vsel %vm3997, %v3862, 0
  %v4095 = vsel %vm3997, %v3864, 0
  %v4098 = vsel %vm3997, %v3866, 0
  %v4101 = vsel %vm3997, %v3868, 0
  %v4104 = vsel %vm3997, %v3870, 0
  %v4107 = vsel %vm3997, %v3872, 0
  %v4110 = vsel %vm3997, %v3874, 0
  %v4113 = vsel %vm3997, %v3876, 0
  %v4116 = vsel %vm3997, %v3878, 0
  %v4119 = vsel %vm3997, %v3880, 0
  %v4122 = vsel %vm3997, %v3882, 0
  %v4125 = vsel %vm3997, %v3884, 0
  %v4128 = vsel %vm3997, %v3886, 0
  %v4131 = vsel %vm3997, %v3888, 0
  %v4134 = vsel %vm3997, %v3890, 0
  %v4137 = vsel %vm3997, %v3892, 0
  %v4140 = vsel %vm3997, %v3894, 0
  %v4143 = vsel %vm3997, %v3896, 0
  %v4146 = vsel %vm3997, %v3898, 0
  %v4149 = vsel %vm3997, %v3900, 0
  %v4152 = vsel %vm3997, %v3902, 0
  %v4155 = vsel %vm3997, %v3904, 0
  %v4158 = vsel %vm3997, %v3906, 0
  %v4161 = vsel %vm3997, %v3908, 0
  %v4164 = vsel %vm3997, %v3910, 0
  %v4167 = vsel %vm3997, %v3912, 0
  %v4170 = vsel %vm3997, %v3914, 0
  %v4173 = vsel %vm3997, %v3916, 0
  %v4176 = vsel %vm3997, %v3918, 0
  %v4179 = vsel %vm3997, %v3920, 0
  %v4182 = vsel %vm3997, %v3922, 0
  %v4185 = vsel %vm3997, %v3924, 0
  %v4188 = vsel %vm3997, %v3926, 0
  %v4191 = vsel %vm3997, %v3928, 0
  %v4194 = vsel %vm3997, %v3930, 0
  %4196 = vmatpush.bf16.msra.mxu0 %v3263
  %4197 = vmatpush.bf16.msra.mxu0 %v3261
  %4198 = vmatpush.bf16.msra.mxu0 %v3259
  %4199 = vmatpush.bf16.msra.mxu0 %v3257
  %4200 = vmatpush.bf16.msra.mxu0 %v3255
  %4201 = vmatpush.bf16.msra.mxu0 %v3253
  %4202 = vmatpush.bf16.msra.mxu0 %v3251
  %4203 = vmatpush.bf16.msra.mxu0 %v3249
  %4204 = vmatmul.bf16.gmra.mxu0 %v3799
  %v4205 = vpop.f32.mrf.mxu0
  %v4206 = vadd.f32 0.0, %v4205
  %v4207 = vpop.f32.mrf.mxu0
  %v4208 = vadd.f32 0.0, %v4207
  %4209 = vmatmul.bf16.gmra.mxu0 %v3801
  %v4210 = vpop.f32.mrf.mxu0
  %v4211 = vadd.f32 0.0, %v4210
  %v4212 = vpop.f32.mrf.mxu0
  %v4213 = vadd.f32 0.0, %v4212
  %4214 = vmatmul.bf16.gmra.mxu0 %v3803
  %v4215 = vpop.f32.mrf.mxu0
  %v4216 = vadd.f32 0.0, %v4215
  %v4217 = vpop.f32.mrf.mxu0
  %v4218 = vadd.f32 0.0, %v4217
  %4219 = vmatmul.bf16.gmra.mxu0 %v3805
  %v4220 = vpop.f32.mrf.mxu0
  %v4221 = vadd.f32 0.0, %v4220
  %v4222 = vpop.f32.mrf.mxu0
  %v4223 = vadd.f32 0.0, %v4222
  %4224 = vmatmul.bf16.gmra.mxu0 %v3807
  %v4225 = vpop.f32.mrf.mxu0
  %v4226 = vadd.f32 0.0, %v4225
  %v4227 = vpop.f32.mrf.mxu0
  %v4228 = vadd.f32 0.0, %v4227
  %4229 = vmatmul.bf16.gmra.mxu0 %v3809
  %v4230 = vpop.f32.mrf.mxu0
  %v4231 = vadd.f32 0.0, %v4230
  %v4232 = vpop.f32.mrf.mxu0
  %v4233 = vadd.f32 0.0, %v4232
  %4234 = vmatmul.bf16.gmra.mxu0 %v3811
  %v4235 = vpop.f32.mrf.mxu0
  %v4236 = vadd.f32 0.0, %v4235
  %v4237 = vpop.f32.mrf.mxu0
  %v4238 = vadd.f32 0.0, %v4237
  %4239 = vmatmul.bf16.gmra.mxu0 %v3813
  %v4240 = vpop.f32.mrf.mxu0
  %v4241 = vadd.f32 0.0, %v4240
  %v4242 = vpop.f32.mrf.mxu0
  %v4243 = vadd.f32 0.0, %v4242
  %4244 = vmatmul.bf16.gmra.mxu0 %v3815
  %v4245 = vpop.f32.mrf.mxu0
  %v4246 = vadd.f32 0.0, %v4245
  %v4247 = vpop.f32.mrf.mxu0
  %v4248 = vadd.f32 0.0, %v4247
  %4249 = vmatmul.bf16.gmra.mxu0 %v3817
  %v4250 = vpop.f32.mrf.mxu0
  %v4251 = vadd.f32 0.0, %v4250
  %v4252 = vpop.f32.mrf.mxu0
  %v4253 = vadd.f32 0.0, %v4252
  %4254 = vmatmul.bf16.gmra.mxu0 %v3819
  %v4255 = vpop.f32.mrf.mxu0
  %v4256 = vadd.f32 0.0, %v4255
  %v4257 = vpop.f32.mrf.mxu0
  %v4258 = vadd.f32 0.0, %v4257
  %4259 = vmatmul.bf16.gmra.mxu0 %v3821
  %v4260 = vpop.f32.mrf.mxu0
  %v4261 = vadd.f32 0.0, %v4260
  %v4262 = vpop.f32.mrf.mxu0
  %v4263 = vadd.f32 0.0, %v4262
  %4264 = vmatmul.bf16.gmra.mxu0 %v3823
  %v4265 = vpop.f32.mrf.mxu0
  %v4266 = vadd.f32 0.0, %v4265
  %v4267 = vpop.f32.mrf.mxu0
  %v4268 = vadd.f32 0.0, %v4267
  %4269 = vmatmul.bf16.gmra.mxu0 %v3825
  %v4270 = vpop.f32.mrf.mxu0
  %v4271 = vadd.f32 0.0, %v4270
  %v4272 = vpop.f32.mrf.mxu0
  %v4273 = vadd.f32 0.0, %v4272
  %4274 = vmatmul.bf16.gmra.mxu0 %v3827
  %v4275 = vpop.f32.mrf.mxu0
  %v4276 = vadd.f32 0.0, %v4275
  %v4277 = vpop.f32.mrf.mxu0
  %v4278 = vadd.f32 0.0, %v4277
  %4279 = vmatmul.bf16.gmra.mxu0 %v3829
  %v4280 = vpop.f32.mrf.mxu0
  %v4281 = vadd.f32 0.0, %v4280
  %v4282 = vpop.f32.mrf.mxu0
  %v4283 = vadd.f32 0.0, %v4282
  %4284 = vmatmul.bf16.gmra.mxu0 %v3831
  %v4285 = vpop.f32.mrf.mxu0
  %v4286 = vadd.f32 0.0, %v4285
  %v4287 = vpop.f32.mrf.mxu0
  %v4288 = vadd.f32 0.0, %v4287
  %4289 = vmatmul.bf16.gmra.mxu0 %v3833
  %v4290 = vpop.f32.mrf.mxu0
  %v4291 = vadd.f32 0.0, %v4290
  %v4292 = vpop.f32.mrf.mxu0
  %v4293 = vadd.f32 0.0, %v4292
  %4294 = vmatmul.bf16.gmra.mxu0 %v3835
  %v4295 = vpop.f32.mrf.mxu0
  %v4296 = vadd.f32 0.0, %v4295
  %v4297 = vpop.f32.mrf.mxu0
  %v4298 = vadd.f32 0.0, %v4297
  %4299 = vmatmul.bf16.gmra.mxu0 %v3837
  %v4300 = vpop.f32.mrf.mxu0
  %v4301 = vadd.f32 0.0, %v4300
  %v4302 = vpop.f32.mrf.mxu0
  %v4303 = vadd.f32 0.0, %v4302
  %4304 = vmatmul.bf16.gmra.mxu0 %v3839
  %v4305 = vpop.f32.mrf.mxu0
  %v4306 = vadd.f32 0.0, %v4305
  %v4307 = vpop.f32.mrf.mxu0
  %v4308 = vadd.f32 0.0, %v4307
  %4309 = vmatmul.bf16.gmra.mxu0 %v3841
  %v4310 = vpop.f32.mrf.mxu0
  %v4311 = vadd.f32 0.0, %v4310
  %v4312 = vpop.f32.mrf.mxu0
  %v4313 = vadd.f32 0.0, %v4312
  %4314 = vmatmul.bf16.gmra.mxu0 %v3843
  %v4315 = vpop.f32.mrf.mxu0
  %v4316 = vadd.f32 0.0, %v4315
  %v4317 = vpop.f32.mrf.mxu0
  %v4318 = vadd.f32 0.0, %v4317
  %4319 = vmatmul.bf16.gmra.mxu0 %v3845
  %v4320 = vpop.f32.mrf.mxu0
  %v4321 = vadd.f32 0.0, %v4320
  %v4322 = vpop.f32.mrf.mxu0
  %v4323 = vadd.f32 0.0, %v4322
  %4324 = vmatmul.bf16.gmra.mxu0 %v3847
  %v4325 = vpop.f32.mrf.mxu0
  %v4326 = vadd.f32 0.0, %v4325
  %v4327 = vpop.f32.mrf.mxu0
  %v4328 = vadd.f32 0.0, %v4327
  %4329 = vmatmul.bf16.gmra.mxu0 %v3849
  %v4330 = vpop.f32.mrf.mxu0
  %v4331 = vadd.f32 0.0, %v4330
  %v4332 = vpop.f32.mrf.mxu0
  %v4333 = vadd.f32 0.0, %v4332
  %4334 = vmatmul.bf16.gmra.mxu0 %v3851
  %v4335 = vpop.f32.mrf.mxu0
  %v4336 = vadd.f32 0.0, %v4335
  %v4337 = vpop.f32.mrf.mxu0
  %v4338 = vadd.f32 0.0, %v4337
  %4339 = vmatmul.bf16.gmra.mxu0 %v3853
  %v4340 = vpop.f32.mrf.mxu0
  %v4341 = vadd.f32 0.0, %v4340
  %v4342 = vpop.f32.mrf.mxu0
  %v4343 = vadd.f32 0.0, %v4342
  %4344 = vmatmul.bf16.gmra.mxu0 %v3855
  %v4345 = vpop.f32.mrf.mxu0
  %v4346 = vadd.f32 0.0, %v4345
  %v4347 = vpop.f32.mrf.mxu0
  %v4348 = vadd.f32 0.0, %v4347
  %4349 = vmatmul.bf16.gmra.mxu0 %v3857
  %v4350 = vpop.f32.mrf.mxu0
  %v4351 = vadd.f32 0.0, %v4350
  %v4352 = vpop.f32.mrf.mxu0
  %v4353 = vadd.f32 0.0, %v4352
  %4354 = vmatmul.bf16.gmra.mxu0 %v3859
  %v4355 = vpop.f32.mrf.mxu0
  %v4356 = vadd.f32 0.0, %v4355
  %v4357 = vpop.f32.mrf.mxu0
  %v4358 = vadd.f32 0.0, %v4357
  %4359 = vmatmul.bf16.gmra.mxu0 %v3861
  %v4360 = vpop.f32.mrf.mxu0
  %v4361 = vadd.f32 0.0, %v4360
  %v4362 = vpop.f32.mrf.mxu0
  %v4363 = vadd.f32 0.0, %v4362
  %4364 = vmatmul.bf16.gmra.mxu0 %v3863
  %v4365 = vpop.f32.mrf.mxu0
  %v4366 = vadd.f32 0.0, %v4365
  %v4367 = vpop.f32.mrf.mxu0
  %v4368 = vadd.f32 0.0, %v4367
  %4369 = vmatmul.bf16.gmra.mxu0 %v3865
  %v4370 = vpop.f32.mrf.mxu0
  %v4371 = vadd.f32 0.0, %v4370
  %v4372 = vpop.f32.mrf.mxu0
  %v4373 = vadd.f32 0.0, %v4372
  %4374 = vmatmul.bf16.gmra.mxu0 %v3867
  %v4375 = vpop.f32.mrf.mxu0
  %v4376 = vadd.f32 0.0, %v4375
  %v4377 = vpop.f32.mrf.mxu0
  %v4378 = vadd.f32 0.0, %v4377
  %4379 = vmatmul.bf16.gmra.mxu0 %v3869
  %v4380 = vpop.f32.mrf.mxu0
  %v4381 = vadd.f32 0.0, %v4380
  %v4382 = vpop.f32.mrf.mxu0
  %v4383 = vadd.f32 0.0, %v4382
  %4384 = vmatmul.bf16.gmra.mxu0 %v3871
  %v4385 = vpop.f32.mrf.mxu0
  %v4386 = vadd.f32 0.0, %v4385
  %v4387 = vpop.f32.mrf.mxu0
  %v4388 = vadd.f32 0.0, %v4387
  %4389 = vmatmul.bf16.gmra.mxu0 %v3873
  %v4390 = vpop.f32.mrf.mxu0
  %v4391 = vadd.f32 0.0, %v4390
  %v4392 = vpop.f32.mrf.mxu0
  %v4393 = vadd.f32 0.0, %v4392
  %4394 = vmatmul.bf16.gmra.mxu0 %v3875
  %v4395 = vpop.f32.mrf.mxu0
  %v4396 = vadd.f32 0.0, %v4395
  %v4397 = vpop.f32.mrf.mxu0
  %v4398 = vadd.f32 0.0, %v4397
  %4399 = vmatmul.bf16.gmra.mxu0 %v3877
  %v4400 = vpop.f32.mrf.mxu0
  %v4401 = vadd.f32 0.0, %v4400
  %v4402 = vpop.f32.mrf.mxu0
  %v4403 = vadd.f32 0.0, %v4402
  %4404 = vmatmul.bf16.gmra.mxu0 %v3879
  %v4405 = vpop.f32.mrf.mxu0
  %v4406 = vadd.f32 0.0, %v4405
  %v4407 = vpop.f32.mrf.mxu0
  %v4408 = vadd.f32 0.0, %v4407
  %4409 = vmatmul.bf16.gmra.mxu0 %v3881
  %v4410 = vpop.f32.mrf.mxu0
  %v4411 = vadd.f32 0.0, %v4410
  %v4412 = vpop.f32.mrf.mxu0
  %v4413 = vadd.f32 0.0, %v4412
  %4414 = vmatmul.bf16.gmra.mxu0 %v3883
  %v4415 = vpop.f32.mrf.mxu0
  %v4416 = vadd.f32 0.0, %v4415
  %v4417 = vpop.f32.mrf.mxu0
  %v4418 = vadd.f32 0.0, %v4417
  %4419 = vmatmul.bf16.gmra.mxu0 %v3885
  %v4420 = vpop.f32.mrf.mxu0
  %v4421 = vadd.f32 0.0, %v4420
  %v4422 = vpop.f32.mrf.mxu0
  %v4423 = vadd.f32 0.0, %v4422
  %4424 = vmatmul.bf16.gmra.mxu0 %v3887
  %v4425 = vpop.f32.mrf.mxu0
  %v4426 = vadd.f32 0.0, %v4425
  %v4427 = vpop.f32.mrf.mxu0
  %v4428 = vadd.f32 0.0, %v4427
  %4429 = vmatmul.bf16.gmra.mxu0 %v3889
  %v4430 = vpop.f32.mrf.mxu0
  %v4431 = vadd.f32 0.0, %v4430
  %v4432 = vpop.f32.mrf.mxu0
  %v4433 = vadd.f32 0.0, %v4432
  %4434 = vmatmul.bf16.gmra.mxu0 %v3891
  %v4435 = vpop.f32.mrf.mxu0
  %v4436 = vadd.f32 0.0, %v4435
  %v4437 = vpop.f32.mrf.mxu0
  %v4438 = vadd.f32 0.0, %v4437
  %4439 = vmatmul.bf16.gmra.mxu0 %v3893
  %v4440 = vpop.f32.mrf.mxu0
  %v4441 = vadd.f32 0.0, %v4440
  %v4442 = vpop.f32.mrf.mxu0
  %v4443 = vadd.f32 0.0, %v4442
  %4444 = vmatmul.bf16.gmra.mxu0 %v3895
  %v4445 = vpop.f32.mrf.mxu0
  %v4446 = vadd.f32 0.0, %v4445
  %v4447 = vpop.f32.mrf.mxu0
  %v4448 = vadd.f32 0.0, %v4447
  %4449 = vmatmul.bf16.gmra.mxu0 %v3897
  %v4450 = vpop.f32.mrf.mxu0
  %v4451 = vadd.f32 0.0, %v4450
  %v4452 = vpop.f32.mrf.mxu0
  %v4453 = vadd.f32 0.0, %v4452
  %4454 = vmatmul.bf16.gmra.mxu0 %v3899
  %v4455 = vpop.f32.mrf.mxu0
  %v4456 = vadd.f32 0.0, %v4455
  %v4457 = vpop.f32.mrf.mxu0
  %v4458 = vadd.f32 0.0, %v4457
  %4459 = vmatmul.bf16.gmra.mxu0 %v3901
  %v4460 = vpop.f32.mrf.mxu0
  %v4461 = vadd.f32 0.0, %v4460
  %v4462 = vpop.f32.mrf.mxu0
  %v4463 = vadd.f32 0.0, %v4462
  %4464 = vmatmul.bf16.gmra.mxu0 %v3903
  %v4465 = vpop.f32.mrf.mxu0
  %v4466 = vadd.f32 0.0, %v4465
  %v4467 = vpop.f32.mrf.mxu0
  %v4468 = vadd.f32 0.0, %v4467
  %4469 = vmatmul.bf16.gmra.mxu0 %v3905
  %v4470 = vpop.f32.mrf.mxu0
  %v4471 = vadd.f32 0.0, %v4470
  %v4472 = vpop.f32.mrf.mxu0
  %v4473 = vadd.f32 0.0, %v4472
  %4474 = vmatmul.bf16.gmra.mxu0 %v3907
  %v4475 = vpop.f32.mrf.mxu0
  %v4476 = vadd.f32 0.0, %v4475
  %v4477 = vpop.f32.mrf.mxu0
  %v4478 = vadd.f32 0.0, %v4477
  %4479 = vmatmul.bf16.gmra.mxu0 %v3909
  %v4480 = vpop.f32.mrf.mxu0
  %v4481 = vadd.f32 0.0, %v4480
  %v4482 = vpop.f32.mrf.mxu0
  %v4483 = vadd.f32 0.0, %v4482
  %4484 = vmatmul.bf16.gmra.mxu0 %v3911
  %v4485 = vpop.f32.mrf.mxu0
  %v4486 = vadd.f32 0.0, %v4485
  %v4487 = vpop.f32.mrf.mxu0
  %v4488 = vadd.f32 0.0, %v4487
  %4489 = vmatmul.bf16.gmra.mxu0 %v3913
  %v4490 = vpop.f32.mrf.mxu0
  %v4491 = vadd.f32 0.0, %v4490
  %v4492 = vpop.f32.mrf.mxu0
  %v4493 = vadd.f32 0.0, %v4492
  %4494 = vmatmul.bf16.gmra.mxu0 %v3915
  %v4495 = vpop.f32.mrf.mxu0
  %v4496 = vadd.f32 0.0, %v4495
  %v4497 = vpop.f32.mrf.mxu0
  %v4498 = vadd.f32 0.0, %v4497
  %4499 = vmatmul.bf16.gmra.mxu0 %v3917
  %v4500 = vpop.f32.mrf.mxu0
  %v4501 = vadd.f32 0.0, %v4500
  %v4502 = vpop.f32.mrf.mxu0
  %v4503 = vadd.f32 0.0, %v4502
  %4504 = vmatmul.bf16.gmra.mxu0 %v3919
  %v4505 = vpop.f32.mrf.mxu0
  %v4506 = vadd.f32 0.0, %v4505
  %v4507 = vpop.f32.mrf.mxu0
  %v4508 = vadd.f32 0.0, %v4507
  %4509 = vmatmul.bf16.gmra.mxu0 %v3921
  %v4510 = vpop.f32.mrf.mxu0
  %v4511 = vadd.f32 0.0, %v4510
  %v4512 = vpop.f32.mrf.mxu0
  %v4513 = vadd.f32 0.0, %v4512
  %4514 = vmatmul.bf16.gmra.mxu0 %v3923
  %v4515 = vpop.f32.mrf.mxu0
  %v4516 = vadd.f32 0.0, %v4515
  %v4517 = vpop.f32.mrf.mxu0
  %v4518 = vadd.f32 0.0, %v4517
  %4519 = vmatmul.bf16.gmra.mxu0 %v3925
  %v4520 = vpop.f32.mrf.mxu0
  %v4521 = vadd.f32 0.0, %v4520
  %v4522 = vpop.f32.mrf.mxu0
  %v4523 = vadd.f32 0.0, %v4522
  %4524 = vmatmul.bf16.gmra.mxu0 %v3927
  %v4525 = vpop.f32.mrf.mxu0
  %v4526 = vadd.f32 0.0, %v4525
  %v4527 = vpop.f32.mrf.mxu0
  %v4528 = vadd.f32 0.0, %v4527
  %4529 = vmatmul.bf16.gmra.mxu0 %v3929
  %v4530 = vpop.f32.mrf.mxu0
  %v4531 = vadd.f32 0.0, %v4530
  %v4532 = vpop.f32.mrf.mxu0
  %v4533 = vadd.f32 0.0, %v4532
  %4534 = vdwg.mxu0
  %4535 = vmatpush.bf16.msra.mxu0 0
  %4536 = vmatpush.bf16.msra.mxu0 0
  %4537 = vmatpush.bf16.msra.mxu0 0
  %4538 = vmatpush.bf16.msra.mxu0 0
  %4539 = vmatpush.bf16.msra.mxu0 0
  %4540 = vmatpush.bf16.msra.mxu0 %v3269
  %4541 = vmatpush.bf16.msra.mxu0 %v3267
  %4542 = vmatpush.bf16.msra.mxu0 %v3265
  %4543 = vmatmul.bf16.gmra.mxu0 %v3999
  %v4544 = vpop.f32.mrf.mxu0
  %v4545 = vadd.f32 %v4206, %v4544
  %v4546 = vpop.f32.mrf.mxu0
  %v4547 = vadd.f32 %v4208, %v4546
  %4548 = vmatmul.bf16.gmra.mxu0 %v4002
  %v4549 = vpop.f32.mrf.mxu0
  %v4550 = vadd.f32 %v4211, %v4549
  %v4551 = vpop.f32.mrf.mxu0
  %v4552 = vadd.f32 %v4213, %v4551
  %4553 = vmatmul.bf16.gmra.mxu0 %v4005
  %v4554 = vpop.f32.mrf.mxu0
  %v4555 = vadd.f32 %v4216, %v4554
  %v4556 = vpop.f32.mrf.mxu0
  %v4557 = vadd.f32 %v4218, %v4556
  %4558 = vmatmul.bf16.gmra.mxu0 %v4008
  %v4559 = vpop.f32.mrf.mxu0
  %v4560 = vadd.f32 %v4221, %v4559
  %v4561 = vpop.f32.mrf.mxu0
  %v4562 = vadd.f32 %v4223, %v4561
  %4563 = vmatmul.bf16.gmra.mxu0 %v4011
  %v4564 = vpop.f32.mrf.mxu0
  %v4565 = vadd.f32 %v4226, %v4564
  %v4566 = vpop.f32.mrf.mxu0
  %v4567 = vadd.f32 %v4228, %v4566
  %4568 = vmatmul.bf16.gmra.mxu0 %v4014
  %v4569 = vpop.f32.mrf.mxu0
  %v4570 = vadd.f32 %v4231, %v4569
  %v4571 = vpop.f32.mrf.mxu0
  %v4572 = vadd.f32 %v4233, %v4571
  %4573 = vmatmul.bf16.gmra.mxu0 %v4017
  %v4574 = vpop.f32.mrf.mxu0
  %v4575 = vadd.f32 %v4236, %v4574
  %v4576 = vpop.f32.mrf.mxu0
  %v4577 = vadd.f32 %v4238, %v4576
  %4578 = vmatmul.bf16.gmra.mxu0 %v4020
  %v4579 = vpop.f32.mrf.mxu0
  %v4580 = vadd.f32 %v4241, %v4579
  %v4581 = vpop.f32.mrf.mxu0
  %v4582 = vadd.f32 %v4243, %v4581
  %4583 = vmatmul.bf16.gmra.mxu0 %v4023
  %v4584 = vpop.f32.mrf.mxu0
  %v4585 = vadd.f32 %v4246, %v4584
  %v4586 = vpop.f32.mrf.mxu0
  %v4587 = vadd.f32 %v4248, %v4586
  %4588 = vmatmul.bf16.gmra.mxu0 %v4026
  %v4589 = vpop.f32.mrf.mxu0
  %v4590 = vadd.f32 %v4251, %v4589
  %v4591 = vpop.f32.mrf.mxu0
  %v4592 = vadd.f32 %v4253, %v4591
  %4593 = vmatmul.bf16.gmra.mxu0 %v4029
  %v4594 = vpop.f32.mrf.mxu0
  %v4595 = vadd.f32 %v4256, %v4594
  %v4596 = vpop.f32.mrf.mxu0
  %v4597 = vadd.f32 %v4258, %v4596
  %4598 = vmatmul.bf16.gmra.mxu0 %v4032
  %v4599 = vpop.f32.mrf.mxu0
  %v4600 = vadd.f32 %v4261, %v4599
  %v4601 = vpop.f32.mrf.mxu0
  %v4602 = vadd.f32 %v4263, %v4601
  %4603 = vmatmul.bf16.gmra.mxu0 %v4035
  %v4604 = vpop.f32.mrf.mxu0
  %v4605 = vadd.f32 %v4266, %v4604
  %v4606 = vpop.f32.mrf.mxu0
  %v4607 = vadd.f32 %v4268, %v4606
  %4608 = vmatmul.bf16.gmra.mxu0 %v4038
  %v4609 = vpop.f32.mrf.mxu0
  %v4610 = vadd.f32 %v4271, %v4609
  %v4611 = vpop.f32.mrf.mxu0
  %v4612 = vadd.f32 %v4273, %v4611
  %4613 = vmatmul.bf16.gmra.mxu0 %v4041
  %v4614 = vpop.f32.mrf.mxu0
  %v4615 = vadd.f32 %v4276, %v4614
  %v4616 = vpop.f32.mrf.mxu0
  %v4617 = vadd.f32 %v4278, %v4616
  %4618 = vmatmul.bf16.gmra.mxu0 %v4044
  %v4619 = vpop.f32.mrf.mxu0
  %v4620 = vadd.f32 %v4281, %v4619
  %v4621 = vpop.f32.mrf.mxu0
  %v4622 = vadd.f32 %v4283, %v4621
  %4623 = vmatmul.bf16.gmra.mxu0 %v4047
  %v4624 = vpop.f32.mrf.mxu0
  %v4625 = vadd.f32 %v4286, %v4624
  %v4626 = vpop.f32.mrf.mxu0
  %v4627 = vadd.f32 %v4288, %v4626
  %4628 = vmatmul.bf16.gmra.mxu0 %v4050
  %v4629 = vpop.f32.mrf.mxu0
  %v4630 = vadd.f32 %v4291, %v4629
  %v4631 = vpop.f32.mrf.mxu0
  %v4632 = vadd.f32 %v4293, %v4631
  %4633 = vmatmul.bf16.gmra.mxu0 %v4053
  %v4634 = vpop.f32.mrf.mxu0
  %v4635 = vadd.f32 %v4296, %v4634
  %v4636 = vpop.f32.mrf.mxu0
  %v4637 = vadd.f32 %v4298, %v4636
  %4638 = vmatmul.bf16.gmra.mxu0 %v4056
  %v4639 = vpop.f32.mrf.mxu0
  %v4640 = vadd.f32 %v4301, %v4639
  %v4641 = vpop.f32.mrf.mxu0
  %v4642 = vadd.f32 %v4303, %v4641
  %4643 = vmatmul.bf16.gmra.mxu0 %v4059
  %v4644 = vpop.f32.mrf.mxu0
  %v4645 = vadd.f32 %v4306, %v4644
  %v4646 = vpop.f32.mrf.mxu0
  %v4647 = vadd.f32 %v4308, %v4646
  %4648 = vmatmul.bf16.gmra.mxu0 %v4062
  %v4649 = vpop.f32.mrf.mxu0
  %v4650 = vadd.f32 %v4311, %v4649
  %v4651 = vpop.f32.mrf.mxu0
  %v4652 = vadd.f32 %v4313, %v4651
  %4653 = vmatmul.bf16.gmra.mxu0 %v4065
  %v4654 = vpop.f32.mrf.mxu0
  %v4655 = vadd.f32 %v4316, %v4654
  %v4656 = vpop.f32.mrf.mxu0
  %v4657 = vadd.f32 %v4318, %v4656
  %4658 = vmatmul.bf16.gmra.mxu0 %v4068
  %v4659 = vpop.f32.mrf.mxu0
  %v4660 = vadd.f32 %v4321, %v4659
  %v4661 = vpop.f32.mrf.mxu0
  %v4662 = vadd.f32 %v4323, %v4661
  %4663 = vmatmul.bf16.gmra.mxu0 %v4071
  %v4664 = vpop.f32.mrf.mxu0
  %v4665 = vadd.f32 %v4326, %v4664
  %v4666 = vpop.f32.mrf.mxu0
  %v4667 = vadd.f32 %v4328, %v4666
  %4668 = vmatmul.bf16.gmra.mxu0 %v4074
  %v4669 = vpop.f32.mrf.mxu0
  %v4670 = vadd.f32 %v4331, %v4669
  %v4671 = vpop.f32.mrf.mxu0
  %v4672 = vadd.f32 %v4333, %v4671
  %4673 = vmatmul.bf16.gmra.mxu0 %v4077
  %v4674 = vpop.f32.mrf.mxu0
  %v4675 = vadd.f32 %v4336, %v4674
  %v4676 = vpop.f32.mrf.mxu0
  %v4677 = vadd.f32 %v4338, %v4676
  %4678 = vmatmul.bf16.gmra.mxu0 %v4080
  %v4679 = vpop.f32.mrf.mxu0
  %v4680 = vadd.f32 %v4341, %v4679
  %v4681 = vpop.f32.mrf.mxu0
  %v4682 = vadd.f32 %v4343, %v4681
  %4683 = vmatmul.bf16.gmra.mxu0 %v4083
  %v4684 = vpop.f32.mrf.mxu0
  %v4685 = vadd.f32 %v4346, %v4684
  %v4686 = vpop.f32.mrf.mxu0
  %v4687 = vadd.f32 %v4348, %v4686
  %4688 = vmatmul.bf16.gmra.mxu0 %v4086
  %v4689 = vpop.f32.mrf.mxu0
  %v4690 = vadd.f32 %v4351, %v4689
  %v4691 = vpop.f32.mrf.mxu0
  %v4692 = vadd.f32 %v4353, %v4691
  %4693 = vmatmul.bf16.gmra.mxu0 %v4089
  %v4694 = vpop.f32.mrf.mxu0
  %v4695 = vadd.f32 %v4356, %v4694
  %v4696 = vpop.f32.mrf.mxu0
  %v4697 = vadd.f32 %v4358, %v4696
  %4698 = vmatmul.bf16.gmra.mxu0 %v4092
  %v4699 = vpop.f32.mrf.mxu0
  %v4700 = vadd.f32 %v4361, %v4699
  %v4701 = vpop.f32.mrf.mxu0
  %v4702 = vadd.f32 %v4363, %v4701
  %4703 = vmatmul.bf16.gmra.mxu0 %v4095
  %v4704 = vpop.f32.mrf.mxu0
  %v4705 = vadd.f32 %v4366, %v4704
  %v4706 = vpop.f32.mrf.mxu0
  %v4707 = vadd.f32 %v4368, %v4706
  %4708 = vmatmul.bf16.gmra.mxu0 %v4098
  %v4709 = vpop.f32.mrf.mxu0
  %v4710 = vadd.f32 %v4371, %v4709
  %v4711 = vpop.f32.mrf.mxu0
  %v4712 = vadd.f32 %v4373, %v4711
  %4713 = vmatmul.bf16.gmra.mxu0 %v4101
  %v4714 = vpop.f32.mrf.mxu0
  %v4715 = vadd.f32 %v4376, %v4714
  %v4716 = vpop.f32.mrf.mxu0
  %v4717 = vadd.f32 %v4378, %v4716
  %4718 = vmatmul.bf16.gmra.mxu0 %v4104
  %v4719 = vpop.f32.mrf.mxu0
  %v4720 = vadd.f32 %v4381, %v4719
  %v4721 = vpop.f32.mrf.mxu0
  %v4722 = vadd.f32 %v4383, %v4721
  %4723 = vmatmul.bf16.gmra.mxu0 %v4107
  %v4724 = vpop.f32.mrf.mxu0
  %v4725 = vadd.f32 %v4386, %v4724
  %v4726 = vpop.f32.mrf.mxu0
  %v4727 = vadd.f32 %v4388, %v4726
  %4728 = vmatmul.bf16.gmra.mxu0 %v4110
  %v4729 = vpop.f32.mrf.mxu0
  %v4730 = vadd.f32 %v4391, %v4729
  %v4731 = vpop.f32.mrf.mxu0
  %v4732 = vadd.f32 %v4393, %v4731
  %4733 = vmatmul.bf16.gmra.mxu0 %v4113
  %v4734 = vpop.f32.mrf.mxu0
  %v4735 = vadd.f32 %v4396, %v4734
  %v4736 = vpop.f32.mrf.mxu0
  %v4737 = vadd.f32 %v4398, %v4736
  %4738 = vmatmul.bf16.gmra.mxu0 %v4116
  %v4739 = vpop.f32.mrf.mxu0
  %v4740 = vadd.f32 %v4401, %v4739
  %v4741 = vpop.f32.mrf.mxu0
  %v4742 = vadd.f32 %v4403, %v4741
  %4743 = vmatmul.bf16.gmra.mxu0 %v4119
  %v4744 = vpop.f32.mrf.mxu0
  %v4745 = vadd.f32 %v4406, %v4744
  %v4746 = vpop.f32.mrf.mxu0
  %v4747 = vadd.f32 %v4408, %v4746
  %4748 = vmatmul.bf16.gmra.mxu0 %v4122
  %v4749 = vpop.f32.mrf.mxu0
  %v4750 = vadd.f32 %v4411, %v4749
  %v4751 = vpop.f32.mrf.mxu0
  %v4752 = vadd.f32 %v4413, %v4751
  %4753 = vmatmul.bf16.gmra.mxu0 %v4125
  %v4754 = vpop.f32.mrf.mxu0
  %v4755 = vadd.f32 %v4416, %v4754
  %v4756 = vpop.f32.mrf.mxu0
  %v4757 = vadd.f32 %v4418, %v4756
  %4758 = vmatmul.bf16.gmra.mxu0 %v4128
  %v4759 = vpop.f32.mrf.mxu0
  %v4760 = vadd.f32 %v4421, %v4759
  %v4761 = vpop.f32.mrf.mxu0
  %v4762 = vadd.f32 %v4423, %v4761
  %4763 = vmatmul.bf16.gmra.mxu0 %v4131
  %v4764 = vpop.f32.mrf.mxu0
  %v4765 = vadd.f32 %v4426, %v4764
  %v4766 = vpop.f32.mrf.mxu0
  %v4767 = vadd.f32 %v4428, %v4766
  %4768 = vmatmul.bf16.gmra.mxu0 %v4134
  %v4769 = vpop.f32.mrf.mxu0
  %v4770 = vadd.f32 %v4431, %v4769
  %v4771 = vpop.f32.mrf.mxu0
  %v4772 = vadd.f32 %v4433, %v4771
  %4773 = vmatmul.bf16.gmra.mxu0 %v4137
  %v4774 = vpop.f32.mrf.mxu0
  %v4775 = vadd.f32 %v4436, %v4774
  %v4776 = vpop.f32.mrf.mxu0
  %v4777 = vadd.f32 %v4438, %v4776
  %4778 = vmatmul.bf16.gmra.mxu0 %v4140
  %v4779 = vpop.f32.mrf.mxu0
  %v4780 = vadd.f32 %v4441, %v4779
  %v4781 = vpop.f32.mrf.mxu0
  %v4782 = vadd.f32 %v4443, %v4781
  %4783 = vmatmul.bf16.gmra.mxu0 %v4143
  %v4784 = vpop.f32.mrf.mxu0
  %v4785 = vadd.f32 %v4446, %v4784
  %v4786 = vpop.f32.mrf.mxu0
  %v4787 = vadd.f32 %v4448, %v4786
  %4788 = vmatmul.bf16.gmra.mxu0 %v4146
  %v4789 = vpop.f32.mrf.mxu0
  %v4790 = vadd.f32 %v4451, %v4789
  %v4791 = vpop.f32.mrf.mxu0
  %v4792 = vadd.f32 %v4453, %v4791
  %4793 = vmatmul.bf16.gmra.mxu0 %v4149
  %v4794 = vpop.f32.mrf.mxu0
  %v4795 = vadd.f32 %v4456, %v4794
  %v4796 = vpop.f32.mrf.mxu0
  %v4797 = vadd.f32 %v4458, %v4796
  %4798 = vmatmul.bf16.gmra.mxu0 %v4152
  %v4799 = vpop.f32.mrf.mxu0
  %v4800 = vadd.f32 %v4461, %v4799
  %v4801 = vpop.f32.mrf.mxu0
  %v4802 = vadd.f32 %v4463, %v4801
  %4803 = vmatmul.bf16.gmra.mxu0 %v4155
  %v4804 = vpop.f32.mrf.mxu0
  %v4805 = vadd.f32 %v4466, %v4804
  %v4806 = vpop.f32.mrf.mxu0
  %v4807 = vadd.f32 %v4468, %v4806
  %4808 = vmatmul.bf16.gmra.mxu0 %v4158
  %v4809 = vpop.f32.mrf.mxu0
  %v4810 = vadd.f32 %v4471, %v4809
  %v4811 = vpop.f32.mrf.mxu0
  %v4812 = vadd.f32 %v4473, %v4811
  %4813 = vmatmul.bf16.gmra.mxu0 %v4161
  %v4814 = vpop.f32.mrf.mxu0
  %v4815 = vadd.f32 %v4476, %v4814
  %v4816 = vpop.f32.mrf.mxu0
  %v4817 = vadd.f32 %v4478, %v4816
  %4818 = vmatmul.bf16.gmra.mxu0 %v4164
  %v4819 = vpop.f32.mrf.mxu0
  %v4820 = vadd.f32 %v4481, %v4819
  %v4821 = vpop.f32.mrf.mxu0
  %v4822 = vadd.f32 %v4483, %v4821
  %4823 = vmatmul.bf16.gmra.mxu0 %v4167
  %v4824 = vpop.f32.mrf.mxu0
  %v4825 = vadd.f32 %v4486, %v4824
  %v4826 = vpop.f32.mrf.mxu0
  %v4827 = vadd.f32 %v4488, %v4826
  %4828 = vmatmul.bf16.gmra.mxu0 %v4170
  %v4829 = vpop.f32.mrf.mxu0
  %v4830 = vadd.f32 %v4491, %v4829
  %v4831 = vpop.f32.mrf.mxu0
  %v4832 = vadd.f32 %v4493, %v4831
  %4833 = vmatmul.bf16.gmra.mxu0 %v4173
  %v4834 = vpop.f32.mrf.mxu0
  %v4835 = vadd.f32 %v4496, %v4834
  %v4836 = vpop.f32.mrf.mxu0
  %v4837 = vadd.f32 %v4498, %v4836
  %4838 = vmatmul.bf16.gmra.mxu0 %v4176
  %v4839 = vpop.f32.mrf.mxu0
  %v4840 = vadd.f32 %v4501, %v4839
  %v4841 = vpop.f32.mrf.mxu0
  %v4842 = vadd.f32 %v4503, %v4841
  %4843 = vmatmul.bf16.gmra.mxu0 %v4179
  %v4844 = vpop.f32.mrf.mxu0
  %v4845 = vadd.f32 %v4506, %v4844
  %v4846 = vpop.f32.mrf.mxu0
  %v4847 = vadd.f32 %v4508, %v4846
  %4848 = vmatmul.bf16.gmra.mxu0 %v4182
  %v4849 = vpop.f32.mrf.mxu0
  %v4850 = vadd.f32 %v4511, %v4849
  %v4851 = vpop.f32.mrf.mxu0
  %v4852 = vadd.f32 %v4513, %v4851
  %4853 = vmatmul.bf16.gmra.mxu0 %v4185
  %v4854 = vpop.f32.mrf.mxu0
  %v4855 = vadd.f32 %v4516, %v4854
  %v4856 = vpop.f32.mrf.mxu0
  %v4857 = vadd.f32 %v4518, %v4856
  %4858 = vmatmul.bf16.gmra.mxu0 %v4188
  %v4859 = vpop.f32.mrf.mxu0
  %v4860 = vadd.f32 %v4521, %v4859
  %v4861 = vpop.f32.mrf.mxu0
  %v4862 = vadd.f32 %v4523, %v4861
  %4863 = vmatmul.bf16.gmra.mxu0 %v4191
  %v4864 = vpop.f32.mrf.mxu0
  %v4865 = vadd.f32 %v4526, %v4864
  %v4866 = vpop.f32.mrf.mxu0
  %v4867 = vadd.f32 %v4528, %v4866
  %4868 = vmatmul.bf16.gmra.mxu0 %v4194
  %v4869 = vpop.f32.mrf.mxu0
  %v4870 = vadd.f32 %v4531, %v4869
  %v4871 = vpop.f32.mrf.mxu0
  %v4872 = vadd.f32 %v4533, %v4871
  %4873 = vdwg.mxu0
  %4874 = vmatpush.bf16.msra.mxu0 %v3264
  %4875 = vmatpush.bf16.msra.mxu0 %v3262
  %4876 = vmatpush.bf16.msra.mxu0 %v3260
  %4877 = vmatpush.bf16.msra.mxu0 %v3258
  %4878 = vmatpush.bf16.msra.mxu0 %v3256
  %4879 = vmatpush.bf16.msra.mxu0 %v3254
  %4880 = vmatpush.bf16.msra.mxu0 %v3252
  %4881 = vmatpush.bf16.msra.mxu0 %v3250
  %4882 = vmatmul.bf16.gmra.mxu0 %v3799
  %v4883 = vpop.f32.mrf.mxu0
  %v4884 = vadd.f32 0.0, %v4883
  %v4885 = vpop.f32.mrf.mxu0
  %v4886 = vadd.f32 0.0, %v4885
  %4887 = vmatmul.bf16.gmra.mxu0 %v3801
  %v4888 = vpop.f32.mrf.mxu0
  %v4889 = vadd.f32 0.0, %v4888
  %v4890 = vpop.f32.mrf.mxu0
  %v4891 = vadd.f32 0.0, %v4890
  %4892 = vmatmul.bf16.gmra.mxu0 %v3803
  %v4893 = vpop.f32.mrf.mxu0
  %v4894 = vadd.f32 0.0, %v4893
  %v4895 = vpop.f32.mrf.mxu0
  %v4896 = vadd.f32 0.0, %v4895
  %4897 = vmatmul.bf16.gmra.mxu0 %v3805
  %v4898 = vpop.f32.mrf.mxu0
  %v4899 = vadd.f32 0.0, %v4898
  %v4900 = vpop.f32.mrf.mxu0
  %v4901 = vadd.f32 0.0, %v4900
  %4902 = vmatmul.bf16.gmra.mxu0 %v3807
  %v4903 = vpop.f32.mrf.mxu0
  %v4904 = vadd.f32 0.0, %v4903
  %v4905 = vpop.f32.mrf.mxu0
  %v4906 = vadd.f32 0.0, %v4905
  %4907 = vmatmul.bf16.gmra.mxu0 %v3809
  %v4908 = vpop.f32.mrf.mxu0
  %v4909 = vadd.f32 0.0, %v4908
  %v4910 = vpop.f32.mrf.mxu0
  %v4911 = vadd.f32 0.0, %v4910
  %4912 = vmatmul.bf16.gmra.mxu0 %v3811
  %v4913 = vpop.f32.mrf.mxu0
  %v4914 = vadd.f32 0.0, %v4913
  %v4915 = vpop.f32.mrf.mxu0
  %v4916 = vadd.f32 0.0, %v4915
  %4917 = vmatmul.bf16.gmra.mxu0 %v3813
  %v4918 = vpop.f32.mrf.mxu0
  %v4919 = vadd.f32 0.0, %v4918
  %v4920 = vpop.f32.mrf.mxu0
  %v4921 = vadd.f32 0.0, %v4920
  %4922 = vmatmul.bf16.gmra.mxu0 %v3815
  %v4923 = vpop.f32.mrf.mxu0
  %v4924 = vadd.f32 0.0, %v4923
  %v4925 = vpop.f32.mrf.mxu0
  %v4926 = vadd.f32 0.0, %v4925
  %4927 = vmatmul.bf16.gmra.mxu0 %v3817
  %v4928 = vpop.f32.mrf.mxu0
  %v4929 = vadd.f32 0.0, %v4928
  %v4930 = vpop.f32.mrf.mxu0
  %v4931 = vadd.f32 0.0, %v4930
  %4932 = vmatmul.bf16.gmra.mxu0 %v3819
  %v4933 = vpop.f32.mrf.mxu0
  %v4934 = vadd.f32 0.0, %v4933
  %v4935 = vpop.f32.mrf.mxu0
  %v4936 = vadd.f32 0.0, %v4935
  %4937 = vmatmul.bf16.gmra.mxu0 %v3821
  %v4938 = vpop.f32.mrf.mxu0
  %v4939 = vadd.f32 0.0, %v4938
  %v4940 = vpop.f32.mrf.mxu0
  %v4941 = vadd.f32 0.0, %v4940
  %4942 = vmatmul.bf16.gmra.mxu0 %v3823
  %v4943 = vpop.f32.mrf.mxu0
  %v4944 = vadd.f32 0.0, %v4943
  %v4945 = vpop.f32.mrf.mxu0
  %v4946 = vadd.f32 0.0, %v4945
  %4947 = vmatmul.bf16.gmra.mxu0 %v3825
  %v4948 = vpop.f32.mrf.mxu0
  %v4949 = vadd.f32 0.0, %v4948
  %v4950 = vpop.f32.mrf.mxu0
  %v4951 = vadd.f32 0.0, %v4950
  %4952 = vmatmul.bf16.gmra.mxu0 %v3827
  %v4953 = vpop.f32.mrf.mxu0
  %v4954 = vadd.f32 0.0, %v4953
  %v4955 = vpop.f32.mrf.mxu0
  %v4956 = vadd.f32 0.0, %v4955
  %4957 = vmatmul.bf16.gmra.mxu0 %v3829
  %v4958 = vpop.f32.mrf.mxu0
  %v4959 = vadd.f32 0.0, %v4958
  %v4960 = vpop.f32.mrf.mxu0
  %v4961 = vadd.f32 0.0, %v4960
  %4962 = vmatmul.bf16.gmra.mxu0 %v3831
  %v4963 = vpop.f32.mrf.mxu0
  %v4964 = vadd.f32 0.0, %v4963
  %v4965 = vpop.f32.mrf.mxu0
  %v4966 = vadd.f32 0.0, %v4965
  %4967 = vmatmul.bf16.gmra.mxu0 %v3833
  %v4968 = vpop.f32.mrf.mxu0
  %v4969 = vadd.f32 0.0, %v4968
  %v4970 = vpop.f32.mrf.mxu0
  %v4971 = vadd.f32 0.0, %v4970
  %4972 = vmatmul.bf16.gmra.mxu0 %v3835
  %v4973 = vpop.f32.mrf.mxu0
  %v4974 = vadd.f32 0.0, %v4973
  %v4975 = vpop.f32.mrf.mxu0
  %v4976 = vadd.f32 0.0, %v4975
  %4977 = vmatmul.bf16.gmra.mxu0 %v3837
  %v4978 = vpop.f32.mrf.mxu0
  %v4979 = vadd.f32 0.0, %v4978
  %v4980 = vpop.f32.mrf.mxu0
  %v4981 = vadd.f32 0.0, %v4980
  %4982 = vmatmul.bf16.gmra.mxu0 %v3839
  %v4983 = vpop.f32.mrf.mxu0
  %v4984 = vadd.f32 0.0, %v4983
  %v4985 = vpop.f32.mrf.mxu0
  %v4986 = vadd.f32 0.0, %v4985
  %4987 = vmatmul.bf16.gmra.mxu0 %v3841
  %v4988 = vpop.f32.mrf.mxu0
  %v4989 = vadd.f32 0.0, %v4988
  %v4990 = vpop.f32.mrf.mxu0
  %v4991 = vadd.f32 0.0, %v4990
  %4992 = vmatmul.bf16.gmra.mxu0 %v3843
  %v4993 = vpop.f32.mrf.mxu0
  %v4994 = vadd.f32 0.0, %v4993
  %v4995 = vpop.f32.mrf.mxu0
  %v4996 = vadd.f32 0.0, %v4995
  %4997 = vmatmul.bf16.gmra.mxu0 %v3845
  %v4998 = vpop.f32.mrf.mxu0
  %v4999 = vadd.f32 0.0, %v4998
  %v5000 = vpop.f32.mrf.mxu0
  %v5001 = vadd.f32 0.0, %v5000
  %5002 = vmatmul.bf16.gmra.mxu0 %v3847
  %v5003 = vpop.f32.mrf.mxu0
  %v5004 = vadd.f32 0.0, %v5003
  %v5005 = vpop.f32.mrf.mxu0
  %v5006 = vadd.f32 0.0, %v5005
  %5007 = vmatmul.bf16.gmra.mxu0 %v3849
  %v5008 = vpop.f32.mrf.mxu0
  %v5009 = vadd.f32 0.0, %v5008
  %v5010 = vpop.f32.mrf.mxu0
  %v5011 = vadd.f32 0.0, %v5010
  %5012 = vmatmul.bf16.gmra.mxu0 %v3851
  %v5013 = vpop.f32.mrf.mxu0
  %v5014 = vadd.f32 0.0, %v5013
  %v5015 = vpop.f32.mrf.mxu0
  %v5016 = vadd.f32 0.0, %v5015
  %5017 = vmatmul.bf16.gmra.mxu0 %v3853
  %v5018 = vpop.f32.mrf.mxu0
  %v5019 = vadd.f32 0.0, %v5018
  %v5020 = vpop.f32.mrf.mxu0
  %v5021 = vadd.f32 0.0, %v5020
  %5022 = vmatmul.bf16.gmra.mxu0 %v3855
  %v5023 = vpop.f32.mrf.mxu0
  %v5024 = vadd.f32 0.0, %v5023
  %v5025 = vpop.f32.mrf.mxu0
  %v5026 = vadd.f32 0.0, %v5025
  %5027 = vmatmul.bf16.gmra.mxu0 %v3857
  %v5028 = vpop.f32.mrf.mxu0
  %v5029 = vadd.f32 0.0, %v5028
  %v5030 = vpop.f32.mrf.mxu0
  %v5031 = vadd.f32 0.0, %v5030
  %5032 = vmatmul.bf16.gmra.mxu0 %v3859
  %v5033 = vpop.f32.mrf.mxu0
  %v5034 = vadd.f32 0.0, %v5033
  %v5035 = vpop.f32.mrf.mxu0
  %v5036 = vadd.f32 0.0, %v5035
  %5037 = vmatmul.bf16.gmra.mxu0 %v3861
  %v5038 = vpop.f32.mrf.mxu0
  %v5039 = vadd.f32 0.0, %v5038
  %v5040 = vpop.f32.mrf.mxu0
  %v5041 = vadd.f32 0.0, %v5040
  %5042 = vmatmul.bf16.gmra.mxu0 %v3863
  %v5043 = vpop.f32.mrf.mxu0
  %v5044 = vadd.f32 0.0, %v5043
  %v5045 = vpop.f32.mrf.mxu0
  %v5046 = vadd.f32 0.0, %v5045
  %5047 = vmatmul.bf16.gmra.mxu0 %v3865
  %v5048 = vpop.f32.mrf.mxu0
  %v5049 = vadd.f32 0.0, %v5048
  %v5050 = vpop.f32.mrf.mxu0
  %v5051 = vadd.f32 0.0, %v5050
  %5052 = vmatmul.bf16.gmra.mxu0 %v3867
  %v5053 = vpop.f32.mrf.mxu0
  %v5054 = vadd.f32 0.0, %v5053
  %v5055 = vpop.f32.mrf.mxu0
  %v5056 = vadd.f32 0.0, %v5055
  %5057 = vmatmul.bf16.gmra.mxu0 %v3869
  %v5058 = vpop.f32.mrf.mxu0
  %v5059 = vadd.f32 0.0, %v5058
  %v5060 = vpop.f32.mrf.mxu0
  %v5061 = vadd.f32 0.0, %v5060
  %5062 = vmatmul.bf16.gmra.mxu0 %v3871
  %v5063 = vpop.f32.mrf.mxu0
  %v5064 = vadd.f32 0.0, %v5063
  %v5065 = vpop.f32.mrf.mxu0
  %v5066 = vadd.f32 0.0, %v5065
  %5067 = vmatmul.bf16.gmra.mxu0 %v3873
  %v5068 = vpop.f32.mrf.mxu0
  %v5069 = vadd.f32 0.0, %v5068
  %v5070 = vpop.f32.mrf.mxu0
  %v5071 = vadd.f32 0.0, %v5070
  %5072 = vmatmul.bf16.gmra.mxu0 %v3875
  %v5073 = vpop.f32.mrf.mxu0
  %v5074 = vadd.f32 0.0, %v5073
  %v5075 = vpop.f32.mrf.mxu0
  %v5076 = vadd.f32 0.0, %v5075
  %5077 = vmatmul.bf16.gmra.mxu0 %v3877
  %v5078 = vpop.f32.mrf.mxu0
  %v5079 = vadd.f32 0.0, %v5078
  %v5080 = vpop.f32.mrf.mxu0
  %v5081 = vadd.f32 0.0, %v5080
  %5082 = vmatmul.bf16.gmra.mxu0 %v3879
  %v5083 = vpop.f32.mrf.mxu0
  %v5084 = vadd.f32 0.0, %v5083
  %v5085 = vpop.f32.mrf.mxu0
  %v5086 = vadd.f32 0.0, %v5085
  %5087 = vmatmul.bf16.gmra.mxu0 %v3881
  %v5088 = vpop.f32.mrf.mxu0
  %v5089 = vadd.f32 0.0, %v5088
  %v5090 = vpop.f32.mrf.mxu0
  %v5091 = vadd.f32 0.0, %v5090
  %5092 = vmatmul.bf16.gmra.mxu0 %v3883
  %v5093 = vpop.f32.mrf.mxu0
  %v5094 = vadd.f32 0.0, %v5093
  %v5095 = vpop.f32.mrf.mxu0
  %v5096 = vadd.f32 0.0, %v5095
  %5097 = vmatmul.bf16.gmra.mxu0 %v3885
  %v5098 = vpop.f32.mrf.mxu0
  %v5099 = vadd.f32 0.0, %v5098
  %v5100 = vpop.f32.mrf.mxu0
  %v5101 = vadd.f32 0.0, %v5100
  %5102 = vmatmul.bf16.gmra.mxu0 %v3887
  %v5103 = vpop.f32.mrf.mxu0
  %v5104 = vadd.f32 0.0, %v5103
  %v5105 = vpop.f32.mrf.mxu0
  %v5106 = vadd.f32 0.0, %v5105
  %5107 = vmatmul.bf16.gmra.mxu0 %v3889
  %v5108 = vpop.f32.mrf.mxu0
  %v5109 = vadd.f32 0.0, %v5108
  %v5110 = vpop.f32.mrf.mxu0
  %v5111 = vadd.f32 0.0, %v5110
  %5112 = vmatmul.bf16.gmra.mxu0 %v3891
  %v5113 = vpop.f32.mrf.mxu0
  %v5114 = vadd.f32 0.0, %v5113
  %v5115 = vpop.f32.mrf.mxu0
  %v5116 = vadd.f32 0.0, %v5115
  %5117 = vmatmul.bf16.gmra.mxu0 %v3893
  %v5118 = vpop.f32.mrf.mxu0
  %v5119 = vadd.f32 0.0, %v5118
  %v5120 = vpop.f32.mrf.mxu0
  %v5121 = vadd.f32 0.0, %v5120
  %5122 = vmatmul.bf16.gmra.mxu0 %v3895
  %v5123 = vpop.f32.mrf.mxu0
  %v5124 = vadd.f32 0.0, %v5123
  %v5125 = vpop.f32.mrf.mxu0
  %v5126 = vadd.f32 0.0, %v5125
  %5127 = vmatmul.bf16.gmra.mxu0 %v3897
  %v5128 = vpop.f32.mrf.mxu0
  %v5129 = vadd.f32 0.0, %v5128
  %v5130 = vpop.f32.mrf.mxu0
  %v5131 = vadd.f32 0.0, %v5130
  %5132 = vmatmul.bf16.gmra.mxu0 %v3899
  %v5133 = vpop.f32.mrf.mxu0
  %v5134 = vadd.f32 0.0, %v5133
  %v5135 = vpop.f32.mrf.mxu0
  %v5136 = vadd.f32 0.0, %v5135
  %5137 = vmatmul.bf16.gmra.mxu0 %v3901
  %v5138 = vpop.f32.mrf.mxu0
  %v5139 = vadd.f32 0.0, %v5138
  %v5140 = vpop.f32.mrf.mxu0
  %v5141 = vadd.f32 0.0, %v5140
  %5142 = vmatmul.bf16.gmra.mxu0 %v3903
  %v5143 = vpop.f32.mrf.mxu0
  %v5144 = vadd.f32 0.0, %v5143
  %v5145 = vpop.f32.mrf.mxu0
  %v5146 = vadd.f32 0.0, %v5145
  %5147 = vmatmul.bf16.gmra.mxu0 %v3905
  %v5148 = vpop.f32.mrf.mxu0
  %v5149 = vadd.f32 0.0, %v5148
  %v5150 = vpop.f32.mrf.mxu0
  %v5151 = vadd.f32 0.0, %v5150
  %5152 = vmatmul.bf16.gmra.mxu0 %v3907
  %v5153 = vpop.f32.mrf.mxu0
  %v5154 = vadd.f32 0.0, %v5153
  %v5155 = vpop.f32.mrf.mxu0
  %v5156 = vadd.f32 0.0, %v5155
  %5157 = vmatmul.bf16.gmra.mxu0 %v3909
  %v5158 = vpop.f32.mrf.mxu0
  %v5159 = vadd.f32 0.0, %v5158
  %v5160 = vpop.f32.mrf.mxu0
  %v5161 = vadd.f32 0.0, %v5160
  %5162 = vmatmul.bf16.gmra.mxu0 %v3911
  %v5163 = vpop.f32.mrf.mxu0
  %v5164 = vadd.f32 0.0, %v5163
  %v5165 = vpop.f32.mrf.mxu0
  %v5166 = vadd.f32 0.0, %v5165
  %5167 = vmatmul.bf16.gmra.mxu0 %v3913
  %v5168 = vpop.f32.mrf.mxu0
  %v5169 = vadd.f32 0.0, %v5168
  %v5170 = vpop.f32.mrf.mxu0
  %v5171 = vadd.f32 0.0, %v5170
  %5172 = vmatmul.bf16.gmra.mxu0 %v3915
  %v5173 = vpop.f32.mrf.mxu0
  %v5174 = vadd.f32 0.0, %v5173
  %v5175 = vpop.f32.mrf.mxu0
  %v5176 = vadd.f32 0.0, %v5175
  %5177 = vmatmul.bf16.gmra.mxu0 %v3917
  %v5178 = vpop.f32.mrf.mxu0
  %v5179 = vadd.f32 0.0, %v5178
  %v5180 = vpop.f32.mrf.mxu0
  %v5181 = vadd.f32 0.0, %v5180
  %5182 = vmatmul.bf16.gmra.mxu0 %v3919
  %v5183 = vpop.f32.mrf.mxu0
  %v5184 = vadd.f32 0.0, %v5183
  %v5185 = vpop.f32.mrf.mxu0
  %v5186 = vadd.f32 0.0, %v5185
  %5187 = vmatmul.bf16.gmra.mxu0 %v3921
  %v5188 = vpop.f32.mrf.mxu0
  %v5189 = vadd.f32 0.0, %v5188
  %v5190 = vpop.f32.mrf.mxu0
  %v5191 = vadd.f32 0.0, %v5190
  %5192 = vmatmul.bf16.gmra.mxu0 %v3923
  %v5193 = vpop.f32.mrf.mxu0
  %v5194 = vadd.f32 0.0, %v5193
  %v5195 = vpop.f32.mrf.mxu0
  %v5196 = vadd.f32 0.0, %v5195
  %5197 = vmatmul.bf16.gmra.mxu0 %v3925
  %v5198 = vpop.f32.mrf.mxu0
  %v5199 = vadd.f32 0.0, %v5198
  %v5200 = vpop.f32.mrf.mxu0
  %v5201 = vadd.f32 0.0, %v5200
  %5202 = vmatmul.bf16.gmra.mxu0 %v3927
  %v5203 = vpop.f32.mrf.mxu0
  %v5204 = vadd.f32 0.0, %v5203
  %v5205 = vpop.f32.mrf.mxu0
  %v5206 = vadd.f32 0.0, %v5205
  %5207 = vmatmul.bf16.gmra.mxu0 %v3929
  %v5208 = vpop.f32.mrf.mxu0
  %v5209 = vadd.f32 0.0, %v5208
  %v5210 = vpop.f32.mrf.mxu0
  %v5211 = vadd.f32 0.0, %v5210
  %5212 = vdwg.mxu0
  %5213 = vmatpush.bf16.msra.mxu0 0
  %5214 = vmatpush.bf16.msra.mxu0 0
  %5215 = vmatpush.bf16.msra.mxu0 0
  %5216 = vmatpush.bf16.msra.mxu0 0
  %5217 = vmatpush.bf16.msra.mxu0 0
  %5218 = vmatpush.bf16.msra.mxu0 %v3270
  %5219 = vmatpush.bf16.msra.mxu0 %v3268
  %5220 = vmatpush.bf16.msra.mxu0 %v3266
  %5221 = vmatmul.bf16.gmra.mxu0 %v3999
  %v5222 = vpop.f32.mrf.mxu0
  %v5223 = vadd.f32 %v4884, %v5222
  %v5224 = vpop.f32.mrf.mxu0
  %v5225 = vadd.f32 %v4886, %v5224
  %5226 = vmatmul.bf16.gmra.mxu0 %v4002
  %v5227 = vpop.f32.mrf.mxu0
  %v5228 = vadd.f32 %v4889, %v5227
  %v5229 = vpop.f32.mrf.mxu0
  %v5230 = vadd.f32 %v4891, %v5229
  %5231 = vmatmul.bf16.gmra.mxu0 %v4005
  %v5232 = vpop.f32.mrf.mxu0
  %v5233 = vadd.f32 %v4894, %v5232
  %v5234 = vpop.f32.mrf.mxu0
  %v5235 = vadd.f32 %v4896, %v5234
  %5236 = vmatmul.bf16.gmra.mxu0 %v4008
  %v5237 = vpop.f32.mrf.mxu0
  %v5238 = vadd.f32 %v4899, %v5237
  %v5239 = vpop.f32.mrf.mxu0
  %v5240 = vadd.f32 %v4901, %v5239
  %5241 = vmatmul.bf16.gmra.mxu0 %v4011
  %v5242 = vpop.f32.mrf.mxu0
  %v5243 = vadd.f32 %v4904, %v5242
  %v5244 = vpop.f32.mrf.mxu0
  %v5245 = vadd.f32 %v4906, %v5244
  %5246 = vmatmul.bf16.gmra.mxu0 %v4014
  %v5247 = vpop.f32.mrf.mxu0
  %v5248 = vadd.f32 %v4909, %v5247
  %v5249 = vpop.f32.mrf.mxu0
  %v5250 = vadd.f32 %v4911, %v5249
  %5251 = vmatmul.bf16.gmra.mxu0 %v4017
  %v5252 = vpop.f32.mrf.mxu0
  %v5253 = vadd.f32 %v4914, %v5252
  %v5254 = vpop.f32.mrf.mxu0
  %v5255 = vadd.f32 %v4916, %v5254
  %5256 = vmatmul.bf16.gmra.mxu0 %v4020
  %v5257 = vpop.f32.mrf.mxu0
  %v5258 = vadd.f32 %v4919, %v5257
  %v5259 = vpop.f32.mrf.mxu0
  %v5260 = vadd.f32 %v4921, %v5259
  %5261 = vmatmul.bf16.gmra.mxu0 %v4023
  %v5262 = vpop.f32.mrf.mxu0
  %v5263 = vadd.f32 %v4924, %v5262
  %v5264 = vpop.f32.mrf.mxu0
  %v5265 = vadd.f32 %v4926, %v5264
  %5266 = vmatmul.bf16.gmra.mxu0 %v4026
  %v5267 = vpop.f32.mrf.mxu0
  %v5268 = vadd.f32 %v4929, %v5267
  %v5269 = vpop.f32.mrf.mxu0
  %v5270 = vadd.f32 %v4931, %v5269
  %5271 = vmatmul.bf16.gmra.mxu0 %v4029
  %v5272 = vpop.f32.mrf.mxu0
  %v5273 = vadd.f32 %v4934, %v5272
  %v5274 = vpop.f32.mrf.mxu0
  %v5275 = vadd.f32 %v4936, %v5274
  %5276 = vmatmul.bf16.gmra.mxu0 %v4032
  %v5277 = vpop.f32.mrf.mxu0
  %v5278 = vadd.f32 %v4939, %v5277
  %v5279 = vpop.f32.mrf.mxu0
  %v5280 = vadd.f32 %v4941, %v5279
  %5281 = vmatmul.bf16.gmra.mxu0 %v4035
  %v5282 = vpop.f32.mrf.mxu0
  %v5283 = vadd.f32 %v4944, %v5282
  %v5284 = vpop.f32.mrf.mxu0
  %v5285 = vadd.f32 %v4946, %v5284
  %5286 = vmatmul.bf16.gmra.mxu0 %v4038
  %v5287 = vpop.f32.mrf.mxu0
  %v5288 = vadd.f32 %v4949, %v5287
  %v5289 = vpop.f32.mrf.mxu0
  %v5290 = vadd.f32 %v4951, %v5289
  %5291 = vmatmul.bf16.gmra.mxu0 %v4041
  %v5292 = vpop.f32.mrf.mxu0
  %v5293 = vadd.f32 %v4954, %v5292
  %v5294 = vpop.f32.mrf.mxu0
  %v5295 = vadd.f32 %v4956, %v5294
  %5296 = vmatmul.bf16.gmra.mxu0 %v4044
  %v5297 = vpop.f32.mrf.mxu0
  %v5298 = vadd.f32 %v4959, %v5297
  %v5299 = vpop.f32.mrf.mxu0
  %v5300 = vadd.f32 %v4961, %v5299
  %5301 = vmatmul.bf16.gmra.mxu0 %v4047
  %v5302 = vpop.f32.mrf.mxu0
  %v5303 = vadd.f32 %v4964, %v5302
  %v5304 = vpop.f32.mrf.mxu0
  %v5305 = vadd.f32 %v4966, %v5304
  %5306 = vmatmul.bf16.gmra.mxu0 %v4050
  %v5307 = vpop.f32.mrf.mxu0
  %v5308 = vadd.f32 %v4969, %v5307
  %v5309 = vpop.f32.mrf.mxu0
  %v5310 = vadd.f32 %v4971, %v5309
  %5311 = vmatmul.bf16.gmra.mxu0 %v4053
  %v5312 = vpop.f32.mrf.mxu0
  %v5313 = vadd.f32 %v4974, %v5312
  %v5314 = vpop.f32.mrf.mxu0
  %v5315 = vadd.f32 %v4976, %v5314
  %5316 = vmatmul.bf16.gmra.mxu0 %v4056
  %v5317 = vpop.f32.mrf.mxu0
  %v5318 = vadd.f32 %v4979, %v5317
  %v5319 = vpop.f32.mrf.mxu0
  %v5320 = vadd.f32 %v4981, %v5319
  %5321 = vmatmul.bf16.gmra.mxu0 %v4059
  %v5322 = vpop.f32.mrf.mxu0
  %v5323 = vadd.f32 %v4984, %v5322
  %v5324 = vpop.f32.mrf.mxu0
  %v5325 = vadd.f32 %v4986, %v5324
  %5326 = vmatmul.bf16.gmra.mxu0 %v4062
  %v5327 = vpop.f32.mrf.mxu0
  %v5328 = vadd.f32 %v4989, %v5327
  %v5329 = vpop.f32.mrf.mxu0
  %v5330 = vadd.f32 %v4991, %v5329
  %5331 = vmatmul.bf16.gmra.mxu0 %v4065
  %v5332 = vpop.f32.mrf.mxu0
  %v5333 = vadd.f32 %v4994, %v5332
  %v5334 = vpop.f32.mrf.mxu0
  %v5335 = vadd.f32 %v4996, %v5334
  %5336 = vmatmul.bf16.gmra.mxu0 %v4068
  %v5337 = vpop.f32.mrf.mxu0
  %v5338 = vadd.f32 %v4999, %v5337
  %v5339 = vpop.f32.mrf.mxu0
  %v5340 = vadd.f32 %v5001, %v5339
  %5341 = vmatmul.bf16.gmra.mxu0 %v4071
  %v5342 = vpop.f32.mrf.mxu0
  %v5343 = vadd.f32 %v5004, %v5342
  %v5344 = vpop.f32.mrf.mxu0
  %v5345 = vadd.f32 %v5006, %v5344
  %5346 = vmatmul.bf16.gmra.mxu0 %v4074
  %v5347 = vpop.f32.mrf.mxu0
  %v5348 = vadd.f32 %v5009, %v5347
  %v5349 = vpop.f32.mrf.mxu0
  %v5350 = vadd.f32 %v5011, %v5349
  %5351 = vmatmul.bf16.gmra.mxu0 %v4077
  %v5352 = vpop.f32.mrf.mxu0
  %v5353 = vadd.f32 %v5014, %v5352
  %v5354 = vpop.f32.mrf.mxu0
  %v5355 = vadd.f32 %v5016, %v5354
  %5356 = vmatmul.bf16.gmra.mxu0 %v4080
  %v5357 = vpop.f32.mrf.mxu0
  %v5358 = vadd.f32 %v5019, %v5357
  %v5359 = vpop.f32.mrf.mxu0
  %v5360 = vadd.f32 %v5021, %v5359
  %5361 = vmatmul.bf16.gmra.mxu0 %v4083
  %v5362 = vpop.f32.mrf.mxu0
  %v5363 = vadd.f32 %v5024, %v5362
  %v5364 = vpop.f32.mrf.mxu0
  %v5365 = vadd.f32 %v5026, %v5364
  %5366 = vmatmul.bf16.gmra.mxu0 %v4086
  %v5367 = vpop.f32.mrf.mxu0
  %v5368 = vadd.f32 %v5029, %v5367
  %v5369 = vpop.f32.mrf.mxu0
  %v5370 = vadd.f32 %v5031, %v5369
  %5371 = vmatmul.bf16.gmra.mxu0 %v4089
  %v5372 = vpop.f32.mrf.mxu0
  %v5373 = vadd.f32 %v5034, %v5372
  %v5374 = vpop.f32.mrf.mxu0
  %v5375 = vadd.f32 %v5036, %v5374
  %5376 = vmatmul.bf16.gmra.mxu0 %v4092
  %v5377 = vpop.f32.mrf.mxu0
  %v5378 = vadd.f32 %v5039, %v5377
  %v5379 = vpop.f32.mrf.mxu0
  %v5380 = vadd.f32 %v5041, %v5379
  %5381 = vmatmul.bf16.gmra.mxu0 %v4095
  %v5382 = vpop.f32.mrf.mxu0
  %v5383 = vadd.f32 %v5044, %v5382
  %v5384 = vpop.f32.mrf.mxu0
  %v5385 = vadd.f32 %v5046, %v5384
  %5386 = vmatmul.bf16.gmra.mxu0 %v4098
  %v5387 = vpop.f32.mrf.mxu0
  %v5388 = vadd.f32 %v5049, %v5387
  %v5389 = vpop.f32.mrf.mxu0
  %v5390 = vadd.f32 %v5051, %v5389
  %5391 = vmatmul.bf16.gmra.mxu0 %v4101
  %v5392 = vpop.f32.mrf.mxu0
  %v5393 = vadd.f32 %v5054, %v5392
  %v5394 = vpop.f32.mrf.mxu0
  %v5395 = vadd.f32 %v5056, %v5394
  %5396 = vmatmul.bf16.gmra.mxu0 %v4104
  %v5397 = vpop.f32.mrf.mxu0
  %v5398 = vadd.f32 %v5059, %v5397
  %v5399 = vpop.f32.mrf.mxu0
  %v5400 = vadd.f32 %v5061, %v5399
  %5401 = vmatmul.bf16.gmra.mxu0 %v4107
  %v5402 = vpop.f32.mrf.mxu0
  %v5403 = vadd.f32 %v5064, %v5402
  %v5404 = vpop.f32.mrf.mxu0
  %v5405 = vadd.f32 %v5066, %v5404
  %5406 = vmatmul.bf16.gmra.mxu0 %v4110
  %v5407 = vpop.f32.mrf.mxu0
  %v5408 = vadd.f32 %v5069, %v5407
  %v5409 = vpop.f32.mrf.mxu0
  %v5410 = vadd.f32 %v5071, %v5409
  %5411 = vmatmul.bf16.gmra.mxu0 %v4113
  %v5412 = vpop.f32.mrf.mxu0
  %v5413 = vadd.f32 %v5074, %v5412
  %v5414 = vpop.f32.mrf.mxu0
  %v5415 = vadd.f32 %v5076, %v5414
  %5416 = vmatmul.bf16.gmra.mxu0 %v4116
  %v5417 = vpop.f32.mrf.mxu0
  %v5418 = vadd.f32 %v5079, %v5417
  %v5419 = vpop.f32.mrf.mxu0
  %v5420 = vadd.f32 %v5081, %v5419
  %5421 = vmatmul.bf16.gmra.mxu0 %v4119
  %v5422 = vpop.f32.mrf.mxu0
  %v5423 = vadd.f32 %v5084, %v5422
  %v5424 = vpop.f32.mrf.mxu0
  %v5425 = vadd.f32 %v5086, %v5424
  %5426 = vmatmul.bf16.gmra.mxu0 %v4122
  %v5427 = vpop.f32.mrf.mxu0
  %v5428 = vadd.f32 %v5089, %v5427
  %v5429 = vpop.f32.mrf.mxu0
  %v5430 = vadd.f32 %v5091, %v5429
  %5431 = vmatmul.bf16.gmra.mxu0 %v4125
  %v5432 = vpop.f32.mrf.mxu0
  %v5433 = vadd.f32 %v5094, %v5432
  %v5434 = vpop.f32.mrf.mxu0
  %v5435 = vadd.f32 %v5096, %v5434
  %5436 = vmatmul.bf16.gmra.mxu0 %v4128
  %v5437 = vpop.f32.mrf.mxu0
  %v5438 = vadd.f32 %v5099, %v5437
  %v5439 = vpop.f32.mrf.mxu0
  %v5440 = vadd.f32 %v5101, %v5439
  %5441 = vmatmul.bf16.gmra.mxu0 %v4131
  %v5442 = vpop.f32.mrf.mxu0
  %v5443 = vadd.f32 %v5104, %v5442
  %v5444 = vpop.f32.mrf.mxu0
  %v5445 = vadd.f32 %v5106, %v5444
  %5446 = vmatmul.bf16.gmra.mxu0 %v4134
  %v5447 = vpop.f32.mrf.mxu0
  %v5448 = vadd.f32 %v5109, %v5447
  %v5449 = vpop.f32.mrf.mxu0
  %v5450 = vadd.f32 %v5111, %v5449
  %5451 = vmatmul.bf16.gmra.mxu0 %v4137
  %v5452 = vpop.f32.mrf.mxu0
  %v5453 = vadd.f32 %v5114, %v5452
  %v5454 = vpop.f32.mrf.mxu0
  %v5455 = vadd.f32 %v5116, %v5454
  %5456 = vmatmul.bf16.gmra.mxu0 %v4140
  %v5457 = vpop.f32.mrf.mxu0
  %v5458 = vadd.f32 %v5119, %v5457
  %v5459 = vpop.f32.mrf.mxu0
  %v5460 = vadd.f32 %v5121, %v5459
  %5461 = vmatmul.bf16.gmra.mxu0 %v4143
  %v5462 = vpop.f32.mrf.mxu0
  %v5463 = vadd.f32 %v5124, %v5462
  %v5464 = vpop.f32.mrf.mxu0
  %v5465 = vadd.f32 %v5126, %v5464
  %5466 = vmatmul.bf16.gmra.mxu0 %v4146
  %v5467 = vpop.f32.mrf.mxu0
  %v5468 = vadd.f32 %v5129, %v5467
  %v5469 = vpop.f32.mrf.mxu0
  %v5470 = vadd.f32 %v5131, %v5469
  %5471 = vmatmul.bf16.gmra.mxu0 %v4149
  %v5472 = vpop.f32.mrf.mxu0
  %v5473 = vadd.f32 %v5134, %v5472
  %v5474 = vpop.f32.mrf.mxu0
  %v5475 = vadd.f32 %v5136, %v5474
  %5476 = vmatmul.bf16.gmra.mxu0 %v4152
  %v5477 = vpop.f32.mrf.mxu0
  %v5478 = vadd.f32 %v5139, %v5477
  %v5479 = vpop.f32.mrf.mxu0
  %v5480 = vadd.f32 %v5141, %v5479
  %5481 = vmatmul.bf16.gmra.mxu0 %v4155
  %v5482 = vpop.f32.mrf.mxu0
  %v5483 = vadd.f32 %v5144, %v5482
  %v5484 = vpop.f32.mrf.mxu0
  %v5485 = vadd.f32 %v5146, %v5484
  %5486 = vmatmul.bf16.gmra.mxu0 %v4158
  %v5487 = vpop.f32.mrf.mxu0
  %v5488 = vadd.f32 %v5149, %v5487
  %v5489 = vpop.f32.mrf.mxu0
  %v5490 = vadd.f32 %v5151, %v5489
  %5491 = vmatmul.bf16.gmra.mxu0 %v4161
  %v5492 = vpop.f32.mrf.mxu0
  %v5493 = vadd.f32 %v5154, %v5492
  %v5494 = vpop.f32.mrf.mxu0
  %v5495 = vadd.f32 %v5156, %v5494
  %5496 = vmatmul.bf16.gmra.mxu0 %v4164
  %v5497 = vpop.f32.mrf.mxu0
  %v5498 = vadd.f32 %v5159, %v5497
  %v5499 = vpop.f32.mrf.mxu0
  %v5500 = vadd.f32 %v5161, %v5499
  %5501 = vmatmul.bf16.gmra.mxu0 %v4167
  %v5502 = vpop.f32.mrf.mxu0
  %v5503 = vadd.f32 %v5164, %v5502
  %v5504 = vpop.f32.mrf.mxu0
  %v5505 = vadd.f32 %v5166, %v5504
  %5506 = vmatmul.bf16.gmra.mxu0 %v4170
  %v5507 = vpop.f32.mrf.mxu0
  %v5508 = vadd.f32 %v5169, %v5507
  %v5509 = vpop.f32.mrf.mxu0
  %v5510 = vadd.f32 %v5171, %v5509
  %5511 = vmatmul.bf16.gmra.mxu0 %v4173
  %v5512 = vpop.f32.mrf.mxu0
  %v5513 = vadd.f32 %v5174, %v5512
  %v5514 = vpop.f32.mrf.mxu0
  %v5515 = vadd.f32 %v5176, %v5514
  %5516 = vmatmul.bf16.gmra.mxu0 %v4176
  %v5517 = vpop.f32.mrf.mxu0
  %v5518 = vadd.f32 %v5179, %v5517
  %v5519 = vpop.f32.mrf.mxu0
  %v5520 = vadd.f32 %v5181, %v5519
  %5521 = vmatmul.bf16.gmra.mxu0 %v4179
  %v5522 = vpop.f32.mrf.mxu0
  %v5523 = vadd.f32 %v5184, %v5522
  %v5524 = vpop.f32.mrf.mxu0
  %v5525 = vadd.f32 %v5186, %v5524
  %5526 = vmatmul.bf16.gmra.mxu0 %v4182
  %v5527 = vpop.f32.mrf.mxu0
  %v5528 = vadd.f32 %v5189, %v5527
  %v5529 = vpop.f32.mrf.mxu0
  %v5530 = vadd.f32 %v5191, %v5529
  %5531 = vmatmul.bf16.gmra.mxu0 %v4185
  %v5532 = vpop.f32.mrf.mxu0
  %v5533 = vadd.f32 %v5194, %v5532
  %v5534 = vpop.f32.mrf.mxu0
  %v5535 = vadd.f32 %v5196, %v5534
  %5536 = vmatmul.bf16.gmra.mxu0 %v4188
  %v5537 = vpop.f32.mrf.mxu0
  %v5538 = vadd.f32 %v5199, %v5537
  %v5539 = vpop.f32.mrf.mxu0
  %v5540 = vadd.f32 %v5201, %v5539
  %5541 = vmatmul.bf16.gmra.mxu0 %v4191
  %v5542 = vpop.f32.mrf.mxu0
  %v5543 = vadd.f32 %v5204, %v5542
  %v5544 = vpop.f32.mrf.mxu0
  %v5545 = vadd.f32 %v5206, %v5544
  %5546 = vmatmul.bf16.gmra.mxu0 %v4194
  %v5547 = vpop.f32.mrf.mxu0
  %v5548 = vadd.f32 %v5209, %v5547
  %v5549 = vpop.f32.mrf.mxu0
  %v5550 = vadd.f32 %v5211, %v5549
  %5551 = vdwg.mxu0
  %5552 = vst [vmem:[%s7] sm:$0xff] %v4545
  %5553 = vst.msk [vmem:[%s7 + $0x8] sm:$0xff] %vm2236, %v5223
  %5554 = vst [vmem:[%s7 + $0x10] sm:$0xff] %v4547
  %5555 = vst.msk [vmem:[%s7 + $0x18] sm:$0xff] %vm2236, %v5225
  %5556 = vst [vmem:[%s7 + $0x20] sm:$0xff] %v4550
  %5557 = vst.msk [vmem:[%s7 + $0x28] sm:$0xff] %vm2236, %v5228
  %5558 = vst [vmem:[%s7 + $0x30] sm:$0xff] %v4552
  %5559 = vst.msk [vmem:[%s7 + $0x38] sm:$0xff] %vm2236, %v5230
  %5560 = vst [vmem:[%s7 + $0x40] sm:$0xff] %v4555
  %5561 = vst.msk [vmem:[%s7 + $0x48] sm:$0xff] %vm2236, %v5233
  %5562 = vst [vmem:[%s7 + $0x50] sm:$0xff] %v4557
  %5563 = vst.msk [vmem:[%s7 + $0x58] sm:$0xff] %vm2236, %v5235
  %5564 = vst [vmem:[%s7 + $0x60] sm:$0xff] %v4560
  %5565 = vst.msk [vmem:[%s7 + $0x68] sm:$0xff] %vm2236, %v5238
  %5566 = vst [vmem:[%s7 + $0x70] sm:$0xff] %v4562
  %5567 = vst.msk [vmem:[%s7 + $0x78] sm:$0xff] %vm2236, %v5240
  %5568 = vst [vmem:[%s7 + $0x80] sm:$0xff] %v4565
  %5569 = vst.msk [vmem:[%s7 + $0x88] sm:$0xff] %vm2236, %v5243
  %5570 = vst [vmem:[%s7 + $0x90] sm:$0xff] %v4567
  %5571 = vst.msk [vmem:[%s7 + $0x98] sm:$0xff] %vm2236, %v5245
  %5572 = vst [vmem:[%s7 + $0xa0] sm:$0xff] %v4570
  %5573 = vst.msk [vmem:[%s7 + $0xa8] sm:$0xff] %vm2236, %v5248
  %5574 = vst [vmem:[%s7 + $0xb0] sm:$0xff] %v4572
  %5575 = vst.msk [vmem:[%s7 + $0xb8] sm:$0xff] %vm2236, %v5250
  %5576 = vst [vmem:[%s7 + $0xc0] sm:$0xff] %v4575
  %5577 = vst.msk [vmem:[%s7 + $0xc8] sm:$0xff] %vm2236, %v5253
  %5578 = vst [vmem:[%s7 + $0xd0] sm:$0xff] %v4577
  %5579 = vst.msk [vmem:[%s7 + $0xd8] sm:$0xff] %vm2236, %v5255
  %5580 = vst [vmem:[%s7 + $0xe0] sm:$0xff] %v4580
  %5581 = vst.msk [vmem:[%s7 + $0xe8] sm:$0xff] %vm2236, %v5258
  %5582 = vst [vmem:[%s7 + $0xf0] sm:$0xff] %v4582
  %5583 = vst.msk [vmem:[%s7 + $0xf8] sm:$0xff] %vm2236, %v5260
  %5584 = vst [vmem:[%s7 + $0x100] sm:$0xff] %v4585
  %5585 = vst.msk [vmem:[%s7 + $0x108] sm:$0xff] %vm2236, %v5263
  %5586 = vst [vmem:[%s7 + $0x110] sm:$0xff] %v4587
  %5587 = vst.msk [vmem:[%s7 + $0x118] sm:$0xff] %vm2236, %v5265
  %5588 = vst [vmem:[%s7 + $0x120] sm:$0xff] %v4590
  %5589 = vst.msk [vmem:[%s7 + $0x128] sm:$0xff] %vm2236, %v5268
  %5590 = vst [vmem:[%s7 + $0x130] sm:$0xff] %v4592
  %5591 = vst.msk [vmem:[%s7 + $0x138] sm:$0xff] %vm2236, %v5270
  %5592 = vst [vmem:[%s7 + $0x140] sm:$0xff] %v4595
  %5593 = vst.msk [vmem:[%s7 + $0x148] sm:$0xff] %vm2236, %v5273
  %5594 = vst [vmem:[%s7 + $0x150] sm:$0xff] %v4597
  %5595 = vst.msk [vmem:[%s7 + $0x158] sm:$0xff] %vm2236, %v5275
  %5596 = vst [vmem:[%s7 + $0x160] sm:$0xff] %v4600
  %5597 = vst.msk [vmem:[%s7 + $0x168] sm:$0xff] %vm2236, %v5278
  %5598 = vst [vmem:[%s7 + $0x170] sm:$0xff] %v4602
  %5599 = vst.msk [vmem:[%s7 + $0x178] sm:$0xff] %vm2236, %v5280
  %5600 = vst [vmem:[%s7 + $0x180] sm:$0xff] %v4605
  %5601 = vst.msk [vmem:[%s7 + $0x188] sm:$0xff] %vm2236, %v5283
  %5602 = vst [vmem:[%s7 + $0x190] sm:$0xff] %v4607
  %5603 = vst.msk [vmem:[%s7 + $0x198] sm:$0xff] %vm2236, %v5285
  %5604 = vst [vmem:[%s7 + $0x1a0] sm:$0xff] %v4610
  %5605 = vst.msk [vmem:[%s7 + $0x1a8] sm:$0xff] %vm2236, %v5288
  %5606 = vst [vmem:[%s7 + $0x1b0] sm:$0xff] %v4612
  %5607 = vst.msk [vmem:[%s7 + $0x1b8] sm:$0xff] %vm2236, %v5290
  %5608 = vst [vmem:[%s7 + $0x1c0] sm:$0xff] %v4615
  %5609 = vst.msk [vmem:[%s7 + $0x1c8] sm:$0xff] %vm2236, %v5293
  %5610 = vst [vmem:[%s7 + $0x1d0] sm:$0xff] %v4617
  %5611 = vst.msk [vmem:[%s7 + $0x1d8] sm:$0xff] %vm2236, %v5295
  %5612 = vst [vmem:[%s7 + $0x1e0] sm:$0xff] %v4620
  %5613 = vst.msk [vmem:[%s7 + $0x1e8] sm:$0xff] %vm2236, %v5298
  %5614 = vst [vmem:[%s7 + $0x1f0] sm:$0xff] %v4622
  %5615 = vst.msk [vmem:[%s7 + $0x1f8] sm:$0xff] %vm2236, %v5300
  %5616 = vst [vmem:[%s7 + $0x200] sm:$0xff] %v4625
  %5617 = vst.msk [vmem:[%s7 + $0x208] sm:$0xff] %vm2236, %v5303
  %5618 = vst [vmem:[%s7 + $0x210] sm:$0xff] %v4627
  %5619 = vst.msk [vmem:[%s7 + $0x218] sm:$0xff] %vm2236, %v5305
  %5620 = vst [vmem:[%s7 + $0x220] sm:$0xff] %v4630
  %5621 = vst.msk [vmem:[%s7 + $0x228] sm:$0xff] %vm2236, %v5308
  %5622 = vst [vmem:[%s7 + $0x230] sm:$0xff] %v4632
  %5623 = vst.msk [vmem:[%s7 + $0x238] sm:$0xff] %vm2236, %v5310
  %5624 = vst [vmem:[%s7 + $0x240] sm:$0xff] %v4635
  %5625 = vst.msk [vmem:[%s7 + $0x248] sm:$0xff] %vm2236, %v5313
  %5626 = vst [vmem:[%s7 + $0x250] sm:$0xff] %v4637
  %5627 = vst.msk [vmem:[%s7 + $0x258] sm:$0xff] %vm2236, %v5315
  %5628 = vst [vmem:[%s7 + $0x260] sm:$0xff] %v4640
  %5629 = vst.msk [vmem:[%s7 + $0x268] sm:$0xff] %vm2236, %v5318
  %5630 = vst [vmem:[%s7 + $0x270] sm:$0xff] %v4642
  %5631 = vst.msk [vmem:[%s7 + $0x278] sm:$0xff] %vm2236, %v5320
  %5632 = vst [vmem:[%s7 + $0x280] sm:$0xff] %v4645
  %5633 = vst.msk [vmem:[%s7 + $0x288] sm:$0xff] %vm2236, %v5323
  %5634 = vst [vmem:[%s7 + $0x290] sm:$0xff] %v4647
  %5635 = vst.msk [vmem:[%s7 + $0x298] sm:$0xff] %vm2236, %v5325
  %5636 = vst [vmem:[%s7 + $0x2a0] sm:$0xff] %v4650
  %5637 = vst.msk [vmem:[%s7 + $0x2a8] sm:$0xff] %vm2236, %v5328
  %5638 = vst [vmem:[%s7 + $0x2b0] sm:$0xff] %v4652
  %5639 = vst.msk [vmem:[%s7 + $0x2b8] sm:$0xff] %vm2236, %v5330
  %5640 = vst [vmem:[%s7 + $0x2c0] sm:$0xff] %v4655
  %5641 = vst.msk [vmem:[%s7 + $0x2c8] sm:$0xff] %vm2236, %v5333
  %5642 = vst [vmem:[%s7 + $0x2d0] sm:$0xff] %v4657
  %5643 = vst.msk [vmem:[%s7 + $0x2d8] sm:$0xff] %vm2236, %v5335
  %5644 = vst [vmem:[%s7 + $0x2e0] sm:$0xff] %v4660
  %5645 = vst.msk [vmem:[%s7 + $0x2e8] sm:$0xff] %vm2236, %v5338
  %5646 = vst [vmem:[%s7 + $0x2f0] sm:$0xff] %v4662
  %5647 = vst.msk [vmem:[%s7 + $0x2f8] sm:$0xff] %vm2236, %v5340
  %5648 = vst [vmem:[%s7 + $0x300] sm:$0xff] %v4665
  %5649 = vst.msk [vmem:[%s7 + $0x308] sm:$0xff] %vm2236, %v5343
  %5650 = vst [vmem:[%s7 + $0x310] sm:$0xff] %v4667
  %5651 = vst.msk [vmem:[%s7 + $0x318] sm:$0xff] %vm2236, %v5345
  %5652 = vst [vmem:[%s7 + $0x320] sm:$0xff] %v4670
  %5653 = vst.msk [vmem:[%s7 + $0x328] sm:$0xff] %vm2236, %v5348
  %5654 = vst [vmem:[%s7 + $0x330] sm:$0xff] %v4672
  %5655 = vst.msk [vmem:[%s7 + $0x338] sm:$0xff] %vm2236, %v5350
  %5656 = vst [vmem:[%s7 + $0x340] sm:$0xff] %v4675
  %5657 = vst.msk [vmem:[%s7 + $0x348] sm:$0xff] %vm2236, %v5353
  %5658 = vst [vmem:[%s7 + $0x350] sm:$0xff] %v4677
  %5659 = vst.msk [vmem:[%s7 + $0x358] sm:$0xff] %vm2236, %v5355
  %5660 = vst [vmem:[%s7 + $0x360] sm:$0xff] %v4680
  %5661 = vst.msk [vmem:[%s7 + $0x368] sm:$0xff] %vm2236, %v5358
  %5662 = vst [vmem:[%s7 + $0x370] sm:$0xff] %v4682
  %5663 = vst.msk [vmem:[%s7 + $0x378] sm:$0xff] %vm2236, %v5360
  %5664 = vst [vmem:[%s7 + $0x380] sm:$0xff] %v4685
  %5665 = vst.msk [vmem:[%s7 + $0x388] sm:$0xff] %vm2236, %v5363
  %5666 = vst [vmem:[%s7 + $0x390] sm:$0xff] %v4687
  %5667 = vst.msk [vmem:[%s7 + $0x398] sm:$0xff] %vm2236, %v5365
  %5668 = vst [vmem:[%s7 + $0x3a0] sm:$0xff] %v4690
  %5669 = vst.msk [vmem:[%s7 + $0x3a8] sm:$0xff] %vm2236, %v5368
  %5670 = vst [vmem:[%s7 + $0x3b0] sm:$0xff] %v4692
  %5671 = vst.msk [vmem:[%s7 + $0x3b8] sm:$0xff] %vm2236, %v5370
  %5672 = vst [vmem:[%s7 + $0x3c0] sm:$0xff] %v4695
  %5673 = vst.msk [vmem:[%s7 + $0x3c8] sm:$0xff] %vm2236, %v5373
  %5674 = vst [vmem:[%s7 + $0x3d0] sm:$0xff] %v4697
  %5675 = vst.msk [vmem:[%s7 + $0x3d8] sm:$0xff] %vm2236, %v5375
  %5676 = vst [vmem:[%s7 + $0x3e0] sm:$0xff] %v4700
  %5677 = vst.msk [vmem:[%s7 + $0x3e8] sm:$0xff] %vm2236, %v5378
  %5678 = vst [vmem:[%s7 + $0x3f0] sm:$0xff] %v4702
  %5679 = vst.msk [vmem:[%s7 + $0x3f8] sm:$0xff] %vm2236, %v5380
  %5680 = vst [vmem:[%s7 + $0x400] sm:$0xff] %v4705
  %5681 = vst.msk [vmem:[%s7 + $0x408] sm:$0xff] %vm2236, %v5383
  %5682 = vst [vmem:[%s7 + $0x410] sm:$0xff] %v4707
  %5683 = vst.msk [vmem:[%s7 + $0x418] sm:$0xff] %vm2236, %v5385
  %5684 = vst [vmem:[%s7 + $0x420] sm:$0xff] %v4710
  %5685 = vst.msk [vmem:[%s7 + $0x428] sm:$0xff] %vm2236, %v5388
  %5686 = vst [vmem:[%s7 + $0x430] sm:$0xff] %v4712
  %5687 = vst.msk [vmem:[%s7 + $0x438] sm:$0xff] %vm2236, %v5390
  %5688 = vst [vmem:[%s7 + $0x440] sm:$0xff] %v4715
  %5689 = vst.msk [vmem:[%s7 + $0x448] sm:$0xff] %vm2236, %v5393
  %5690 = vst [vmem:[%s7 + $0x450] sm:$0xff] %v4717
  %5691 = vst.msk [vmem:[%s7 + $0x458] sm:$0xff] %vm2236, %v5395
  %5692 = vst [vmem:[%s7 + $0x460] sm:$0xff] %v4720
  %5693 = vst.msk [vmem:[%s7 + $0x468] sm:$0xff] %vm2236, %v5398
  %5694 = vst [vmem:[%s7 + $0x470] sm:$0xff] %v4722
  %5695 = vst.msk [vmem:[%s7 + $0x478] sm:$0xff] %vm2236, %v5400
  %5696 = vst [vmem:[%s7 + $0x480] sm:$0xff] %v4725
  %5697 = vst.msk [vmem:[%s7 + $0x488] sm:$0xff] %vm2236, %v5403
  %5698 = vst [vmem:[%s7 + $0x490] sm:$0xff] %v4727
  %5699 = vst.msk [vmem:[%s7 + $0x498] sm:$0xff] %vm2236, %v5405
  %5700 = vst [vmem:[%s7 + $0x4a0] sm:$0xff] %v4730
  %5701 = vst.msk [vmem:[%s7 + $0x4a8] sm:$0xff] %vm2236, %v5408
  %5702 = vst [vmem:[%s7 + $0x4b0] sm:$0xff] %v4732
  %5703 = vst.msk [vmem:[%s7 + $0x4b8] sm:$0xff] %vm2236, %v5410
  %5704 = vst [vmem:[%s7 + $0x4c0] sm:$0xff] %v4735
  %5705 = vst.msk [vmem:[%s7 + $0x4c8] sm:$0xff] %vm2236, %v5413
  %5706 = vst [vmem:[%s7 + $0x4d0] sm:$0xff] %v4737
  %5707 = vst.msk [vmem:[%s7 + $0x4d8] sm:$0xff] %vm2236, %v5415
  %5708 = vst [vmem:[%s7 + $0x4e0] sm:$0xff] %v4740
  %5709 = vst.msk [vmem:[%s7 + $0x4e8] sm:$0xff] %vm2236, %v5418
  %5710 = vst [vmem:[%s7 + $0x4f0] sm:$0xff] %v4742
  %5711 = vst.msk [vmem:[%s7 + $0x4f8] sm:$0xff] %vm2236, %v5420
  %5712 = vst [vmem:[%s7 + $0x500] sm:$0xff] %v4745
  %5713 = vst.msk [vmem:[%s7 + $0x508] sm:$0xff] %vm2236, %v5423
  %5714 = vst [vmem:[%s7 + $0x510] sm:$0xff] %v4747
  %5715 = vst.msk [vmem:[%s7 + $0x518] sm:$0xff] %vm2236, %v5425
  %5716 = vst [vmem:[%s7 + $0x520] sm:$0xff] %v4750
  %5717 = vst.msk [vmem:[%s7 + $0x528] sm:$0xff] %vm2236, %v5428
  %5718 = vst [vmem:[%s7 + $0x530] sm:$0xff] %v4752
  %5719 = vst.msk [vmem:[%s7 + $0x538] sm:$0xff] %vm2236, %v5430
  %5720 = vst [vmem:[%s7 + $0x540] sm:$0xff] %v4755
  %5721 = vst.msk [vmem:[%s7 + $0x548] sm:$0xff] %vm2236, %v5433
  %5722 = vst [vmem:[%s7 + $0x550] sm:$0xff] %v4757
  %5723 = vst.msk [vmem:[%s7 + $0x558] sm:$0xff] %vm2236, %v5435
  %5724 = vst [vmem:[%s7 + $0x560] sm:$0xff] %v4760
  %5725 = vst.msk [vmem:[%s7 + $0x568] sm:$0xff] %vm2236, %v5438
  %5726 = vst [vmem:[%s7 + $0x570] sm:$0xff] %v4762
  %5727 = vst.msk [vmem:[%s7 + $0x578] sm:$0xff] %vm2236, %v5440
  %5728 = vst [vmem:[%s7 + $0x580] sm:$0xff] %v4765
  %5729 = vst.msk [vmem:[%s7 + $0x588] sm:$0xff] %vm2236, %v5443
  %5730 = vst [vmem:[%s7 + $0x590] sm:$0xff] %v4767
  %5731 = vst.msk [vmem:[%s7 + $0x598] sm:$0xff] %vm2236, %v5445
  %5732 = vst [vmem:[%s7 + $0x5a0] sm:$0xff] %v4770
  %5733 = vst.msk [vmem:[%s7 + $0x5a8] sm:$0xff] %vm2236, %v5448
  %5734 = vst [vmem:[%s7 + $0x5b0] sm:$0xff] %v4772
  %5735 = vst.msk [vmem:[%s7 + $0x5b8] sm:$0xff] %vm2236, %v5450
  %5736 = vst [vmem:[%s7 + $0x5c0] sm:$0xff] %v4775
  %5737 = vst.msk [vmem:[%s7 + $0x5c8] sm:$0xff] %vm2236, %v5453
  %5738 = vst [vmem:[%s7 + $0x5d0] sm:$0xff] %v4777
  %5739 = vst.msk [vmem:[%s7 + $0x5d8] sm:$0xff] %vm2236, %v5455
  %5740 = vst [vmem:[%s7 + $0x5e0] sm:$0xff] %v4780
  %5741 = vst.msk [vmem:[%s7 + $0x5e8] sm:$0xff] %vm2236, %v5458
  %5742 = vst [vmem:[%s7 + $0x5f0] sm:$0xff] %v4782
  %5743 = vst.msk [vmem:[%s7 + $0x5f8] sm:$0xff] %vm2236, %v5460
  %5744 = vst [vmem:[%s7 + $0x600] sm:$0xff] %v4785
  %5745 = vst.msk [vmem:[%s7 + $0x608] sm:$0xff] %vm2236, %v5463
  %5746 = vst [vmem:[%s7 + $0x610] sm:$0xff] %v4787
  %5747 = vst.msk [vmem:[%s7 + $0x618] sm:$0xff] %vm2236, %v5465
  %5748 = vst [vmem:[%s7 + $0x620] sm:$0xff] %v4790
  %5749 = vst.msk [vmem:[%s7 + $0x628] sm:$0xff] %vm2236, %v5468
  %5750 = vst [vmem:[%s7 + $0x630] sm:$0xff] %v4792
  %5751 = vst.msk [vmem:[%s7 + $0x638] sm:$0xff] %vm2236, %v5470
  %5752 = vst [vmem:[%s7 + $0x640] sm:$0xff] %v4795
  %5753 = vst.msk [vmem:[%s7 + $0x648] sm:$0xff] %vm2236, %v5473
  %5754 = vst [vmem:[%s7 + $0x650] sm:$0xff] %v4797
  %5755 = vst.msk [vmem:[%s7 + $0x658] sm:$0xff] %vm2236, %v5475
  %5756 = vst [vmem:[%s7 + $0x660] sm:$0xff] %v4800
  %5757 = vst.msk [vmem:[%s7 + $0x668] sm:$0xff] %vm2236, %v5478
  %5758 = vst [vmem:[%s7 + $0x670] sm:$0xff] %v4802
  %5759 = vst.msk [vmem:[%s7 + $0x678] sm:$0xff] %vm2236, %v5480
  %5760 = vst [vmem:[%s7 + $0x680] sm:$0xff] %v4805
  %5761 = vst.msk [vmem:[%s7 + $0x688] sm:$0xff] %vm2236, %v5483
  %5762 = vst [vmem:[%s7 + $0x690] sm:$0xff] %v4807
  %5763 = vst.msk [vmem:[%s7 + $0x698] sm:$0xff] %vm2236, %v5485
  %5764 = vst [vmem:[%s7 + $0x6a0] sm:$0xff] %v4810
  %5765 = vst.msk [vmem:[%s7 + $0x6a8] sm:$0xff] %vm2236, %v5488
  %5766 = vst [vmem:[%s7 + $0x6b0] sm:$0xff] %v4812
  %5767 = vst.msk [vmem:[%s7 + $0x6b8] sm:$0xff] %vm2236, %v5490
  %5768 = vst [vmem:[%s7 + $0x6c0] sm:$0xff] %v4815
  %5769 = vst.msk [vmem:[%s7 + $0x6c8] sm:$0xff] %vm2236, %v5493
  %5770 = vst [vmem:[%s7 + $0x6d0] sm:$0xff] %v4817
  %5771 = vst.msk [vmem:[%s7 + $0x6d8] sm:$0xff] %vm2236, %v5495
  %5772 = vst [vmem:[%s7 + $0x6e0] sm:$0xff] %v4820
  %5773 = vst.msk [vmem:[%s7 + $0x6e8] sm:$0xff] %vm2236, %v5498
  %5774 = vst [vmem:[%s7 + $0x6f0] sm:$0xff] %v4822
  %5775 = vst.msk [vmem:[%s7 + $0x6f8] sm:$0xff] %vm2236, %v5500
  %5776 = vst [vmem:[%s7 + $0x700] sm:$0xff] %v4825
  %5777 = vst.msk [vmem:[%s7 + $0x708] sm:$0xff] %vm2236, %v5503
  %5778 = vst [vmem:[%s7 + $0x710] sm:$0xff] %v4827
  %5779 = vst.msk [vmem:[%s7 + $0x718] sm:$0xff] %vm2236, %v5505
  %5780 = vst [vmem:[%s7 + $0x720] sm:$0xff] %v4830
  %5781 = vst.msk [vmem:[%s7 + $0x728] sm:$0xff] %vm2236, %v5508
  %5782 = vst [vmem:[%s7 + $0x730] sm:$0xff] %v4832
  %5783 = vst.msk [vmem:[%s7 + $0x738] sm:$0xff] %vm2236, %v5510
  %5784 = vst [vmem:[%s7 + $0x740] sm:$0xff] %v4835
  %5785 = vst.msk [vmem:[%s7 + $0x748] sm:$0xff] %vm2236, %v5513
  %5786 = vst [vmem:[%s7 + $0x750] sm:$0xff] %v4837
  %5787 = vst.msk [vmem:[%s7 + $0x758] sm:$0xff] %vm2236, %v5515
  %5788 = vst [vmem:[%s7 + $0x760] sm:$0xff] %v4840
  %5789 = vst.msk [vmem:[%s7 + $0x768] sm:$0xff] %vm2236, %v5518
  %5790 = vst [vmem:[%s7 + $0x770] sm:$0xff] %v4842
  %5791 = vst.msk [vmem:[%s7 + $0x778] sm:$0xff] %vm2236, %v5520
  %5792 = vst [vmem:[%s7 + $0x780] sm:$0xff] %v4845
  %5793 = vst.msk [vmem:[%s7 + $0x788] sm:$0xff] %vm2236, %v5523
  %5794 = vst [vmem:[%s7 + $0x790] sm:$0xff] %v4847
  %5795 = vst.msk [vmem:[%s7 + $0x798] sm:$0xff] %vm2236, %v5525
  %5796 = vst [vmem:[%s7 + $0x7a0] sm:$0xff] %v4850
  %5797 = vst.msk [vmem:[%s7 + $0x7a8] sm:$0xff] %vm2236, %v5528
  %5798 = vst [vmem:[%s7 + $0x7b0] sm:$0xff] %v4852
  %5799 = vst.msk [vmem:[%s7 + $0x7b8] sm:$0xff] %vm2236, %v5530
  %5800 = vst [vmem:[%s7 + $0x7c0] sm:$0xff] %v4855
  %5801 = vst.msk [vmem:[%s7 + $0x7c8] sm:$0xff] %vm2236, %v5533
  %5802 = vst [vmem:[%s7 + $0x7d0] sm:$0xff] %v4857
  %5803 = vst.msk [vmem:[%s7 + $0x7d8] sm:$0xff] %vm2236, %v5535
  %5804 = vst [vmem:[%s7 + $0x7e0] sm:$0xff] %v4860
  %5805 = vst.msk [vmem:[%s7 + $0x7e8] sm:$0xff] %vm2236, %v5538
  %5806 = vst [vmem:[%s7 + $0x7f0] sm:$0xff] %v4862
  %5807 = vst.msk [vmem:[%s7 + $0x7f8] sm:$0xff] %vm2236, %v5540
  %5808 = vst [vmem:[%s7 + $0x800] sm:$0xff] %v4865
  %5809 = vst.msk [vmem:[%s7 + $0x808] sm:$0xff] %vm2236, %v5543
  %5810 = vst [vmem:[%s7 + $0x810] sm:$0xff] %v4867
  %5811 = vst.msk [vmem:[%s7 + $0x818] sm:$0xff] %vm2236, %v5545
  %5812 = vst [vmem:[%s7 + $0x820] sm:$0xff] %v4870
  %5813 = vst.msk [vmem:[%s7 + $0x828] sm:$0xff] %vm2236, %v5548
  %5814 = vst [vmem:[%s7 + $0x830] sm:$0xff] %v4872
  %5815 = vst.msk [vmem:[%s7 + $0x838] sm:$0xff] %vm2236, %v5550
  // Predicated region
  $region30: #{fused_forward.1} parent=0 // pred_check
    _
  $region31: #{fused_forward.1} parent=0 // pred_check_branch
    %5817 = sbr.rel (0) target = $region33
  $region32: #{fused_forward.1} parent=0 // pred_region
    _
  $region33: #{fused_forward.1} parent=0 // pred_fallthru
    _
  // Predicated region
  $region34: #{fused_forward.1} parent=0 // pred_check
    _
  $region35: #{fused_forward.1} parent=0 // pred_check_branch
    %5819 = sbr.rel (0) target = $region37
  $region36: #{fused_forward.1} parent=0 // pred_region
    _
  $region37: #{fused_forward.1} parent=0 // pred_fallthru
    _

</llo_original>
